<compile_context>
chip_gen: v7x
topology: tpu7x:2x2x1
jax: 0.10.0
libtpu: 0.0.40
codegen_flags: <defaults>
</compile_context>

<pallas_src>
import numpy as np
import jax
import jax.numpy as jnp
from jax import lax
from jax.experimental import pallas as pl
from jax.experimental.pallas import tpu as pltpu

# Small shapes (GroupNorm(32, C) requires C % 32 == 0).
N, H, W = 2, 8, 8
C_IN, C_OUT = 32, 64
T_EMB = 32
GROUPS = 32
EPS = 1e-6                       # matches the PyTorch module default eps=1e-06
HW = H * W
NHW = N * HW
_PREC = jax.lax.Precision.HIGHEST   # used only by the pure-JAX reference

# The bitwise boundary-mask math below assumes power-of-two W and HW.
assert (W & (W - 1)) == 0 and (HW & (HW - 1)) == 0


def _silu(v):
    # sigmoid(x) = 0.5 * (1 + tanh(x/2)): keeps SiLU on the EUP (tanh) rather
    # than spending a VALU divide on 1 / (1 + exp(-x)).
    return v * (0.5 * jnp.tanh(0.5 * v) + 0.5)


def residual_block_kernel(x_ref, temb_ref, vec_ref, w1t_ref, w2s_ref, out_ref):
    x = x_ref[...]                                  # flat (N*HW, C_in)

    # ---- boundary masks for the 8 non-center conv taps (shared by both convs)
    p = lax.broadcasted_iota(jnp.int32, (NHW, 1), 0)   # flat index over N*HW
    q = jnp.bitwise_and(p, HW - 1)                     # index within the image
    col = jnp.bitwise_and(p, W - 1)                    # column within the row
    row_ok = {-1: q >= W, 0: None, 1: q < HW - W}
    col_ok = {-1: col >= 1, 0: None, 1: col <= W - 2}
    masks = {}
    for dy in (-1, 0, 1):
        for dx in (-1, 0, 1):
            if dy == 0 and dx == 0:
                continue
            ok = None
            for cond in (row_ok[dy], col_ok[dx]):
                if cond is not None:
                    ok = cond if ok is None else jnp.logical_and(ok, cond)
            masks[(dy, dx)] = ok

    def conv_taps(act):
        # im2col columns of a 3x3 "same" conv: tap (dy, dx) is the activation
        # shifted by dy*W + dx flat rows (pltpu.roll on the sublane axis = XLU,
        # no VMEM copy), with out-of-image rows zeroed (== zero padding).
        # Rows that would wrap across the batch boundary are exactly the
        # masked (out-of-image) rows, so folding the batch stays correct.
        taps = []
        for dy in (-1, 0, 1):
            for dx in (-1, 0, 1):
                delta = dy * W + dx
                if delta == 0:
                    taps.append(act)
                else:
                    rolled = pltpu.roll(act, shift=(-delta) % NHW, axis=0)
                    taps.append(jnp.where(masks[(dy, dx)], rolled, 0.0))
        return taps

    def group_norm(h, gamma, beta, group_size):
        c = h.shape[-1]
        hr = h.reshape(N, HW, c)            # 64-row split: 8-sublane aligned, free
        inv_hw = 1.0 / HW
        mean_c = jnp.sum(hr, axis=1) * inv_hw          # per-batch (N, C)
        ex2_c = jnp.sum(hr * hr, axis=1) * inv_hw      # per-batch (N, C)
        if group_size == 1:        # groups == channels: stats are per-channel
            mean_g, ex2_g = mean_c, ex2_c
        elif group_size == 2:      # adjacent-channel pairs: lane-roll average
            stats = jnp.concatenate([mean_c, ex2_c], axis=0)       # (2N, C)
            ch = lax.broadcasted_iota(jnp.int32, stats.shape, 1)
            even = jnp.bitwise_and(ch, 1) == 0
            partner = jnp.where(even,
                                pltpu.roll(stats, shift=c - 1, axis=1),
                                pltpu.roll(stats, shift=1, axis=1))
            stats = 0.5 * (stats + partner)
            mean_g, ex2_g = stats[:N, :], stats[N:, :]
        else:
            # TODO(synk): general group sizes would need a small group-average
            # matmul; not required for this module configuration.
            raise NotImplementedError("group_size must be 1 or 2")
        var_g = jnp.maximum(ex2_g - mean_g * mean_g, 0.0)
        scale = lax.rsqrt(var_g + EPS) * gamma                     # (N, C)
        shift = beta - mean_g * scale                              # (N, C)
        return (hr * scale[:, None, :] + shift[:, None, :]).reshape(NHW, c)

    def fused_conv(taps, extra, w_ref, c_tap, bias):
        # Two accumulating MXU dots per conv (instead of one wide one) to halve
        # peak live im2col vreg pressure; MXU work and K-fusion are unchanged.
        k_a = 5 * c_tap
        k_total = w_ref.shape[0]
        m_a = jnp.concatenate(taps[:5], axis=1)              # (NHW, 5*c_tap)
        m_b = jnp.concatenate(taps[5:] + [extra], axis=1)    # (NHW, 4*c_tap + extra)
        acc = jnp.dot(m_a, w_ref[0:k_a, :], preferred_element_type=jnp.float32)
        acc = acc + jnp.dot(m_b, w_ref[k_a:k_total, :],
                            preferred_element_type=jnp.float32)
        return acc + bias

    vec = vec_ref[...]                      # packed per-channel vectors (6, C_out)
    g1, be1 = vec[0:1, :C_IN], vec[1:2, :C_IN]
    g2, be2 = vec[2:3, :], vec[3:4, :]
    b1t = vec[4:5, :]                       # conv1 bias + time-proj bias
    b2s = vec[5:6, :]                       # conv2 bias + shortcut bias

    # norm1 -> SiLU -> [conv1 | time-embedding projection] (fused along K).
    h = _silu(group_norm(x, g1, be1, C_IN // GROUPS))
    temb = _silu(temb_ref[...])                                   # (N, T)
    temb_rows = jnp.broadcast_to(temb[:, None, :],
                                 (N, HW, T_EMB)).reshape(NHW, T_EMB)
    h = fused_conv(conv_taps(h), temb_rows, w1t_ref, C_IN, b1t)

    # norm2 -> SiLU -> [conv2 | 1x1 shortcut on the original x] (fused along K).
    h = _silu(group_norm(h, g2, be2, C_OUT // GROUPS))
    out = fused_conv(conv_taps(h), x, w2s_ref, C_OUT, b2s)

    out_ref[...] = out


def residual_block(x, temb, params):
    # Fused matmul weights: [conv1 (9*C_in) | time-proj (T_EMB)] and
    # [conv2 (9*C_out) | 1x1 shortcut (C_in)], stacked along K in HWIO raster
    # order to match the in-kernel tap ordering.
    w1t = jnp.concatenate(
        [params["w1"].reshape(9 * C_IN, C_OUT), params["wt"]], axis=0)
    w2s = jnp.concatenate(
        [params["w2"].reshape(9 * C_OUT, C_OUT), params["ws"]], axis=0)

    def pad_c(v):   # pad (1, C_in) vectors out to C_out lanes
        return jnp.pad(v, ((0, 0), (0, C_OUT - v.shape[1])))

    vecs = jnp.concatenate(
        [pad_c(params["g1"]), pad_c(params["be1"]),
         params["g2"], params["be2"],
         params["cb1"] + params["bt"],      # conv1 bias + time-proj bias
         params["cb2"] + params["bs"]],     # conv2 bias + shortcut bias
        axis=0)                             # (6, C_out)

    # Free metadata reshape in XLA: present activations as flat (N*HW, C).
    x2d = x.reshape(NHW, C_IN)

    vmem = pl.BlockSpec(memory_space=pltpu.MemorySpace.VMEM)
    out = pl.pallas_call(
        residual_block_kernel,
        out_shape=jax.ShapeDtypeStruct((NHW, C_OUT), jnp.float32),
        in_specs=[vmem, vmem, vmem, vmem, vmem],
        out_specs=vmem,
    )(x2d, temb, vecs, w1t, w2s)
    return out.reshape(N, H, W, C_OUT)


# ---------- pure-JAX reference (for correctness check) ----------
def _group_norm_ref(x, gamma, beta, groups, eps):
    n, h, w, c = x.shape
    xg = x.reshape(n, h, w, groups, c // groups)
    mean = xg.mean(axis=(1, 2, 4), keepdims=True)
    var = xg.var(axis=(1, 2, 4), keepdims=True)
    xn = ((xg - mean) / jnp.sqrt(var + eps)).reshape(n, h, w, c)
    return xn * gamma + beta


def _conv3x3_ref(x, w, b):
    y = lax.conv_general_dilated(
        x, w, window_strides=(1, 1), padding=((1, 1), (1, 1)),
        dimension_numbers=("NHWC", "HWIO", "NHWC"), precision=_PREC)
    return y + b


def _reference(x, temb, p):
    h = _group_norm_ref(x, p["g1"], p["be1"], GROUPS, EPS)
    h = jax.nn.silu(h)
    h = _conv3x3_ref(h, p["w1"], p["cb1"])
    t = jnp.dot(jax.nn.silu(temb), p["wt"], precision=_PREC) + p["bt"]
    h = h + t[:, None, None, :]
    h = _group_norm_ref(h, p["g2"], p["be2"], GROUPS, EPS)
    h = jax.nn.silu(h)
    h = _conv3x3_ref(h, p["w2"], p["cb2"])
    res = jnp.dot(x.reshape(-1, C_IN), p["ws"], precision=_PREC) + p["bs"]
    return h + res.reshape(N, H, W, C_OUT)


if __name__ == "__main__":
    key = jax.random.PRNGKey(0)
    ks = jax.random.split(key, 14)

    x = jax.random.normal(ks[0], (N, H, W, C_IN), jnp.float32)
    temb = jax.random.normal(ks[1], (N, T_EMB), jnp.float32)

    # Deterministic synthetic parameters (shapes per the PyTorch module __init__).
    p = dict(
        g1=1.0 + 0.1 * jax.random.normal(ks[2], (1, C_IN), jnp.float32),
        be1=0.1 * jax.random.normal(ks[3], (1, C_IN), jnp.float32),
        w1=0.05 * jax.random.normal(ks[4], (3, 3, C_IN, C_OUT), jnp.float32),
        cb1=0.05 * jax.random.normal(ks[5], (1, C_OUT), jnp.float32),
        wt=0.05 * jax.random.normal(ks[6], (T_EMB, C_OUT), jnp.float32),
        bt=0.05 * jax.random.normal(ks[7], (1, C_OUT), jnp.float32),
        g2=1.0 + 0.1 * jax.random.normal(ks[8], (1, C_OUT), jnp.float32),
        be2=0.1 * jax.random.normal(ks[9], (1, C_OUT), jnp.float32),
        w2=0.05 * jax.random.normal(ks[10], (3, 3, C_OUT, C_OUT), jnp.float32),
        cb2=0.05 * jax.random.normal(ks[11], (1, C_OUT), jnp.float32),
        ws=0.05 * jax.random.normal(ks[12], (C_IN, C_OUT), jnp.float32),
        bs=0.05 * jax.random.normal(ks[13], (1, C_OUT), jnp.float32),
    )

    out = residual_block(x, temb, p)
    out = jax.block_until_ready(out)

    ref = _reference(x, temb, p)
    # DEFAULT-precision (bf16 MXU) matmuls in the kernel vs. HIGHEST-precision
    # reference: tolerance relaxed accordingly (per the perf review).
    np.testing.assert_allclose(np.asarray(out), np.asarray(ref),
                               rtol=3e-2, atol=3e-2)
    print("KERNEL_OK")
</pallas_src>

<mosaic_0001>
module attributes {stable_mosaic.version = 11 : i64} {
  func.func @residual_block_kernel(%arg0: memref<128x32xf32, #tpu.memory_space<vmem>>, %arg1: memref<2x32xf32, #tpu.memory_space<vmem>>, %arg2: memref<6x64xf32, #tpu.memory_space<vmem>>, %arg3: memref<320x64xf32, #tpu.memory_space<vmem>>, %arg4: memref<608x64xf32, #tpu.memory_space<vmem>>, %arg5: memref<128x64xf32, #tpu.memory_space<vmem>>) attributes {dimension_semantics = [], scalar_prefetch = 0 : i64, scratch_operands = 0 : i64, tpu.core_type = #tpu.core_type<tc>} {
    %c0 = arith.constant 0 : index
    %c0_0 = arith.constant 0 : index
    %0 = vector.load %arg0[%c0, %c0_0] : memref<128x32xf32, #tpu.memory_space<vmem>>, vector<128x32xf32>
    %1 = tpu.iota {dimensions = array<i32: 0>} : vector<128x1xi32>
    %c63_i32 = arith.constant 63 : i32
    %2 = vector.broadcast %c63_i32 : i32 to vector<128x1xi32>
    %3 = arith.andi %1, %2 : vector<128x1xi32>
    %c7_i32 = arith.constant 7 : i32
    %4 = vector.broadcast %c7_i32 : i32 to vector<128x1xi32>
    %5 = arith.andi %1, %4 : vector<128x1xi32>
    %c8_i32 = arith.constant 8 : i32
    %6 = vector.broadcast %c8_i32 : i32 to vector<128x1xi32>
    %7 = arith.cmpi sge, %3, %6 : vector<128x1xi32>
    %c56_i32 = arith.constant 56 : i32
    %8 = vector.broadcast %c56_i32 : i32 to vector<128x1xi32>
    %9 = arith.cmpi slt, %3, %8 : vector<128x1xi32>
    %c1_i32 = arith.constant 1 : i32
    %10 = vector.broadcast %c1_i32 : i32 to vector<128x1xi32>
    %11 = arith.cmpi sge, %5, %10 : vector<128x1xi32>
    %c6_i32 = arith.constant 6 : i32
    %12 = vector.broadcast %c6_i32 : i32 to vector<128x1xi32>
    %13 = arith.cmpi sle, %5, %12 : vector<128x1xi32>
    %14 = arith.andi %7, %11 : vector<128x1xi1>
    %15 = arith.andi %7, %13 : vector<128x1xi1>
    %16 = arith.andi %9, %11 : vector<128x1xi1>
    %17 = arith.andi %9, %13 : vector<128x1xi1>
    %c0_1 = arith.constant 0 : index
    %c0_2 = arith.constant 0 : index
    %18 = vector.load %arg2[%c0_1, %c0_2] : memref<6x64xf32, #tpu.memory_space<vmem>>, vector<6x64xf32>
    %19 = vector.extract_strided_slice %18 {offsets = [0, 0], sizes = [1, 32], strides = [1, 1]} : vector<6x64xf32> to vector<1x32xf32>
    %20 = vector.extract_strided_slice %18 {offsets = [1, 0], sizes = [1, 32], strides = [1, 1]} : vector<6x64xf32> to vector<1x32xf32>
    %21 = vector.extract_strided_slice %18 {offsets = [2, 0], sizes = [1, 64], strides = [1, 1]} : vector<6x64xf32> to vector<1x64xf32>
    %22 = vector.extract_strided_slice %18 {offsets = [3, 0], sizes = [1, 64], strides = [1, 1]} : vector<6x64xf32> to vector<1x64xf32>
    %23 = vector.extract_strided_slice %18 {offsets = [4, 0], sizes = [1, 64], strides = [1, 1]} : vector<6x64xf32> to vector<1x64xf32>
    %24 = vector.extract_strided_slice %18 {offsets = [5, 0], sizes = [1, 64], strides = [1, 1]} : vector<6x64xf32> to vector<1x64xf32>
    %25 = vector.shape_cast %0 : vector<128x32xf32> to vector<2x64x32xf32>
    %cst = arith.constant dense<0.000000e+00> : vector<2x32xf32>
    %26 = vector.multi_reduction <add>, %25, %cst [1] : vector<2x64x32xf32> to vector<2x32xf32>
    %cst_3 = arith.constant 1.562500e-02 : f32
    %27 = vector.broadcast %cst_3 : f32 to vector<2x32xf32>
    %28 = arith.mulf %26, %27 : vector<2x32xf32>
    %29 = arith.mulf %25, %25 : vector<2x64x32xf32>
    %cst_4 = arith.constant dense<0.000000e+00> : vector<2x32xf32>
    %30 = vector.multi_reduction <add>, %29, %cst_4 [1] : vector<2x64x32xf32> to vector<2x32xf32>
    %cst_5 = arith.constant 1.562500e-02 : f32
    %31 = vector.broadcast %cst_5 : f32 to vector<2x32xf32>
    %32 = arith.mulf %30, %31 : vector<2x32xf32>
    %33 = arith.mulf %28, %28 : vector<2x32xf32>
    %34 = arith.subf %32, %33 : vector<2x32xf32>
    %cst_6 = arith.constant 0.000000e+00 : f32
    %35 = vector.broadcast %cst_6 : f32 to vector<2x32xf32>
    %36 = arith.maximumf %34, %35 : vector<2x32xf32>
    %cst_7 = arith.constant 9.99999997E-7 : f32
    %37 = vector.broadcast %cst_7 : f32 to vector<2x32xf32>
    %38 = arith.addf %36, %37 : vector<2x32xf32>
    %39 = math.rsqrt %38 : vector<2x32xf32>
    %40 = vector.broadcast %19 : vector<1x32xf32> to vector<2x32xf32>
    %41 = arith.mulf %39, %40 : vector<2x32xf32>
    %42 = arith.mulf %28, %41 : vector<2x32xf32>
    %43 = vector.broadcast %20 : vector<1x32xf32> to vector<2x32xf32>
    %44 = arith.subf %43, %42 : vector<2x32xf32>
    %45 = vector.shape_cast %41 : vector<2x32xf32> to vector<2x1x32xf32>
    %46 = vector.broadcast %45 : vector<2x1x32xf32> to vector<2x64x32xf32>
    %47 = arith.mulf %25, %46 : vector<2x64x32xf32>
    %48 = vector.shape_cast %44 : vector<2x32xf32> to vector<2x1x32xf32>
    %49 = vector.broadcast %48 : vector<2x1x32xf32> to vector<2x64x32xf32>
    %50 = arith.addf %47, %49 : vector<2x64x32xf32>
    %51 = vector.shape_cast %50 : vector<2x64x32xf32> to vector<128x32xf32>
    %cst_8 = arith.constant 5.000000e-01 : f32
    %52 = vector.broadcast %cst_8 : f32 to vector<128x32xf32>
    %53 = arith.mulf %52, %51 : vector<128x32xf32>
    %54 = math.tanh %53 : vector<128x32xf32>
    %cst_9 = arith.constant 5.000000e-01 : f32
    %55 = vector.broadcast %cst_9 : f32 to vector<128x32xf32>
    %56 = arith.mulf %55, %54 : vector<128x32xf32>
    %cst_10 = arith.constant 5.000000e-01 : f32
    %57 = vector.broadcast %cst_10 : f32 to vector<128x32xf32>
    %58 = arith.addf %56, %57 : vector<128x32xf32>
    %59 = arith.mulf %51, %58 : vector<128x32xf32>
    %c0_11 = arith.constant 0 : index
    %c0_12 = arith.constant 0 : index
    %60 = vector.load %arg1[%c0_11, %c0_12] : memref<2x32xf32, #tpu.memory_space<vmem>>, vector<2x32xf32>
    %cst_13 = arith.constant 5.000000e-01 : f32
    %61 = vector.broadcast %cst_13 : f32 to vector<2x32xf32>
    %62 = arith.mulf %61, %60 : vector<2x32xf32>
    %63 = math.tanh %62 : vector<2x32xf32>
    %cst_14 = arith.constant 5.000000e-01 : f32
    %64 = vector.broadcast %cst_14 : f32 to vector<2x32xf32>
    %65 = arith.mulf %64, %63 : vector<2x32xf32>
    %cst_15 = arith.constant 5.000000e-01 : f32
    %66 = vector.broadcast %cst_15 : f32 to vector<2x32xf32>
    %67 = arith.addf %65, %66 : vector<2x32xf32>
    %68 = arith.mulf %60, %67 : vector<2x32xf32>
    %69 = vector.shape_cast %68 : vector<2x32xf32> to vector<2x1x32xf32>
    %70 = vector.shape_cast %69 : vector<2x1x32xf32> to vector<2x1x32xf32>
    %71 = vector.broadcast %70 : vector<2x1x32xf32> to vector<2x64x32xf32>
    %72 = vector.shape_cast %71 : vector<2x64x32xf32> to vector<128x32xf32>
    %c9_i32 = arith.constant 9 : i32
    %73 = tpu.dynamic_rotate %59 by %c9_i32 dim 0 : vector<128x32xf32>, i32 -> vector<128x32xf32>
    %cst_16 = arith.constant 0.000000e+00 : f32
    %74 = vector.shape_cast %14 : vector<128x1xi1> to vector<128x1xi1>
    %75 = vector.broadcast %74 : vector<128x1xi1> to vector<128x32xi1>
    %76 = vector.broadcast %cst_16 : f32 to vector<128x32xf32>
    %77 = arith.select %75, %73, %76 : vector<128x32xi1>, vector<128x32xf32>
    %c8_i32_17 = arith.constant 8 : i32
    %78 = tpu.dynamic_rotate %59 by %c8_i32_17 dim 0 : vector<128x32xf32>, i32 -> vector<128x32xf32>
    %cst_18 = arith.constant 0.000000e+00 : f32
    %79 = vector.shape_cast %7 : vector<128x1xi1> to vector<128x1xi1>
    %80 = vector.broadcast %79 : vector<128x1xi1> to vector<128x32xi1>
    %81 = vector.broadcast %cst_18 : f32 to vector<128x32xf32>
    %82 = arith.select %80, %78, %81 : vector<128x32xi1>, vector<128x32xf32>
    %c7_i32_19 = arith.constant 7 : i32
    %83 = tpu.dynamic_rotate %59 by %c7_i32_19 dim 0 : vector<128x32xf32>, i32 -> vector<128x32xf32>
    %cst_20 = arith.constant 0.000000e+00 : f32
    %84 = vector.shape_cast %15 : vector<128x1xi1> to vector<128x1xi1>
    %85 = vector.broadcast %84 : vector<128x1xi1> to vector<128x32xi1>
    %86 = vector.broadcast %cst_20 : f32 to vector<128x32xf32>
    %87 = arith.select %85, %83, %86 : vector<128x32xi1>, vector<128x32xf32>
    %c1_i32_21 = arith.constant 1 : i32
    %88 = tpu.dynamic_rotate %59 by %c1_i32_21 dim 0 : vector<128x32xf32>, i32 -> vector<128x32xf32>
    %cst_22 = arith.constant 0.000000e+00 : f32
    %89 = vector.shape_cast %11 : vector<128x1xi1> to vector<128x1xi1>
    %90 = vector.broadcast %89 : vector<128x1xi1> to vector<128x32xi1>
    %91 = vector.broadcast %cst_22 : f32 to vector<128x32xf32>
    %92 = arith.select %90, %88, %91 : vector<128x32xi1>, vector<128x32xf32>
    %c127_i32 = arith.constant 127 : i32
    %93 = tpu.dynamic_rotate %59 by %c127_i32 dim 0 : vector<128x32xf32>, i32 -> vector<128x32xf32>
    %cst_23 = arith.constant 0.000000e+00 : f32
    %94 = vector.shape_cast %13 : vector<128x1xi1> to vector<128x1xi1>
    %95 = vector.broadcast %94 : vector<128x1xi1> to vector<128x32xi1>
    %96 = vector.broadcast %cst_23 : f32 to vector<128x32xf32>
    %97 = arith.select %95, %93, %96 : vector<128x32xi1>, vector<128x32xf32>
    %c121_i32 = arith.constant 121 : i32
    %98 = tpu.dynamic_rotate %59 by %c121_i32 dim 0 : vector<128x32xf32>, i32 -> vector<128x32xf32>
    %cst_24 = arith.constant 0.000000e+00 : f32
    %99 = vector.shape_cast %16 : vector<128x1xi1> to vector<128x1xi1>
    %100 = vector.broadcast %99 : vector<128x1xi1> to vector<128x32xi1>
    %101 = vector.broadcast %cst_24 : f32 to vector<128x32xf32>
    %102 = arith.select %100, %98, %101 : vector<128x32xi1>, vector<128x32xf32>
    %c120_i32 = arith.constant 120 : i32
    %103 = tpu.dynamic_rotate %59 by %c120_i32 dim 0 : vector<128x32xf32>, i32 -> vector<128x32xf32>
    %cst_25 = arith.constant 0.000000e+00 : f32
    %104 = vector.shape_cast %9 : vector<128x1xi1> to vector<128x1xi1>
    %105 = vector.broadcast %104 : vector<128x1xi1> to vector<128x32xi1>
    %106 = vector.broadcast %cst_25 : f32 to vector<128x32xf32>
    %107 = arith.select %105, %103, %106 : vector<128x32xi1>, vector<128x32xf32>
    %c119_i32 = arith.constant 119 : i32
    %108 = tpu.dynamic_rotate %59 by %c119_i32 dim 0 : vector<128x32xf32>, i32 -> vector<128x32xf32>
    %cst_26 = arith.constant 0.000000e+00 : f32
    %109 = vector.shape_cast %17 : vector<128x1xi1> to vector<128x1xi1>
    %110 = vector.broadcast %109 : vector<128x1xi1> to vector<128x32xi1>
    %111 = vector.broadcast %cst_26 : f32 to vector<128x32xf32>
    %112 = arith.select %110, %108, %111 : vector<128x32xi1>, vector<128x32xf32>
    %113 = tpu.concatenate %77, %82, %87, %92, %59 in 1 : vector<128x32xf32>, vector<128x32xf32>, vector<128x32xf32>, vector<128x32xf32>, vector<128x32xf32> -> vector<128x160xf32>
    %114 = tpu.concatenate %97, %102, %107, %112, %72 in 1 : vector<128x32xf32>, vector<128x32xf32>, vector<128x32xf32>, vector<128x32xf32>, vector<128x32xf32> -> vector<128x160xf32>
    %c0_27 = arith.constant 0 : index
    %c0_28 = arith.constant 0 : index
    %115 = vector.load %arg3[%c0_27, %c0_28] : memref<320x64xf32, #tpu.memory_space<vmem>>, vector<160x64xf32>
    %cst_29 = arith.constant dense<0.000000e+00> : vector<128x64xf32>
    %116 = tpu.matmul %113, %115, %cst_29 {dimension_numbers = #tpu.dot_dimension_numbers<[1], [0], [0], [1], [0, 0, 1, 1], [], []>} : vector<128x160xf32>, vector<160x64xf32>, vector<128x64xf32> -> vector<128x64xf32>
    %c160 = arith.constant 160 : index
    %c0_30 = arith.constant 0 : index
    %117 = vector.load %arg3[%c160, %c0_30] : memref<320x64xf32, #tpu.memory_space<vmem>>, vector<160x64xf32>
    %cst_31 = arith.constant dense<0.000000e+00> : vector<128x64xf32>
    %118 = tpu.matmul %114, %117, %cst_31 {dimension_numbers = #tpu.dot_dimension_numbers<[1], [0], [0], [1], [0, 0, 1, 1], [], []>} : vector<128x160xf32>, vector<160x64xf32>, vector<128x64xf32> -> vector<128x64xf32>
    %119 = arith.addf %116, %118 : vector<128x64xf32>
    %120 = vector.broadcast %23 : vector<1x64xf32> to vector<128x64xf32>
    %121 = arith.addf %119, %120 : vector<128x64xf32>
    %122 = vector.shape_cast %121 : vector<128x64xf32> to vector<2x64x64xf32>
    %cst_32 = arith.constant dense<0.000000e+00> : vector<2x64xf32>
    %123 = vector.multi_reduction <add>, %122, %cst_32 [1] : vector<2x64x64xf32> to vector<2x64xf32>
    %cst_33 = arith.constant 1.562500e-02 : f32
    %124 = vector.broadcast %cst_33 : f32 to vector<2x64xf32>
    %125 = arith.mulf %123, %124 : vector<2x64xf32>
    %126 = arith.mulf %122, %122 : vector<2x64x64xf32>
    %cst_34 = arith.constant dense<0.000000e+00> : vector<2x64xf32>
    %127 = vector.multi_reduction <add>, %126, %cst_34 [1] : vector<2x64x64xf32> to vector<2x64xf32>
    %cst_35 = arith.constant 1.562500e-02 : f32
    %128 = vector.broadcast %cst_35 : f32 to vector<2x64xf32>
    %129 = arith.mulf %127, %128 : vector<2x64xf32>
    %130 = tpu.concatenate %125, %129 in 0 : vector<2x64xf32>, vector<2x64xf32> -> vector<4x64xf32>
    %131 = tpu.iota {dimensions = array<i32: 1>} : vector<4x64xi32>
    %c1_i32_36 = arith.constant 1 : i32
    %132 = vector.broadcast %c1_i32_36 : i32 to vector<4x64xi32>
    %133 = arith.andi %131, %132 : vector<4x64xi32>
    %c0_i32 = arith.constant 0 : i32
    %134 = vector.broadcast %c0_i32 : i32 to vector<4x64xi32>
    %135 = arith.cmpi eq, %133, %134 : vector<4x64xi32>
    %c63_i32_37 = arith.constant 63 : i32
    %136 = tpu.dynamic_rotate %130 by %c63_i32_37 dim 1 : vector<4x64xf32>, i32 -> vector<4x64xf32>
    %c1_i32_38 = arith.constant 1 : i32
    %137 = tpu.dynamic_rotate %130 by %c1_i32_38 dim 1 : vector<4x64xf32>, i32 -> vector<4x64xf32>
    %138 = arith.select %135, %136, %137 : vector<4x64xi1>, vector<4x64xf32>
    %139 = arith.addf %130, %138 : vector<4x64xf32>
    %cst_39 = arith.constant 5.000000e-01 : f32
    %140 = vector.broadcast %cst_39 : f32 to vector<4x64xf32>
    %141 = arith.mulf %140, %139 : vector<4x64xf32>
    %142 = vector.extract_strided_slice %141 {offsets = [0, 0], sizes = [2, 64], strides = [1, 1]} : vector<4x64xf32> to vector<2x64xf32>
    %143 = vector.extract_strided_slice %141 {offsets = [2, 0], sizes = [2, 64], strides = [1, 1]} : vector<4x64xf32> to vector<2x64xf32>
    %144 = arith.mulf %142, %142 : vector<2x64xf32>
    %145 = arith.subf %143, %144 : vector<2x64xf32>
    %cst_40 = arith.constant 0.000000e+00 : f32
    %146 = vector.broadcast %cst_40 : f32 to vector<2x64xf32>
    %147 = arith.maximumf %145, %146 : vector<2x64xf32>
    %cst_41 = arith.constant 9.99999997E-7 : f32
    %148 = vector.broadcast %cst_41 : f32 to vector<2x64xf32>
    %149 = arith.addf %147, %148 : vector<2x64xf32>
    %150 = math.rsqrt %149 : vector<2x64xf32>
    %151 = vector.broadcast %21 : vector<1x64xf32> to vector<2x64xf32>
    %152 = arith.mulf %150, %151 : vector<2x64xf32>
    %153 = arith.mulf %142, %152 : vector<2x64xf32>
    %154 = vector.broadcast %22 : vector<1x64xf32> to vector<2x64xf32>
    %155 = arith.subf %154, %153 : vector<2x64xf32>
    %156 = vector.shape_cast %152 : vector<2x64xf32> to vector<2x1x64xf32>
    %157 = vector.broadcast %156 : vector<2x1x64xf32> to vector<2x64x64xf32>
    %158 = arith.mulf %122, %157 : vector<2x64x64xf32>
    %159 = vector.shape_cast %155 : vector<2x64xf32> to vector<2x1x64xf32>
    %160 = vector.broadcast %159 : vector<2x1x64xf32> to vector<2x64x64xf32>
    %161 = arith.addf %158, %160 : vector<2x64x64xf32>
    %162 = vector.shape_cast %161 : vector<2x64x64xf32> to vector<128x64xf32>
    %cst_42 = arith.constant 5.000000e-01 : f32
    %163 = vector.broadcast %cst_42 : f32 to vector<128x64xf32>
    %164 = arith.mulf %163, %162 : vector<128x64xf32>
    %165 = math.tanh %164 : vector<128x64xf32>
    %cst_43 = arith.constant 5.000000e-01 : f32
    %166 = vector.broadcast %cst_43 : f32 to vector<128x64xf32>
    %167 = arith.mulf %166, %165 : vector<128x64xf32>
    %cst_44 = arith.constant 5.000000e-01 : f32
    %168 = vector.broadcast %cst_44 : f32 to vector<128x64xf32>
    %169 = arith.addf %167, %168 : vector<128x64xf32>
    %170 = arith.mulf %162, %169 : vector<128x64xf32>
    %c9_i32_45 = arith.constant 9 : i32
    %171 = tpu.dynamic_rotate %170 by %c9_i32_45 dim 0 : vector<128x64xf32>, i32 -> vector<128x64xf32>
    %cst_46 = arith.constant 0.000000e+00 : f32
    %172 = vector.shape_cast %14 : vector<128x1xi1> to vector<128x1xi1>
    %173 = vector.broadcast %172 : vector<128x1xi1> to vector<128x64xi1>
    %174 = vector.broadcast %cst_46 : f32 to vector<128x64xf32>
    %175 = arith.select %173, %171, %174 : vector<128x64xi1>, vector<128x64xf32>
    %c8_i32_47 = arith.constant 8 : i32
    %176 = tpu.dynamic_rotate %170 by %c8_i32_47 dim 0 : vector<128x64xf32>, i32 -> vector<128x64xf32>
    %cst_48 = arith.constant 0.000000e+00 : f32
    %177 = vector.shape_cast %7 : vector<128x1xi1> to vector<128x1xi1>
    %178 = vector.broadcast %177 : vector<128x1xi1> to vector<128x64xi1>
    %179 = vector.broadcast %cst_48 : f32 to vector<128x64xf32>
    %180 = arith.select %178, %176, %179 : vector<128x64xi1>, vector<128x64xf32>
    %c7_i32_49 = arith.constant 7 : i32
    %181 = tpu.dynamic_rotate %170 by %c7_i32_49 dim 0 : vector<128x64xf32>, i32 -> vector<128x64xf32>
    %cst_50 = arith.constant 0.000000e+00 : f32
    %182 = vector.shape_cast %15 : vector<128x1xi1> to vector<128x1xi1>
    %183 = vector.broadcast %182 : vector<128x1xi1> to vector<128x64xi1>
    %184 = vector.broadcast %cst_50 : f32 to vector<128x64xf32>
    %185 = arith.select %183, %181, %184 : vector<128x64xi1>, vector<128x64xf32>
    %c1_i32_51 = arith.constant 1 : i32
    %186 = tpu.dynamic_rotate %170 by %c1_i32_51 dim 0 : vector<128x64xf32>, i32 -> vector<128x64xf32>
    %cst_52 = arith.constant 0.000000e+00 : f32
    %187 = vector.shape_cast %11 : vector<128x1xi1> to vector<128x1xi1>
    %188 = vector.broadcast %187 : vector<128x1xi1> to vector<128x64xi1>
    %189 = vector.broadcast %cst_52 : f32 to vector<128x64xf32>
    %190 = arith.select %188, %186, %189 : vector<128x64xi1>, vector<128x64xf32>
    %c127_i32_53 = arith.constant 127 : i32
    %191 = tpu.dynamic_rotate %170 by %c127_i32_53 dim 0 : vector<128x64xf32>, i32 -> vector<128x64xf32>
    %cst_54 = arith.constant 0.000000e+00 : f32
    %192 = vector.shape_cast %13 : vector<128x1xi1> to vector<128x1xi1>
    %193 = vector.broadcast %192 : vector<128x1xi1> to vector<128x64xi1>
    %194 = vector.broadcast %cst_54 : f32 to vector<128x64xf32>
    %195 = arith.select %193, %191, %194 : vector<128x64xi1>, vector<128x64xf32>
    %c121_i32_55 = arith.constant 121 : i32
    %196 = tpu.dynamic_rotate %170 by %c121_i32_55 dim 0 : vector<128x64xf32>, i32 -> vector<128x64xf32>
    %cst_56 = arith.constant 0.000000e+00 : f32
    %197 = vector.shape_cast %16 : vector<128x1xi1> to vector<128x1xi1>
    %198 = vector.broadcast %197 : vector<128x1xi1> to vector<128x64xi1>
    %199 = vector.broadcast %cst_56 : f32 to vector<128x64xf32>
    %200 = arith.select %198, %196, %199 : vector<128x64xi1>, vector<128x64xf32>
    %c120_i32_57 = arith.constant 120 : i32
    %201 = tpu.dynamic_rotate %170 by %c120_i32_57 dim 0 : vector<128x64xf32>, i32 -> vector<128x64xf32>
    %cst_58 = arith.constant 0.000000e+00 : f32
    %202 = vector.shape_cast %9 : vector<128x1xi1> to vector<128x1xi1>
    %203 = vector.broadcast %202 : vector<128x1xi1> to vector<128x64xi1>
    %204 = vector.broadcast %cst_58 : f32 to vector<128x64xf32>
    %205 = arith.select %203, %201, %204 : vector<128x64xi1>, vector<128x64xf32>
    %c119_i32_59 = arith.constant 119 : i32
    %206 = tpu.dynamic_rotate %170 by %c119_i32_59 dim 0 : vector<128x64xf32>, i32 -> vector<128x64xf32>
    %cst_60 = arith.constant 0.000000e+00 : f32
    %207 = vector.shape_cast %17 : vector<128x1xi1> to vector<128x1xi1>
    %208 = vector.broadcast %207 : vector<128x1xi1> to vector<128x64xi1>
    %209 = vector.broadcast %cst_60 : f32 to vector<128x64xf32>
    %210 = arith.select %208, %206, %209 : vector<128x64xi1>, vector<128x64xf32>
    %211 = tpu.concatenate %175, %180, %185, %190, %170 in 1 : vector<128x64xf32>, vector<128x64xf32>, vector<128x64xf32>, vector<128x64xf32>, vector<128x64xf32> -> vector<128x320xf32>
    %212 = tpu.concatenate %195, %200, %205, %210, %0 in 1 : vector<128x64xf32>, vector<128x64xf32>, vector<128x64xf32>, vector<128x64xf32>, vector<128x32xf32> -> vector<128x288xf32>
    %c0_61 = arith.constant 0 : index
    %c0_62 = arith.constant 0 : index
    %213 = vector.load %arg4[%c0_61, %c0_62] : memref<608x64xf32, #tpu.memory_space<vmem>>, vector<320x64xf32>
    %cst_63 = arith.constant dense<0.000000e+00> : vector<128x64xf32>
    %214 = tpu.matmul %211, %213, %cst_63 {dimension_numbers = #tpu.dot_dimension_numbers<[1], [0], [0], [1], [0, 0, 1, 1], [], []>} : vector<128x320xf32>, vector<320x64xf32>, vector<128x64xf32> -> vector<128x64xf32>
    %c320 = arith.constant 320 : index
    %c0_64 = arith.constant 0 : index
    %215 = vector.load %arg4[%c320, %c0_64] : memref<608x64xf32, #tpu.memory_space<vmem>>, vector<288x64xf32>
    %cst_65 = arith.constant dense<0.000000e+00> : vector<128x64xf32>
    %216 = tpu.matmul %212, %215, %cst_65 {dimension_numbers = #tpu.dot_dimension_numbers<[1], [0], [0], [1], [0, 0, 1, 1], [], []>} : vector<128x288xf32>, vector<288x64xf32>, vector<128x64xf32> -> vector<128x64xf32>
    %217 = arith.addf %214, %216 : vector<128x64xf32>
    %218 = vector.broadcast %24 : vector<1x64xf32> to vector<128x64xf32>
    %219 = arith.addf %217, %218 : vector<128x64xf32>
    %c0_66 = arith.constant 0 : index
    %c0_67 = arith.constant 0 : index
    %220 = vector.load %arg5[%c0_66, %c0_67] : memref<128x64xf32, #tpu.memory_space<vmem>>, vector<128x64xf32>
    tpu.vector_store %arg5[%c0_66, %c0_67], %219 {strides = array<i32>} : memref<128x64xf32, #tpu.memory_space<vmem>>, vector<128x64xf32>,
    return
  }
}

</mosaic_0001>

<llo_original>
// kernel: tpu_custom_call.1
$region0: #{tpu_custom_call.1}
  #allocation0 [shape = 'u32[]', space=smem, size = 0x4, offset = 0x4, fixed_abs, tag = 'smem constant byte address 0x4 - core index']
  #allocation1 [shape = 'u32[144,128]{1,0:T(1,128)}', space=vmem, size = 0x12000, scoped, tag = 'internal scratch']
  %s0 = inlined_call_operand.vmem [shape: f32[128,32], index: 0, kind: input, shape index: {}]
  %s1 = inlined_call_operand.vmem [shape: f32[2,32], index: 1, kind: input, shape index: {}]
  %s2 = inlined_call_operand.vmem [shape: f32[6,64], index: 2, kind: input, shape index: {}]
  %s3 = inlined_call_operand.vmem [shape: f32[320,64], index: 3, kind: input, shape index: {}]
  %s4 = inlined_call_operand.vmem [shape: f32[608,64], index: 4, kind: input, shape index: {}]
  %s5 = inlined_call_operand.vmem [shape: f32[128,64], index: 5, kind: output, shape index: {}]
  %s6 = sld [smem:[#allocation0]]
  $region30: #{tpu_custom_call.1} parent=0
    _
  %s8 = ssub.s32 1, %s6
  %s9 = scalar_select 0, %s8, %s6
  // Predicated region
  $region2: #{tpu_custom_call.1} parent=0 // pred_check
    _
  $region3: #{tpu_custom_call.1} parent=0 // pred_check_branch
    %11 = sbr.rel (0) target = $region5
  $region4: #{tpu_custom_call.1} parent=0 // pred_region
    _
  $region5: #{tpu_custom_call.1} parent=0 // pred_fallthru
    _
  // Predicated region
  $region6: #{tpu_custom_call.1} parent=0 // pred_check
    _
  $region7: #{tpu_custom_call.1} parent=0 // pred_check_branch
    %13 = sbr.rel (0) target = $region9
  $region8: #{tpu_custom_call.1} parent=0 // pred_region
    _
  $region9: #{tpu_custom_call.1} parent=0 // pred_fallthru
    _
  // Predicated region
  $region10: #{tpu_custom_call.1} parent=0 // pred_check
    _
  $region11: #{tpu_custom_call.1} parent=0 // pred_check_branch
    %15 = sbr.rel (0) target = $region13
  $region12: #{tpu_custom_call.1} parent=0 // pred_region
    _
  $region13: #{tpu_custom_call.1} parent=0 // pred_fallthru
    _
  // Predicated region
  $region14: #{tpu_custom_call.1} parent=0 // pred_check
    _
  $region15: #{tpu_custom_call.1} parent=0 // pred_check_branch
    %17 = sbr.rel (0) target = $region17
  $region16: #{tpu_custom_call.1} parent=0 // pred_region
    _
  $region17: #{tpu_custom_call.1} parent=0 // pred_fallthru
    _
  // Predicated region
  $region18: #{tpu_custom_call.1} parent=0 // pred_check
    _
  $region19: #{tpu_custom_call.1} parent=0 // pred_check_branch
    %19 = sbr.rel (0) target = $region21
  $region20: #{tpu_custom_call.1} parent=0 // pred_region
    _
  $region21: #{tpu_custom_call.1} parent=0 // pred_fallthru
    _
  %v20 = vld [vmem:[%s0] sm:$0xff]
  %v21 = vld [vmem:[%s0 + $0x8] sm:$0xff]
  %v22 = vld [vmem:[%s0 + $0x10] sm:$0xff]
  %v23 = vld [vmem:[%s0 + $0x18] sm:$0xff]
  %v24 = vld [vmem:[%s0 + $0x20] sm:$0xff]
  %v25 = vld [vmem:[%s0 + $0x28] sm:$0xff]
  %v26 = vld [vmem:[%s0 + $0x30] sm:$0xff]
  %v27 = vld [vmem:[%s0 + $0x38] sm:$0xff]
  %v28 = vld [vmem:[%s0 + $0x40] sm:$0xff]
  %v29 = vld [vmem:[%s0 + $0x48] sm:$0xff]
  %v30 = vld [vmem:[%s0 + $0x50] sm:$0xff]
  %v31 = vld [vmem:[%s0 + $0x58] sm:$0xff]
  %v32 = vld [vmem:[%s0 + $0x60] sm:$0xff]
  %v33 = vld [vmem:[%s0 + $0x68] sm:$0xff]
  %v34 = vld [vmem:[%s0 + $0x70] sm:$0xff]
  %v35 = vld [vmem:[%s0 + $0x78] sm:$0xff]
  %v36 = vlaneseq
  %v37 = vshrl.u32 %v36, 7
  %v38 = vadd.s32 %v37, 8
  %v39 = vadd.s32 %v37, 16
  %v40 = vadd.s32 %v37, 24
  %v41 = vadd.s32 %v37, 32
  %v42 = vadd.s32 %v37, 40
  %v43 = vadd.s32 %v37, 48
  %v44 = vadd.s32 %v37, 56
  %v45 = vadd.s32 %v37, 64
  %v46 = vadd.s32 %v37, 72
  %v47 = vadd.s32 %v37, 80
  %v48 = vadd.s32 %v37, 88
  %v49 = vadd.s32 %v37, 96
  %v50 = vadd.s32 %v37, 104
  %v51 = vadd.s32 %v37, 112
  %v52 = vadd.s32 %v37, 120
  %v53 = vand.u32 %v37, 63
  %v54 = vand.u32 %v38, 63
  %v55 = vand.u32 %v39, 63
  %v56 = vand.u32 %v40, 63
  %v57 = vand.u32 %v41, 63
  %v58 = vand.u32 %v42, 63
  %v59 = vand.u32 %v43, 63
  %v60 = vand.u32 %v44, 63
  %v61 = vand.u32 %v45, 63
  %v62 = vand.u32 %v46, 63
  %v63 = vand.u32 %v47, 63
  %v64 = vand.u32 %v48, 63
  %v65 = vand.u32 %v49, 63
  %v66 = vand.u32 %v50, 63
  %v67 = vand.u32 %v51, 63
  %v68 = vand.u32 %v52, 63
  %v69 = vand.u32 %v37, 7
  %v70 = vand.u32 %v38, 7
  %v71 = vand.u32 %v39, 7
  %v72 = vand.u32 %v40, 7
  %v73 = vand.u32 %v41, 7
  %v74 = vand.u32 %v42, 7
  %v75 = vand.u32 %v43, 7
  %v76 = vand.u32 %v44, 7
  %v77 = vand.u32 %v45, 7
  %v78 = vand.u32 %v46, 7
  %v79 = vand.u32 %v47, 7
  %v80 = vand.u32 %v48, 7
  %v81 = vand.u32 %v49, 7
  %v82 = vand.u32 %v50, 7
  %v83 = vand.u32 %v51, 7
  %v84 = vand.u32 %v52, 7
  %vm85 = vcmp.ge.s32.totalorder %v53, 8
  %vm86 = vcmp.ge.s32.totalorder %v54, 8
  %vm87 = vcmp.ge.s32.totalorder %v55, 8
  %vm88 = vcmp.ge.s32.totalorder %v56, 8
  %vm89 = vcmp.ge.s32.totalorder %v57, 8
  %vm90 = vcmp.ge.s32.totalorder %v58, 8
  %vm91 = vcmp.ge.s32.totalorder %v59, 8
  %vm92 = vcmp.ge.s32.totalorder %v60, 8
  %vm93 = vcmp.ge.s32.totalorder %v61, 8
  %vm94 = vcmp.ge.s32.totalorder %v62, 8
  %vm95 = vcmp.ge.s32.totalorder %v63, 8
  %vm96 = vcmp.ge.s32.totalorder %v64, 8
  %vm97 = vcmp.ge.s32.totalorder %v65, 8
  %vm98 = vcmp.ge.s32.totalorder %v66, 8
  %vm99 = vcmp.ge.s32.totalorder %v67, 8
  %vm100 = vcmp.ge.s32.totalorder %v68, 8
  %vm101 = vcmp.lt.s32.totalorder %v53, 56
  %vm102 = vcmp.lt.s32.totalorder %v54, 56
  %vm103 = vcmp.lt.s32.totalorder %v55, 56
  %vm104 = vcmp.lt.s32.totalorder %v56, 56
  %vm105 = vcmp.lt.s32.totalorder %v57, 56
  %vm106 = vcmp.lt.s32.totalorder %v58, 56
  %vm107 = vcmp.lt.s32.totalorder %v59, 56
  %vm108 = vcmp.lt.s32.totalorder %v60, 56
  %vm109 = vcmp.lt.s32.totalorder %v61, 56
  %vm110 = vcmp.lt.s32.totalorder %v62, 56
  %vm111 = vcmp.lt.s32.totalorder %v63, 56
  %vm112 = vcmp.lt.s32.totalorder %v64, 56
  %vm113 = vcmp.lt.s32.totalorder %v65, 56
  %vm114 = vcmp.lt.s32.totalorder %v66, 56
  %vm115 = vcmp.lt.s32.totalorder %v67, 56
  %vm116 = vcmp.lt.s32.totalorder %v68, 56
  %vm117 = vcmp.ge.s32.totalorder %v69, 1
  %vm118 = vcmp.ge.s32.totalorder %v70, 1
  %vm119 = vcmp.ge.s32.totalorder %v71, 1
  %vm120 = vcmp.ge.s32.totalorder %v72, 1
  %vm121 = vcmp.ge.s32.totalorder %v73, 1
  %vm122 = vcmp.ge.s32.totalorder %v74, 1
  %vm123 = vcmp.ge.s32.totalorder %v75, 1
  %vm124 = vcmp.ge.s32.totalorder %v76, 1
  %vm125 = vcmp.ge.s32.totalorder %v77, 1
  %vm126 = vcmp.ge.s32.totalorder %v78, 1
  %vm127 = vcmp.ge.s32.totalorder %v79, 1
  %vm128 = vcmp.ge.s32.totalorder %v80, 1
  %vm129 = vcmp.ge.s32.totalorder %v81, 1
  %vm130 = vcmp.ge.s32.totalorder %v82, 1
  %vm131 = vcmp.ge.s32.totalorder %v83, 1
  %vm132 = vcmp.ge.s32.totalorder %v84, 1
  %vm133 = vcmp.le.s32.totalorder %v69, 6
  %vm134 = vcmp.le.s32.totalorder %v70, 6
  %vm135 = vcmp.le.s32.totalorder %v71, 6
  %vm136 = vcmp.le.s32.totalorder %v72, 6
  %vm137 = vcmp.le.s32.totalorder %v73, 6
  %vm138 = vcmp.le.s32.totalorder %v74, 6
  %vm139 = vcmp.le.s32.totalorder %v75, 6
  %vm140 = vcmp.le.s32.totalorder %v76, 6
  %vm141 = vcmp.le.s32.totalorder %v77, 6
  %vm142 = vcmp.le.s32.totalorder %v78, 6
  %vm143 = vcmp.le.s32.totalorder %v79, 6
  %vm144 = vcmp.le.s32.totalorder %v80, 6
  %vm145 = vcmp.le.s32.totalorder %v81, 6
  %vm146 = vcmp.le.s32.totalorder %v82, 6
  %vm147 = vcmp.le.s32.totalorder %v83, 6
  %vm148 = vcmp.le.s32.totalorder %v84, 6
  %vm149 = vmand %vm85, %vm117
  %vm150 = vmand %vm86, %vm118
  %vm151 = vmand %vm87, %vm119
  %vm152 = vmand %vm88, %vm120
  %vm153 = vmand %vm89, %vm121
  %vm154 = vmand %vm90, %vm122
  %vm155 = vmand %vm91, %vm123
  %vm156 = vmand %vm92, %vm124
  %vm157 = vmand %vm93, %vm125
  %vm158 = vmand %vm94, %vm126
  %vm159 = vmand %vm95, %vm127
  %vm160 = vmand %vm96, %vm128
  %vm161 = vmand %vm97, %vm129
  %vm162 = vmand %vm98, %vm130
  %vm163 = vmand %vm99, %vm131
  %vm164 = vmand %vm100, %vm132
  %vm165 = vmand %vm85, %vm133
  %vm166 = vmand %vm86, %vm134
  %vm167 = vmand %vm87, %vm135
  %vm168 = vmand %vm88, %vm136
  %vm169 = vmand %vm89, %vm137
  %vm170 = vmand %vm90, %vm138
  %vm171 = vmand %vm91, %vm139
  %vm172 = vmand %vm92, %vm140
  %vm173 = vmand %vm93, %vm141
  %vm174 = vmand %vm94, %vm142
  %vm175 = vmand %vm95, %vm143
  %vm176 = vmand %vm96, %vm144
  %vm177 = vmand %vm97, %vm145
  %vm178 = vmand %vm98, %vm146
  %vm179 = vmand %vm99, %vm147
  %vm180 = vmand %vm100, %vm148
  %vm181 = vmand %vm101, %vm117
  %vm182 = vmand %vm102, %vm118
  %vm183 = vmand %vm103, %vm119
  %vm184 = vmand %vm104, %vm120
  %vm185 = vmand %vm105, %vm121
  %vm186 = vmand %vm106, %vm122
  %vm187 = vmand %vm107, %vm123
  %vm188 = vmand %vm108, %vm124
  %vm189 = vmand %vm109, %vm125
  %vm190 = vmand %vm110, %vm126
  %vm191 = vmand %vm111, %vm127
  %vm192 = vmand %vm112, %vm128
  %vm193 = vmand %vm113, %vm129
  %vm194 = vmand %vm114, %vm130
  %vm195 = vmand %vm115, %vm131
  %vm196 = vmand %vm116, %vm132
  %vm197 = vmand %vm101, %vm133
  %vm198 = vmand %vm102, %vm134
  %vm199 = vmand %vm103, %vm135
  %vm200 = vmand %vm104, %vm136
  %vm201 = vmand %vm105, %vm137
  %vm202 = vmand %vm106, %vm138
  %vm203 = vmand %vm107, %vm139
  %vm204 = vmand %vm108, %vm140
  %vm205 = vmand %vm109, %vm141
  %vm206 = vmand %vm110, %vm142
  %vm207 = vmand %vm111, %vm143
  %vm208 = vmand %vm112, %vm144
  %vm209 = vmand %vm113, %vm145
  %vm210 = vmand %vm114, %vm146
  %vm211 = vmand %vm115, %vm147
  %vm212 = vmand %vm116, %vm148
  %v213 = vld [vmem:[%s2] sm:$0x3f]
  %vm214 = vcmask 261120
  %v215 = vsel %vm214, %v20, 0.0
  %v216 = vsel %vm214, %v21, 0.0
  %v217 = vadd.f32 %v215, %v216
  %v218 = vsel %vm214, %v22, 0.0
  %v219 = vadd.f32 %v217, %v218
  %v220 = vsel %vm214, %v23, 0.0
  %v221 = vadd.f32 %v219, %v220
  %v222 = vsel %vm214, %v24, 0.0
  %v223 = vadd.f32 %v221, %v222
  %v224 = vsel %vm214, %v25, 0.0
  %v225 = vadd.f32 %v223, %v224
  %v226 = vsel %vm214, %v26, 0.0
  %v227 = vadd.f32 %v225, %v226
  %v228 = vsel %vm214, %v27, 0.0
  %v229 = vadd.f32 %v227, %v228
  %v230 = vrot.slane %v229, 4
  %v231 = vadd.f32 %v229, %v230
  %v232 = vrot.slane %v231, 2
  %v233 = vadd.f32 %v231, %v232
  %v234 = vrot.slane %v233, 1
  %v235 = vadd.f32 %v233, %v234
  %v236 = vsel %vm214, %v28, 0.0
  %v237 = vsel %vm214, %v29, 0.0
  %v238 = vadd.f32 %v236, %v237
  %v239 = vsel %vm214, %v30, 0.0
  %v240 = vadd.f32 %v238, %v239
  %v241 = vsel %vm214, %v31, 0.0
  %v242 = vadd.f32 %v240, %v241
  %v243 = vsel %vm214, %v32, 0.0
  %v244 = vadd.f32 %v242, %v243
  %v245 = vsel %vm214, %v33, 0.0
  %v246 = vadd.f32 %v244, %v245
  %v247 = vsel %vm214, %v34, 0.0
  %v248 = vadd.f32 %v246, %v247
  %v249 = vsel %vm214, %v35, 0.0
  %v250 = vadd.f32 %v248, %v249
  %v251 = vrot.slane %v250, 4
  %v252 = vadd.f32 %v250, %v251
  %v253 = vrot.slane %v252, 2
  %v254 = vadd.f32 %v252, %v253
  %v255 = vrot.slane %v254, 1
  %v256 = vadd.f32 %v254, %v255
  %v257 = vmul.f32 %v235, 0.015625
  %v258 = vmul.f32 %v256, 0.015625
  %v259 = vmul.f32 %v20, %v20
  %v260 = vmul.f32 %v21, %v21
  %v261 = vmul.f32 %v22, %v22
  %v262 = vmul.f32 %v23, %v23
  %v263 = vmul.f32 %v24, %v24
  %v264 = vmul.f32 %v25, %v25
  %v265 = vmul.f32 %v26, %v26
  %v266 = vmul.f32 %v27, %v27
  %v267 = vmul.f32 %v28, %v28
  %v268 = vmul.f32 %v29, %v29
  %v269 = vmul.f32 %v30, %v30
  %v270 = vmul.f32 %v31, %v31
  %v271 = vmul.f32 %v32, %v32
  %v272 = vmul.f32 %v33, %v33
  %v273 = vmul.f32 %v34, %v34
  %v274 = vmul.f32 %v35, %v35
  %v275 = vsel %vm214, %v259, 0.0
  %v276 = vsel %vm214, %v260, 0.0
  %v277 = vadd.f32 %v275, %v276
  %v278 = vsel %vm214, %v261, 0.0
  %v279 = vadd.f32 %v277, %v278
  %v280 = vsel %vm214, %v262, 0.0
  %v281 = vadd.f32 %v279, %v280
  %v282 = vsel %vm214, %v263, 0.0
  %v283 = vadd.f32 %v281, %v282
  %v284 = vsel %vm214, %v264, 0.0
  %v285 = vadd.f32 %v283, %v284
  %v286 = vsel %vm214, %v265, 0.0
  %v287 = vadd.f32 %v285, %v286
  %v288 = vsel %vm214, %v266, 0.0
  %v289 = vadd.f32 %v287, %v288
  %v290 = vrot.slane %v289, 4
  %v291 = vadd.f32 %v289, %v290
  %v292 = vrot.slane %v291, 2
  %v293 = vadd.f32 %v291, %v292
  %v294 = vrot.slane %v293, 1
  %v295 = vadd.f32 %v293, %v294
  %v296 = vsel %vm214, %v267, 0.0
  %v297 = vsel %vm214, %v268, 0.0
  %v298 = vadd.f32 %v296, %v297
  %v299 = vsel %vm214, %v269, 0.0
  %v300 = vadd.f32 %v298, %v299
  %v301 = vsel %vm214, %v270, 0.0
  %v302 = vadd.f32 %v300, %v301
  %v303 = vsel %vm214, %v271, 0.0
  %v304 = vadd.f32 %v302, %v303
  %v305 = vsel %vm214, %v272, 0.0
  %v306 = vadd.f32 %v304, %v305
  %v307 = vsel %vm214, %v273, 0.0
  %v308 = vadd.f32 %v306, %v307
  %v309 = vsel %vm214, %v274, 0.0
  %v310 = vadd.f32 %v308, %v309
  %v311 = vrot.slane %v310, 4
  %v312 = vadd.f32 %v310, %v311
  %v313 = vrot.slane %v312, 2
  %v314 = vadd.f32 %v312, %v313
  %v315 = vrot.slane %v314, 1
  %v316 = vadd.f32 %v314, %v315
  %v317 = vmul.f32 %v295, 0.015625
  %v318 = vmul.f32 %v316, 0.015625
  %v319 = vmul.f32 %v257, %v257
  %v320 = vmul.f32 %v258, %v258
  %v321 = vsub.f32 %v317, %v319
  %v322 = vsub.f32 %v318, %v320
  %v323 = vmax.f32 %v321, 0.0
  %v324 = vmax.f32 %v322, 0.0
  %v325 = vadd.f32 %v323, 1e-06
  %v326 = vadd.f32 %v324, 1e-06
  %v327 = vrsqrt.pop %v325
  %v328 = vrsqrt.pop %v326
  %v329 = vlaneseq
  %v330 = vshrl.u32 %v329, 7
  %v331 = vsub.s32 0, %v330
  %v332 = vrot.slane %v213, %v331
  %v333 = vmul.f32 %v327, %v332
  %v334 = vmul.f32 %v328, %v332
  %v335 = vmul.f32 %v257, %v333
  %v336 = vmul.f32 %v258, %v334
  %v337 = vlaneseq
  %v338 = vshrl.u32 %v337, 7
  %v339 = vsub.s32 1, %v338
  %v340 = vrot.slane %v213, %v339
  %v343 = vrot.slane %v336, 7
  %vm344 = vcmask 1041409
  %v345 = vsel %vm344, %v343, %v335
  %v347 = vsub.f32 %v340, %v345
  %v348 = vlaneseq
  %v349 = vshrl.u32 %v348, 7
  %v350 = vsub.s32 0, %v349
  %v351 = vrot.slane %v333, %v350
  %v352 = vlaneseq
  %v353 = vshrl.u32 %v352, 7
  %v354 = vsub.s32 0, %v353
  %v355 = vrot.slane %v334, %v354
  %v356 = vmul.f32 %v20, %v351
  %v357 = vmul.f32 %v21, %v351
  %v358 = vmul.f32 %v22, %v351
  %v359 = vmul.f32 %v23, %v351
  %v360 = vmul.f32 %v24, %v351
  %v361 = vmul.f32 %v25, %v351
  %v362 = vmul.f32 %v26, %v351
  %v363 = vmul.f32 %v27, %v351
  %v364 = vmul.f32 %v28, %v355
  %v365 = vmul.f32 %v29, %v355
  %v366 = vmul.f32 %v30, %v355
  %v367 = vmul.f32 %v31, %v355
  %v368 = vmul.f32 %v32, %v355
  %v369 = vmul.f32 %v33, %v355
  %v370 = vmul.f32 %v34, %v355
  %v371 = vmul.f32 %v35, %v355
  %v374 = vunpack.c.l.s4 1966171168
  %v375 = vunpack.c.0.s8 %v374
  %v376 = vlaneseq
  %v377 = vshrl.u32 %v376, 7
  %v378 = vsub.s32 %v375, %v377
  %v379 = vrot.slane %v347, %v378
  %v380 = vcombine.high %v379, %v379
  %v382 = vunpack.c.l.s4 1966171168
  %v383 = vunpack.c.0.s8 %v382
  %v384 = vlaneseq
  %v385 = vshrl.u32 %v384, 7
  %v386 = vsub.s32 %v383, %v385
  %v387 = vrot.slane %v379, %v386
  %v389 = vunpack.c.l.s4 1966171168
  %v390 = vunpack.c.0.s8 %v389
  %v391 = vlaneseq
  %v392 = vshrl.u32 %v391, 7
  %v393 = vsub.s32 %v390, %v392
  %v394 = vrot.slane %v380, %v393
  %v395 = vlaneseq
  %v396 = vshrl.u32 %v395, 7
  %v397 = vsub.s32 0, %v396
  %v398 = vrot.slane %v387, %v397
  %v399 = vlaneseq
  %v400 = vshrl.u32 %v399, 7
  %v401 = vsub.s32 0, %v400
  %v402 = vrot.slane %v394, %v401
  %v405 = vadd.f32 %v356, %v398
  %v406 = vadd.f32 %v357, %v398
  %v407 = vadd.f32 %v358, %v398
  %v408 = vadd.f32 %v359, %v398
  %v409 = vadd.f32 %v360, %v398
  %v410 = vadd.f32 %v361, %v398
  %v411 = vadd.f32 %v362, %v398
  %v412 = vadd.f32 %v363, %v398
  %v413 = vadd.f32 %v364, %v402
  %v414 = vadd.f32 %v365, %v402
  %v415 = vadd.f32 %v366, %v402
  %v416 = vadd.f32 %v367, %v402
  %v417 = vadd.f32 %v368, %v402
  %v418 = vadd.f32 %v369, %v402
  %v419 = vadd.f32 %v370, %v402
  %v420 = vadd.f32 %v371, %v402
  %v421 = vmul.f32 %v405, 0.5
  %v422 = vmul.f32 %v406, 0.5
  %v423 = vmul.f32 %v407, 0.5
  %v424 = vmul.f32 %v408, 0.5
  %v425 = vmul.f32 %v409, 0.5
  %v426 = vmul.f32 %v410, 0.5
  %v427 = vmul.f32 %v411, 0.5
  %v428 = vmul.f32 %v412, 0.5
  %v429 = vmul.f32 %v413, 0.5
  %v430 = vmul.f32 %v414, 0.5
  %v431 = vmul.f32 %v415, 0.5
  %v432 = vmul.f32 %v416, 0.5
  %v433 = vmul.f32 %v417, 0.5
  %v434 = vmul.f32 %v418, 0.5
  %v435 = vmul.f32 %v419, 0.5
  %v436 = vmul.f32 %v420, 0.5
  %v437 = vtanh.pop %v421
  %v438 = vtanh.pop %v422
  %v439 = vtanh.pop %v423
  %v440 = vtanh.pop %v424
  %v441 = vtanh.pop %v425
  %v442 = vtanh.pop %v426
  %v443 = vtanh.pop %v427
  %v444 = vtanh.pop %v428
  %v445 = vtanh.pop %v429
  %v446 = vtanh.pop %v430
  %v447 = vtanh.pop %v431
  %v448 = vtanh.pop %v432
  %v449 = vtanh.pop %v433
  %v450 = vtanh.pop %v434
  %v451 = vtanh.pop %v435
  %v452 = vtanh.pop %v436
  %v453 = vmul.f32 %v437, 0.5
  %v454 = vmul.f32 %v438, 0.5
  %v455 = vmul.f32 %v439, 0.5
  %v456 = vmul.f32 %v440, 0.5
  %v457 = vmul.f32 %v441, 0.5
  %v458 = vmul.f32 %v442, 0.5
  %v459 = vmul.f32 %v443, 0.5
  %v460 = vmul.f32 %v444, 0.5
  %v461 = vmul.f32 %v445, 0.5
  %v462 = vmul.f32 %v446, 0.5
  %v463 = vmul.f32 %v447, 0.5
  %v464 = vmul.f32 %v448, 0.5
  %v465 = vmul.f32 %v449, 0.5
  %v466 = vmul.f32 %v450, 0.5
  %v467 = vmul.f32 %v451, 0.5
  %v468 = vmul.f32 %v452, 0.5
  %v469 = vadd.f32 %v453, 0.5
  %v470 = vadd.f32 %v454, 0.5
  %v471 = vadd.f32 %v455, 0.5
  %v472 = vadd.f32 %v456, 0.5
  %v473 = vadd.f32 %v457, 0.5
  %v474 = vadd.f32 %v458, 0.5
  %v475 = vadd.f32 %v459, 0.5
  %v476 = vadd.f32 %v460, 0.5
  %v477 = vadd.f32 %v461, 0.5
  %v478 = vadd.f32 %v462, 0.5
  %v479 = vadd.f32 %v463, 0.5
  %v480 = vadd.f32 %v464, 0.5
  %v481 = vadd.f32 %v465, 0.5
  %v482 = vadd.f32 %v466, 0.5
  %v483 = vadd.f32 %v467, 0.5
  %v484 = vadd.f32 %v468, 0.5
  %v485 = vmul.f32 %v405, %v469
  %v486 = vmul.f32 %v406, %v470
  %v487 = vmul.f32 %v407, %v471
  %v488 = vmul.f32 %v408, %v472
  %v489 = vmul.f32 %v409, %v473
  %v490 = vmul.f32 %v410, %v474
  %v491 = vmul.f32 %v411, %v475
  %v492 = vmul.f32 %v412, %v476
  %v493 = vmul.f32 %v413, %v477
  %v494 = vmul.f32 %v414, %v478
  %v495 = vmul.f32 %v415, %v479
  %v496 = vmul.f32 %v416, %v480
  %v497 = vmul.f32 %v417, %v481
  %v498 = vmul.f32 %v418, %v482
  %v499 = vmul.f32 %v419, %v483
  %v500 = vmul.f32 %v420, %v484
  %v501 = vld [vmem:[%s1] sm:$0x3]
  %v502 = vmul.f32 %v501, 0.5
  %v503 = vtanh.pop %v502
  %v504 = vmul.f32 %v503, 0.5
  %v505 = vadd.f32 %v504, 0.5
  %v506 = vmul.f32 %v501, %v505
  %v509 = vunpack.c.l.s4 1966171168
  %v510 = vunpack.c.0.s8 %v509
  %v511 = vlaneseq
  %v512 = vshrl.u32 %v511, 7
  %v513 = vsub.s32 %v510, %v512
  %v514 = vrot.slane %v506, %v513
  %v515 = vcombine.high %v514, %v514
  %v517 = vunpack.c.l.s4 1966171168
  %v518 = vunpack.c.0.s8 %v517
  %v519 = vlaneseq
  %v520 = vshrl.u32 %v519, 7
  %v521 = vsub.s32 %v518, %v520
  %v522 = vrot.slane %v514, %v521
  %v524 = vunpack.c.l.s4 1966171168
  %v525 = vunpack.c.0.s8 %v524
  %v526 = vlaneseq
  %v527 = vshrl.u32 %v526, 7
  %v528 = vsub.s32 %v525, %v527
  %v529 = vrot.slane %v515, %v528
  %v530 = vlaneseq
  %v531 = vshrl.u32 %v530, 7
  %v532 = vsub.s32 0, %v531
  %v533 = vrot.slane %v522, %v532
  %v534 = vlaneseq
  %v535 = vshrl.u32 %v534, 7
  %v536 = vsub.s32 0, %v535
  %v537 = vrot.slane %v529, %v536
  %v538 = vrot.slane %v485, 7
  %v539 = vrot.slane %v486, 7
  %v540 = vrot.slane %v487, 7
  %v541 = vrot.slane %v488, 7
  %v542 = vrot.slane %v489, 7
  %v543 = vrot.slane %v490, 7
  %v544 = vrot.slane %v491, 7
  %v545 = vrot.slane %v492, 7
  %v546 = vrot.slane %v493, 7
  %v547 = vrot.slane %v494, 7
  %v548 = vrot.slane %v495, 7
  %v549 = vrot.slane %v496, 7
  %v550 = vrot.slane %v497, 7
  %v551 = vrot.slane %v498, 7
  %v552 = vrot.slane %v499, 7
  %v553 = vrot.slane %v500, 7
  %vm554 = vcmp.lt.s32.totalorder %v37, 1
  %v555 = vsel %vm554, %v552, %v553
  %v556 = vsel %vm554, %v551, %v552
  %v557 = vsel %vm554, %v550, %v551
  %v558 = vsel %vm554, %v549, %v550
  %v559 = vsel %vm554, %v548, %v549
  %v560 = vsel %vm554, %v547, %v548
  %v561 = vsel %vm554, %v546, %v547
  %v562 = vsel %vm554, %v545, %v546
  %v563 = vsel %vm554, %v544, %v545
  %v564 = vsel %vm554, %v543, %v544
  %v565 = vsel %vm554, %v542, %v543
  %v566 = vsel %vm554, %v541, %v542
  %v567 = vsel %vm554, %v540, %v541
  %v568 = vsel %vm554, %v539, %v540
  %v569 = vsel %vm554, %v538, %v539
  %v570 = vsel %vm554, %v553, %v538
  %v571 = vsel %vm149, 1, 0
  %v572 = vsel %vm150, 1, 0
  %v573 = vsel %vm151, 1, 0
  %v574 = vsel %vm152, 1, 0
  %v575 = vsel %vm153, 1, 0
  %v576 = vsel %vm154, 1, 0
  %v577 = vsel %vm155, 1, 0
  %v578 = vsel %vm156, 1, 0
  %v579 = vsel %vm157, 1, 0
  %v580 = vsel %vm158, 1, 0
  %v581 = vsel %vm159, 1, 0
  %v582 = vsel %vm160, 1, 0
  %v583 = vsel %vm161, 1, 0
  %v584 = vsel %vm162, 1, 0
  %v585 = vsel %vm163, 1, 0
  %v586 = vsel %vm164, 1, 0
  %vm587 = vcmp.eq.s32.totalorder %v571, 1
  %vm588 = vcmp.eq.s32.totalorder %v572, 1
  %vm589 = vcmp.eq.s32.totalorder %v573, 1
  %vm590 = vcmp.eq.s32.totalorder %v574, 1
  %vm591 = vcmp.eq.s32.totalorder %v575, 1
  %vm592 = vcmp.eq.s32.totalorder %v576, 1
  %vm593 = vcmp.eq.s32.totalorder %v577, 1
  %vm594 = vcmp.eq.s32.totalorder %v578, 1
  %vm595 = vcmp.eq.s32.totalorder %v579, 1
  %vm596 = vcmp.eq.s32.totalorder %v580, 1
  %vm597 = vcmp.eq.s32.totalorder %v581, 1
  %vm598 = vcmp.eq.s32.totalorder %v582, 1
  %vm599 = vcmp.eq.s32.totalorder %v583, 1
  %vm600 = vcmp.eq.s32.totalorder %v584, 1
  %vm601 = vcmp.eq.s32.totalorder %v585, 1
  %vm602 = vcmp.eq.s32.totalorder %v586, 1
  %v603 = vsel %vm587, %v555, 0.0
  %v604 = vsel %vm588, %v570, 0.0
  %v605 = vsel %vm589, %v569, 0.0
  %v606 = vsel %vm590, %v568, 0.0
  %v607 = vsel %vm591, %v567, 0.0
  %v608 = vsel %vm592, %v566, 0.0
  %v609 = vsel %vm593, %v565, 0.0
  %v610 = vsel %vm594, %v564, 0.0
  %v611 = vsel %vm595, %v563, 0.0
  %v612 = vsel %vm596, %v562, 0.0
  %v613 = vsel %vm597, %v561, 0.0
  %v614 = vsel %vm598, %v560, 0.0
  %v615 = vsel %vm599, %v559, 0.0
  %v616 = vsel %vm600, %v558, 0.0
  %v617 = vsel %vm601, %v557, 0.0
  %v618 = vsel %vm602, %v556, 0.0
  %v619 = vsel %vm85, 1, 0
  %v620 = vsel %vm86, 1, 0
  %v621 = vsel %vm87, 1, 0
  %v622 = vsel %vm88, 1, 0
  %v623 = vsel %vm89, 1, 0
  %v624 = vsel %vm90, 1, 0
  %v625 = vsel %vm91, 1, 0
  %v626 = vsel %vm92, 1, 0
  %v627 = vsel %vm93, 1, 0
  %v628 = vsel %vm94, 1, 0
  %v629 = vsel %vm95, 1, 0
  %v630 = vsel %vm96, 1, 0
  %v631 = vsel %vm97, 1, 0
  %v632 = vsel %vm98, 1, 0
  %v633 = vsel %vm99, 1, 0
  %v634 = vsel %vm100, 1, 0
  %vm635 = vcmp.eq.s32.totalorder %v619, 1
  %vm636 = vcmp.eq.s32.totalorder %v620, 1
  %vm637 = vcmp.eq.s32.totalorder %v621, 1
  %vm638 = vcmp.eq.s32.totalorder %v622, 1
  %vm639 = vcmp.eq.s32.totalorder %v623, 1
  %vm640 = vcmp.eq.s32.totalorder %v624, 1
  %vm641 = vcmp.eq.s32.totalorder %v625, 1
  %vm642 = vcmp.eq.s32.totalorder %v626, 1
  %vm643 = vcmp.eq.s32.totalorder %v627, 1
  %vm644 = vcmp.eq.s32.totalorder %v628, 1
  %vm645 = vcmp.eq.s32.totalorder %v629, 1
  %vm646 = vcmp.eq.s32.totalorder %v630, 1
  %vm647 = vcmp.eq.s32.totalorder %v631, 1
  %vm648 = vcmp.eq.s32.totalorder %v632, 1
  %vm649 = vcmp.eq.s32.totalorder %v633, 1
  %vm650 = vcmp.eq.s32.totalorder %v634, 1
  %v651 = vsel %vm635, %v500, 0.0
  %v652 = vsel %vm636, %v485, 0.0
  %v653 = vsel %vm637, %v486, 0.0
  %v654 = vsel %vm638, %v487, 0.0
  %v655 = vsel %vm639, %v488, 0.0
  %v656 = vsel %vm640, %v489, 0.0
  %v657 = vsel %vm641, %v490, 0.0
  %v658 = vsel %vm642, %v491, 0.0
  %v659 = vsel %vm643, %v492, 0.0
  %v660 = vsel %vm644, %v493, 0.0
  %v661 = vsel %vm645, %v494, 0.0
  %v662 = vsel %vm646, %v495, 0.0
  %v663 = vsel %vm647, %v496, 0.0
  %v664 = vsel %vm648, %v497, 0.0
  %v665 = vsel %vm649, %v498, 0.0
  %v666 = vsel %vm650, %v499, 0.0
  %v667 = vrot.slane %v485, 1
  %v668 = vrot.slane %v486, 1
  %v669 = vrot.slane %v487, 1
  %v670 = vrot.slane %v488, 1
  %v671 = vrot.slane %v489, 1
  %v672 = vrot.slane %v490, 1
  %v673 = vrot.slane %v491, 1
  %v674 = vrot.slane %v492, 1
  %v675 = vrot.slane %v493, 1
  %v676 = vrot.slane %v494, 1
  %v677 = vrot.slane %v495, 1
  %v678 = vrot.slane %v496, 1
  %v679 = vrot.slane %v497, 1
  %v680 = vrot.slane %v498, 1
  %v681 = vrot.slane %v499, 1
  %v682 = vrot.slane %v500, 1
  %vm683 = vcmp.lt.s32.totalorder %v37, 7
  %v684 = vsel %vm683, %v681, %v682
  %v685 = vsel %vm683, %v680, %v681
  %v686 = vsel %vm683, %v679, %v680
  %v687 = vsel %vm683, %v678, %v679
  %v688 = vsel %vm683, %v677, %v678
  %v689 = vsel %vm683, %v676, %v677
  %v690 = vsel %vm683, %v675, %v676
  %v691 = vsel %vm683, %v674, %v675
  %v692 = vsel %vm683, %v673, %v674
  %v693 = vsel %vm683, %v672, %v673
  %v694 = vsel %vm683, %v671, %v672
  %v695 = vsel %vm683, %v670, %v671
  %v696 = vsel %vm683, %v669, %v670
  %v697 = vsel %vm683, %v668, %v669
  %v698 = vsel %vm683, %v667, %v668
  %v699 = vsel %vm683, %v682, %v667
  %v700 = vsel %vm165, 1, 0
  %v701 = vsel %vm166, 1, 0
  %v702 = vsel %vm167, 1, 0
  %v703 = vsel %vm168, 1, 0
  %v704 = vsel %vm169, 1, 0
  %v705 = vsel %vm170, 1, 0
  %v706 = vsel %vm171, 1, 0
  %v707 = vsel %vm172, 1, 0
  %v708 = vsel %vm173, 1, 0
  %v709 = vsel %vm174, 1, 0
  %v710 = vsel %vm175, 1, 0
  %v711 = vsel %vm176, 1, 0
  %v712 = vsel %vm177, 1, 0
  %v713 = vsel %vm178, 1, 0
  %v714 = vsel %vm179, 1, 0
  %v715 = vsel %vm180, 1, 0
  %vm716 = vcmp.eq.s32.totalorder %v700, 1
  %vm717 = vcmp.eq.s32.totalorder %v701, 1
  %vm718 = vcmp.eq.s32.totalorder %v702, 1
  %vm719 = vcmp.eq.s32.totalorder %v703, 1
  %vm720 = vcmp.eq.s32.totalorder %v704, 1
  %vm721 = vcmp.eq.s32.totalorder %v705, 1
  %vm722 = vcmp.eq.s32.totalorder %v706, 1
  %vm723 = vcmp.eq.s32.totalorder %v707, 1
  %vm724 = vcmp.eq.s32.totalorder %v708, 1
  %vm725 = vcmp.eq.s32.totalorder %v709, 1
  %vm726 = vcmp.eq.s32.totalorder %v710, 1
  %vm727 = vcmp.eq.s32.totalorder %v711, 1
  %vm728 = vcmp.eq.s32.totalorder %v712, 1
  %vm729 = vcmp.eq.s32.totalorder %v713, 1
  %vm730 = vcmp.eq.s32.totalorder %v714, 1
  %vm731 = vcmp.eq.s32.totalorder %v715, 1
  %v732 = vsel %vm716, %v699, 0.0
  %v733 = vsel %vm717, %v698, 0.0
  %v734 = vsel %vm718, %v697, 0.0
  %v735 = vsel %vm719, %v696, 0.0
  %v736 = vsel %vm720, %v695, 0.0
  %v737 = vsel %vm721, %v694, 0.0
  %v738 = vsel %vm722, %v693, 0.0
  %v739 = vsel %vm723, %v692, 0.0
  %v740 = vsel %vm724, %v691, 0.0
  %v741 = vsel %vm725, %v690, 0.0
  %v742 = vsel %vm726, %v689, 0.0
  %v743 = vsel %vm727, %v688, 0.0
  %v744 = vsel %vm728, %v687, 0.0
  %v745 = vsel %vm729, %v686, 0.0
  %v746 = vsel %vm730, %v685, 0.0
  %v747 = vsel %vm731, %v684, 0.0
  %v748 = vsel %vm117, 1, 0
  %v749 = vsel %vm118, 1, 0
  %v750 = vsel %vm119, 1, 0
  %v751 = vsel %vm120, 1, 0
  %v752 = vsel %vm121, 1, 0
  %v753 = vsel %vm122, 1, 0
  %v754 = vsel %vm123, 1, 0
  %v755 = vsel %vm124, 1, 0
  %v756 = vsel %vm125, 1, 0
  %v757 = vsel %vm126, 1, 0
  %v758 = vsel %vm127, 1, 0
  %v759 = vsel %vm128, 1, 0
  %v760 = vsel %vm129, 1, 0
  %v761 = vsel %vm130, 1, 0
  %v762 = vsel %vm131, 1, 0
  %v763 = vsel %vm132, 1, 0
  %vm764 = vcmp.eq.s32.totalorder %v748, 1
  %vm765 = vcmp.eq.s32.totalorder %v749, 1
  %vm766 = vcmp.eq.s32.totalorder %v750, 1
  %vm767 = vcmp.eq.s32.totalorder %v751, 1
  %vm768 = vcmp.eq.s32.totalorder %v752, 1
  %vm769 = vcmp.eq.s32.totalorder %v753, 1
  %vm770 = vcmp.eq.s32.totalorder %v754, 1
  %vm771 = vcmp.eq.s32.totalorder %v755, 1
  %vm772 = vcmp.eq.s32.totalorder %v756, 1
  %vm773 = vcmp.eq.s32.totalorder %v757, 1
  %vm774 = vcmp.eq.s32.totalorder %v758, 1
  %vm775 = vcmp.eq.s32.totalorder %v759, 1
  %vm776 = vcmp.eq.s32.totalorder %v760, 1
  %vm777 = vcmp.eq.s32.totalorder %v761, 1
  %vm778 = vcmp.eq.s32.totalorder %v762, 1
  %vm779 = vcmp.eq.s32.totalorder %v763, 1
  %v780 = vsel %vm764, %v570, 0.0
  %v781 = vsel %vm765, %v569, 0.0
  %v782 = vsel %vm766, %v568, 0.0
  %v783 = vsel %vm767, %v567, 0.0
  %v784 = vsel %vm768, %v566, 0.0
  %v785 = vsel %vm769, %v565, 0.0
  %v786 = vsel %vm770, %v564, 0.0
  %v787 = vsel %vm771, %v563, 0.0
  %v788 = vsel %vm772, %v562, 0.0
  %v789 = vsel %vm773, %v561, 0.0
  %v790 = vsel %vm774, %v560, 0.0
  %v791 = vsel %vm775, %v559, 0.0
  %v792 = vsel %vm776, %v558, 0.0
  %v793 = vsel %vm777, %v557, 0.0
  %v794 = vsel %vm778, %v556, 0.0
  %v795 = vsel %vm779, %v555, 0.0
  %v796 = vsel %vm133, 1, 0
  %v797 = vsel %vm134, 1, 0
  %v798 = vsel %vm135, 1, 0
  %v799 = vsel %vm136, 1, 0
  %v800 = vsel %vm137, 1, 0
  %v801 = vsel %vm138, 1, 0
  %v802 = vsel %vm139, 1, 0
  %v803 = vsel %vm140, 1, 0
  %v804 = vsel %vm141, 1, 0
  %v805 = vsel %vm142, 1, 0
  %v806 = vsel %vm143, 1, 0
  %v807 = vsel %vm144, 1, 0
  %v808 = vsel %vm145, 1, 0
  %v809 = vsel %vm146, 1, 0
  %v810 = vsel %vm147, 1, 0
  %v811 = vsel %vm148, 1, 0
  %vm812 = vcmp.eq.s32.totalorder %v796, 1
  %vm813 = vcmp.eq.s32.totalorder %v797, 1
  %vm814 = vcmp.eq.s32.totalorder %v798, 1
  %vm815 = vcmp.eq.s32.totalorder %v799, 1
  %vm816 = vcmp.eq.s32.totalorder %v800, 1
  %vm817 = vcmp.eq.s32.totalorder %v801, 1
  %vm818 = vcmp.eq.s32.totalorder %v802, 1
  %vm819 = vcmp.eq.s32.totalorder %v803, 1
  %vm820 = vcmp.eq.s32.totalorder %v804, 1
  %vm821 = vcmp.eq.s32.totalorder %v805, 1
  %vm822 = vcmp.eq.s32.totalorder %v806, 1
  %vm823 = vcmp.eq.s32.totalorder %v807, 1
  %vm824 = vcmp.eq.s32.totalorder %v808, 1
  %vm825 = vcmp.eq.s32.totalorder %v809, 1
  %vm826 = vcmp.eq.s32.totalorder %v810, 1
  %vm827 = vcmp.eq.s32.totalorder %v811, 1
  %v828 = vsel %vm812, %v698, 0.0
  %v829 = vsel %vm813, %v697, 0.0
  %v830 = vsel %vm814, %v696, 0.0
  %v831 = vsel %vm815, %v695, 0.0
  %v832 = vsel %vm816, %v694, 0.0
  %v833 = vsel %vm817, %v693, 0.0
  %v834 = vsel %vm818, %v692, 0.0
  %v835 = vsel %vm819, %v691, 0.0
  %v836 = vsel %vm820, %v690, 0.0
  %v837 = vsel %vm821, %v689, 0.0
  %v838 = vsel %vm822, %v688, 0.0
  %v839 = vsel %vm823, %v687, 0.0
  %v840 = vsel %vm824, %v686, 0.0
  %v841 = vsel %vm825, %v685, 0.0
  %v842 = vsel %vm826, %v684, 0.0
  %v843 = vsel %vm827, %v699, 0.0
  %v844 = vsel %vm181, 1, 0
  %v845 = vsel %vm182, 1, 0
  %v846 = vsel %vm183, 1, 0
  %v847 = vsel %vm184, 1, 0
  %v848 = vsel %vm185, 1, 0
  %v849 = vsel %vm186, 1, 0
  %v850 = vsel %vm187, 1, 0
  %v851 = vsel %vm188, 1, 0
  %v852 = vsel %vm189, 1, 0
  %v853 = vsel %vm190, 1, 0
  %v854 = vsel %vm191, 1, 0
  %v855 = vsel %vm192, 1, 0
  %v856 = vsel %vm193, 1, 0
  %v857 = vsel %vm194, 1, 0
  %v858 = vsel %vm195, 1, 0
  %v859 = vsel %vm196, 1, 0
  %vm860 = vcmp.eq.s32.totalorder %v844, 1
  %vm861 = vcmp.eq.s32.totalorder %v845, 1
  %vm862 = vcmp.eq.s32.totalorder %v846, 1
  %vm863 = vcmp.eq.s32.totalorder %v847, 1
  %vm864 = vcmp.eq.s32.totalorder %v848, 1
  %vm865 = vcmp.eq.s32.totalorder %v849, 1
  %vm866 = vcmp.eq.s32.totalorder %v850, 1
  %vm867 = vcmp.eq.s32.totalorder %v851, 1
  %vm868 = vcmp.eq.s32.totalorder %v852, 1
  %vm869 = vcmp.eq.s32.totalorder %v853, 1
  %vm870 = vcmp.eq.s32.totalorder %v854, 1
  %vm871 = vcmp.eq.s32.totalorder %v855, 1
  %vm872 = vcmp.eq.s32.totalorder %v856, 1
  %vm873 = vcmp.eq.s32.totalorder %v857, 1
  %vm874 = vcmp.eq.s32.totalorder %v858, 1
  %vm875 = vcmp.eq.s32.totalorder %v859, 1
  %v876 = vsel %vm860, %v569, 0.0
  %v877 = vsel %vm861, %v568, 0.0
  %v878 = vsel %vm862, %v567, 0.0
  %v879 = vsel %vm863, %v566, 0.0
  %v880 = vsel %vm864, %v565, 0.0
  %v881 = vsel %vm865, %v564, 0.0
  %v882 = vsel %vm866, %v563, 0.0
  %v883 = vsel %vm867, %v562, 0.0
  %v884 = vsel %vm868, %v561, 0.0
  %v885 = vsel %vm869, %v560, 0.0
  %v886 = vsel %vm870, %v559, 0.0
  %v887 = vsel %vm871, %v558, 0.0
  %v888 = vsel %vm872, %v557, 0.0
  %v889 = vsel %vm873, %v556, 0.0
  %v890 = vsel %vm874, %v555, 0.0
  %v891 = vsel %vm875, %v570, 0.0
  %v892 = vsel %vm101, 1, 0
  %v893 = vsel %vm102, 1, 0
  %v894 = vsel %vm103, 1, 0
  %v895 = vsel %vm104, 1, 0
  %v896 = vsel %vm105, 1, 0
  %v897 = vsel %vm106, 1, 0
  %v898 = vsel %vm107, 1, 0
  %v899 = vsel %vm108, 1, 0
  %v900 = vsel %vm109, 1, 0
  %v901 = vsel %vm110, 1, 0
  %v902 = vsel %vm111, 1, 0
  %v903 = vsel %vm112, 1, 0
  %v904 = vsel %vm113, 1, 0
  %v905 = vsel %vm114, 1, 0
  %v906 = vsel %vm115, 1, 0
  %v907 = vsel %vm116, 1, 0
  %vm908 = vcmp.eq.s32.totalorder %v892, 1
  %vm909 = vcmp.eq.s32.totalorder %v893, 1
  %vm910 = vcmp.eq.s32.totalorder %v894, 1
  %vm911 = vcmp.eq.s32.totalorder %v895, 1
  %vm912 = vcmp.eq.s32.totalorder %v896, 1
  %vm913 = vcmp.eq.s32.totalorder %v897, 1
  %vm914 = vcmp.eq.s32.totalorder %v898, 1
  %vm915 = vcmp.eq.s32.totalorder %v899, 1
  %vm916 = vcmp.eq.s32.totalorder %v900, 1
  %vm917 = vcmp.eq.s32.totalorder %v901, 1
  %vm918 = vcmp.eq.s32.totalorder %v902, 1
  %vm919 = vcmp.eq.s32.totalorder %v903, 1
  %vm920 = vcmp.eq.s32.totalorder %v904, 1
  %vm921 = vcmp.eq.s32.totalorder %v905, 1
  %vm922 = vcmp.eq.s32.totalorder %v906, 1
  %vm923 = vcmp.eq.s32.totalorder %v907, 1
  %v924 = vsel %vm908, %v486, 0.0
  %v925 = vsel %vm909, %v487, 0.0
  %v926 = vsel %vm910, %v488, 0.0
  %v927 = vsel %vm911, %v489, 0.0
  %v928 = vsel %vm912, %v490, 0.0
  %v929 = vsel %vm913, %v491, 0.0
  %v930 = vsel %vm914, %v492, 0.0
  %v931 = vsel %vm915, %v493, 0.0
  %v932 = vsel %vm916, %v494, 0.0
  %v933 = vsel %vm917, %v495, 0.0
  %v934 = vsel %vm918, %v496, 0.0
  %v935 = vsel %vm919, %v497, 0.0
  %v936 = vsel %vm920, %v498, 0.0
  %v937 = vsel %vm921, %v499, 0.0
  %v938 = vsel %vm922, %v500, 0.0
  %v939 = vsel %vm923, %v485, 0.0
  %v940 = vsel %vm197, 1, 0
  %v941 = vsel %vm198, 1, 0
  %v942 = vsel %vm199, 1, 0
  %v943 = vsel %vm200, 1, 0
  %v944 = vsel %vm201, 1, 0
  %v945 = vsel %vm202, 1, 0
  %v946 = vsel %vm203, 1, 0
  %v947 = vsel %vm204, 1, 0
  %v948 = vsel %vm205, 1, 0
  %v949 = vsel %vm206, 1, 0
  %v950 = vsel %vm207, 1, 0
  %v951 = vsel %vm208, 1, 0
  %v952 = vsel %vm209, 1, 0
  %v953 = vsel %vm210, 1, 0
  %v954 = vsel %vm211, 1, 0
  %v955 = vsel %vm212, 1, 0
  %vm956 = vcmp.eq.s32.totalorder %v940, 1
  %vm957 = vcmp.eq.s32.totalorder %v941, 1
  %vm958 = vcmp.eq.s32.totalorder %v942, 1
  %vm959 = vcmp.eq.s32.totalorder %v943, 1
  %vm960 = vcmp.eq.s32.totalorder %v944, 1
  %vm961 = vcmp.eq.s32.totalorder %v945, 1
  %vm962 = vcmp.eq.s32.totalorder %v946, 1
  %vm963 = vcmp.eq.s32.totalorder %v947, 1
  %vm964 = vcmp.eq.s32.totalorder %v948, 1
  %vm965 = vcmp.eq.s32.totalorder %v949, 1
  %vm966 = vcmp.eq.s32.totalorder %v950, 1
  %vm967 = vcmp.eq.s32.totalorder %v951, 1
  %vm968 = vcmp.eq.s32.totalorder %v952, 1
  %vm969 = vcmp.eq.s32.totalorder %v953, 1
  %vm970 = vcmp.eq.s32.totalorder %v954, 1
  %vm971 = vcmp.eq.s32.totalorder %v955, 1
  %v972 = vsel %vm956, %v697, 0.0
  %v973 = vsel %vm957, %v696, 0.0
  %v974 = vsel %vm958, %v695, 0.0
  %v975 = vsel %vm959, %v694, 0.0
  %v976 = vsel %vm960, %v693, 0.0
  %v977 = vsel %vm961, %v692, 0.0
  %v978 = vsel %vm962, %v691, 0.0
  %v979 = vsel %vm963, %v690, 0.0
  %v980 = vsel %vm964, %v689, 0.0
  %v981 = vsel %vm965, %v688, 0.0
  %v982 = vsel %vm966, %v687, 0.0
  %v983 = vsel %vm967, %v686, 0.0
  %v984 = vsel %vm968, %v685, 0.0
  %v985 = vsel %vm969, %v684, 0.0
  %v986 = vsel %vm970, %v699, 0.0
  %v987 = vsel %vm971, %v698, 0.0
  %1004 = vrot.lane.b32.xlu0 %v651, 32
  %v1005 = vpop.permute.xlu0 %1004
  %1006 = vrot.lane.b32.xlu0 %v652, 32
  %v1007 = vpop.permute.xlu0 %1006
  %1008 = vrot.lane.b32.xlu0 %v653, 32
  %v1009 = vpop.permute.xlu0 %1008
  %1010 = vrot.lane.b32.xlu0 %v654, 32
  %v1011 = vpop.permute.xlu0 %1010
  %1012 = vrot.lane.b32.xlu0 %v655, 32
  %v1013 = vpop.permute.xlu0 %1012
  %1014 = vrot.lane.b32.xlu0 %v656, 32
  %v1015 = vpop.permute.xlu0 %1014
  %1016 = vrot.lane.b32.xlu0 %v657, 32
  %v1017 = vpop.permute.xlu0 %1016
  %1018 = vrot.lane.b32.xlu0 %v658, 32
  %v1019 = vpop.permute.xlu0 %1018
  %1020 = vrot.lane.b32.xlu0 %v659, 32
  %v1021 = vpop.permute.xlu0 %1020
  %1022 = vrot.lane.b32.xlu0 %v660, 32
  %v1023 = vpop.permute.xlu0 %1022
  %1024 = vrot.lane.b32.xlu0 %v661, 32
  %v1025 = vpop.permute.xlu0 %1024
  %1026 = vrot.lane.b32.xlu0 %v662, 32
  %v1027 = vpop.permute.xlu0 %1026
  %1028 = vrot.lane.b32.xlu0 %v663, 32
  %v1029 = vpop.permute.xlu0 %1028
  %1030 = vrot.lane.b32.xlu0 %v664, 32
  %v1031 = vpop.permute.xlu0 %1030
  %1032 = vrot.lane.b32.xlu0 %v665, 32
  %v1033 = vpop.permute.xlu0 %1032
  %1034 = vrot.lane.b32.xlu0 %v666, 32
  %v1035 = vpop.permute.xlu0 %1034
  %1068 = vrot.lane.b32.xlu0 %v732, 64
  %v1069 = vpop.permute.xlu0 %1068
  %1070 = vrot.lane.b32.xlu0 %v733, 64
  %v1071 = vpop.permute.xlu0 %1070
  %1072 = vrot.lane.b32.xlu0 %v734, 64
  %v1073 = vpop.permute.xlu0 %1072
  %1074 = vrot.lane.b32.xlu0 %v735, 64
  %v1075 = vpop.permute.xlu0 %1074
  %1076 = vrot.lane.b32.xlu0 %v736, 64
  %v1077 = vpop.permute.xlu0 %1076
  %1078 = vrot.lane.b32.xlu0 %v737, 64
  %v1079 = vpop.permute.xlu0 %1078
  %1080 = vrot.lane.b32.xlu0 %v738, 64
  %v1081 = vpop.permute.xlu0 %1080
  %1082 = vrot.lane.b32.xlu0 %v739, 64
  %v1083 = vpop.permute.xlu0 %1082
  %1084 = vrot.lane.b32.xlu0 %v740, 64
  %v1085 = vpop.permute.xlu0 %1084
  %1086 = vrot.lane.b32.xlu0 %v741, 64
  %v1087 = vpop.permute.xlu0 %1086
  %1088 = vrot.lane.b32.xlu0 %v742, 64
  %v1089 = vpop.permute.xlu0 %1088
  %1090 = vrot.lane.b32.xlu0 %v743, 64
  %v1091 = vpop.permute.xlu0 %1090
  %1092 = vrot.lane.b32.xlu0 %v744, 64
  %v1093 = vpop.permute.xlu0 %1092
  %1094 = vrot.lane.b32.xlu0 %v745, 64
  %v1095 = vpop.permute.xlu0 %1094
  %1096 = vrot.lane.b32.xlu0 %v746, 64
  %v1097 = vpop.permute.xlu0 %1096
  %1098 = vrot.lane.b32.xlu0 %v747, 64
  %v1099 = vpop.permute.xlu0 %1098
  %1132 = vrot.lane.b32.xlu0 %v780, 96
  %v1133 = vpop.permute.xlu0 %1132
  %1134 = vrot.lane.b32.xlu0 %v781, 96
  %v1135 = vpop.permute.xlu0 %1134
  %1136 = vrot.lane.b32.xlu0 %v782, 96
  %v1137 = vpop.permute.xlu0 %1136
  %1138 = vrot.lane.b32.xlu0 %v783, 96
  %v1139 = vpop.permute.xlu0 %1138
  %1140 = vrot.lane.b32.xlu0 %v784, 96
  %v1141 = vpop.permute.xlu0 %1140
  %1142 = vrot.lane.b32.xlu0 %v785, 96
  %v1143 = vpop.permute.xlu0 %1142
  %1144 = vrot.lane.b32.xlu0 %v786, 96
  %v1145 = vpop.permute.xlu0 %1144
  %1146 = vrot.lane.b32.xlu0 %v787, 96
  %v1147 = vpop.permute.xlu0 %1146
  %1148 = vrot.lane.b32.xlu0 %v788, 96
  %v1149 = vpop.permute.xlu0 %1148
  %1150 = vrot.lane.b32.xlu0 %v789, 96
  %v1151 = vpop.permute.xlu0 %1150
  %1152 = vrot.lane.b32.xlu0 %v790, 96
  %v1153 = vpop.permute.xlu0 %1152
  %1154 = vrot.lane.b32.xlu0 %v791, 96
  %v1155 = vpop.permute.xlu0 %1154
  %1156 = vrot.lane.b32.xlu0 %v792, 96
  %v1157 = vpop.permute.xlu0 %1156
  %1158 = vrot.lane.b32.xlu0 %v793, 96
  %v1159 = vpop.permute.xlu0 %1158
  %1160 = vrot.lane.b32.xlu0 %v794, 96
  %v1161 = vpop.permute.xlu0 %1160
  %1162 = vrot.lane.b32.xlu0 %v795, 96
  %v1163 = vpop.permute.xlu0 %1162
  %v1180 = vsel %vm214, %v603, %v1005
  %v1181 = vsel %vm214, %v604, %v1007
  %v1182 = vsel %vm214, %v605, %v1009
  %v1183 = vsel %vm214, %v606, %v1011
  %v1184 = vsel %vm214, %v607, %v1013
  %v1185 = vsel %vm214, %v608, %v1015
  %v1186 = vsel %vm214, %v609, %v1017
  %v1187 = vsel %vm214, %v610, %v1019
  %v1188 = vsel %vm214, %v611, %v1021
  %v1189 = vsel %vm214, %v612, %v1023
  %v1190 = vsel %vm214, %v613, %v1025
  %v1191 = vsel %vm214, %v614, %v1027
  %v1192 = vsel %vm214, %v615, %v1029
  %v1193 = vsel %vm214, %v616, %v1031
  %v1194 = vsel %vm214, %v617, %v1033
  %v1195 = vsel %vm214, %v618, %v1035
  %vm1196 = vcmask 523264
  %v1197 = vsel %vm1196, %v1180, %v1069
  %v1198 = vsel %vm1196, %v1181, %v1071
  %v1199 = vsel %vm1196, %v1182, %v1073
  %v1200 = vsel %vm1196, %v1183, %v1075
  %v1201 = vsel %vm1196, %v1184, %v1077
  %v1202 = vsel %vm1196, %v1185, %v1079
  %v1203 = vsel %vm1196, %v1186, %v1081
  %v1204 = vsel %vm1196, %v1187, %v1083
  %v1205 = vsel %vm1196, %v1188, %v1085
  %v1206 = vsel %vm1196, %v1189, %v1087
  %v1207 = vsel %vm1196, %v1190, %v1089
  %v1208 = vsel %vm1196, %v1191, %v1091
  %v1209 = vsel %vm1196, %v1192, %v1093
  %v1210 = vsel %vm1196, %v1193, %v1095
  %v1211 = vsel %vm1196, %v1194, %v1097
  %v1212 = vsel %vm1196, %v1195, %v1099
  %vm1213 = vcmask 785408
  %v1214 = vsel %vm1213, %v1197, %v1133
  %v1215 = vsel %vm1213, %v1198, %v1135
  %v1216 = vsel %vm1213, %v1199, %v1137
  %v1217 = vsel %vm1213, %v1200, %v1139
  %v1218 = vsel %vm1213, %v1201, %v1141
  %v1219 = vsel %vm1213, %v1202, %v1143
  %v1220 = vsel %vm1213, %v1203, %v1145
  %v1221 = vsel %vm1213, %v1204, %v1147
  %v1222 = vsel %vm1213, %v1205, %v1149
  %v1223 = vsel %vm1213, %v1206, %v1151
  %v1224 = vsel %vm1213, %v1207, %v1153
  %v1225 = vsel %vm1213, %v1208, %v1155
  %v1226 = vsel %vm1213, %v1209, %v1157
  %v1227 = vsel %vm1213, %v1210, %v1159
  %v1228 = vsel %vm1213, %v1211, %v1161
  %v1229 = vsel %vm1213, %v1212, %v1163
  %1246 = vrot.lane.b32.xlu0 %v876, 32
  %v1247 = vpop.permute.xlu0 %1246
  %1248 = vrot.lane.b32.xlu0 %v877, 32
  %v1249 = vpop.permute.xlu0 %1248
  %1250 = vrot.lane.b32.xlu0 %v878, 32
  %v1251 = vpop.permute.xlu0 %1250
  %1252 = vrot.lane.b32.xlu0 %v879, 32
  %v1253 = vpop.permute.xlu0 %1252
  %1254 = vrot.lane.b32.xlu0 %v880, 32
  %v1255 = vpop.permute.xlu0 %1254
  %1256 = vrot.lane.b32.xlu0 %v881, 32
  %v1257 = vpop.permute.xlu0 %1256
  %1258 = vrot.lane.b32.xlu0 %v882, 32
  %v1259 = vpop.permute.xlu0 %1258
  %1260 = vrot.lane.b32.xlu0 %v883, 32
  %v1261 = vpop.permute.xlu0 %1260
  %1262 = vrot.lane.b32.xlu0 %v884, 32
  %v1263 = vpop.permute.xlu0 %1262
  %1264 = vrot.lane.b32.xlu0 %v885, 32
  %v1265 = vpop.permute.xlu0 %1264
  %1266 = vrot.lane.b32.xlu0 %v886, 32
  %v1267 = vpop.permute.xlu0 %1266
  %1268 = vrot.lane.b32.xlu0 %v887, 32
  %v1269 = vpop.permute.xlu0 %1268
  %1270 = vrot.lane.b32.xlu0 %v888, 32
  %v1271 = vpop.permute.xlu0 %1270
  %1272 = vrot.lane.b32.xlu0 %v889, 32
  %v1273 = vpop.permute.xlu0 %1272
  %1274 = vrot.lane.b32.xlu0 %v890, 32
  %v1275 = vpop.permute.xlu0 %1274
  %1276 = vrot.lane.b32.xlu0 %v891, 32
  %v1277 = vpop.permute.xlu0 %1276
  %1310 = vrot.lane.b32.xlu0 %v924, 64
  %v1311 = vpop.permute.xlu0 %1310
  %1312 = vrot.lane.b32.xlu0 %v925, 64
  %v1313 = vpop.permute.xlu0 %1312
  %1314 = vrot.lane.b32.xlu0 %v926, 64
  %v1315 = vpop.permute.xlu0 %1314
  %1316 = vrot.lane.b32.xlu0 %v927, 64
  %v1317 = vpop.permute.xlu0 %1316
  %1318 = vrot.lane.b32.xlu0 %v928, 64
  %v1319 = vpop.permute.xlu0 %1318
  %1320 = vrot.lane.b32.xlu0 %v929, 64
  %v1321 = vpop.permute.xlu0 %1320
  %1322 = vrot.lane.b32.xlu0 %v930, 64
  %v1323 = vpop.permute.xlu0 %1322
  %1324 = vrot.lane.b32.xlu0 %v931, 64
  %v1325 = vpop.permute.xlu0 %1324
  %1326 = vrot.lane.b32.xlu0 %v932, 64
  %v1327 = vpop.permute.xlu0 %1326
  %1328 = vrot.lane.b32.xlu0 %v933, 64
  %v1329 = vpop.permute.xlu0 %1328
  %1330 = vrot.lane.b32.xlu0 %v934, 64
  %v1331 = vpop.permute.xlu0 %1330
  %1332 = vrot.lane.b32.xlu0 %v935, 64
  %v1333 = vpop.permute.xlu0 %1332
  %1334 = vrot.lane.b32.xlu0 %v936, 64
  %v1335 = vpop.permute.xlu0 %1334
  %1336 = vrot.lane.b32.xlu0 %v937, 64
  %v1337 = vpop.permute.xlu0 %1336
  %1338 = vrot.lane.b32.xlu0 %v938, 64
  %v1339 = vpop.permute.xlu0 %1338
  %1340 = vrot.lane.b32.xlu0 %v939, 64
  %v1341 = vpop.permute.xlu0 %1340
  %1374 = vrot.lane.b32.xlu0 %v972, 96
  %v1375 = vpop.permute.xlu0 %1374
  %1376 = vrot.lane.b32.xlu0 %v973, 96
  %v1377 = vpop.permute.xlu0 %1376
  %1378 = vrot.lane.b32.xlu0 %v974, 96
  %v1379 = vpop.permute.xlu0 %1378
  %1380 = vrot.lane.b32.xlu0 %v975, 96
  %v1381 = vpop.permute.xlu0 %1380
  %1382 = vrot.lane.b32.xlu0 %v976, 96
  %v1383 = vpop.permute.xlu0 %1382
  %1384 = vrot.lane.b32.xlu0 %v977, 96
  %v1385 = vpop.permute.xlu0 %1384
  %1386 = vrot.lane.b32.xlu0 %v978, 96
  %v1387 = vpop.permute.xlu0 %1386
  %1388 = vrot.lane.b32.xlu0 %v979, 96
  %v1389 = vpop.permute.xlu0 %1388
  %1390 = vrot.lane.b32.xlu0 %v980, 96
  %v1391 = vpop.permute.xlu0 %1390
  %1392 = vrot.lane.b32.xlu0 %v981, 96
  %v1393 = vpop.permute.xlu0 %1392
  %1394 = vrot.lane.b32.xlu0 %v982, 96
  %v1395 = vpop.permute.xlu0 %1394
  %1396 = vrot.lane.b32.xlu0 %v983, 96
  %v1397 = vpop.permute.xlu0 %1396
  %1398 = vrot.lane.b32.xlu0 %v984, 96
  %v1399 = vpop.permute.xlu0 %1398
  %1400 = vrot.lane.b32.xlu0 %v985, 96
  %v1401 = vpop.permute.xlu0 %1400
  %1402 = vrot.lane.b32.xlu0 %v986, 96
  %v1403 = vpop.permute.xlu0 %1402
  %1404 = vrot.lane.b32.xlu0 %v987, 96
  %v1405 = vpop.permute.xlu0 %1404
  %v1422 = vsel %vm214, %v828, %v1247
  %v1423 = vsel %vm214, %v829, %v1249
  %v1424 = vsel %vm214, %v830, %v1251
  %v1425 = vsel %vm214, %v831, %v1253
  %v1426 = vsel %vm214, %v832, %v1255
  %v1427 = vsel %vm214, %v833, %v1257
  %v1428 = vsel %vm214, %v834, %v1259
  %v1429 = vsel %vm214, %v835, %v1261
  %v1430 = vsel %vm214, %v836, %v1263
  %v1431 = vsel %vm214, %v837, %v1265
  %v1432 = vsel %vm214, %v838, %v1267
  %v1433 = vsel %vm214, %v839, %v1269
  %v1434 = vsel %vm214, %v840, %v1271
  %v1435 = vsel %vm214, %v841, %v1273
  %v1436 = vsel %vm214, %v842, %v1275
  %v1437 = vsel %vm214, %v843, %v1277
  %v1438 = vsel %vm1196, %v1422, %v1311
  %v1439 = vsel %vm1196, %v1423, %v1313
  %v1440 = vsel %vm1196, %v1424, %v1315
  %v1441 = vsel %vm1196, %v1425, %v1317
  %v1442 = vsel %vm1196, %v1426, %v1319
  %v1443 = vsel %vm1196, %v1427, %v1321
  %v1444 = vsel %vm1196, %v1428, %v1323
  %v1445 = vsel %vm1196, %v1429, %v1325
  %v1446 = vsel %vm1196, %v1430, %v1327
  %v1447 = vsel %vm1196, %v1431, %v1329
  %v1448 = vsel %vm1196, %v1432, %v1331
  %v1449 = vsel %vm1196, %v1433, %v1333
  %v1450 = vsel %vm1196, %v1434, %v1335
  %v1451 = vsel %vm1196, %v1435, %v1337
  %v1452 = vsel %vm1196, %v1436, %v1339
  %v1453 = vsel %vm1196, %v1437, %v1341
  %v1454 = vsel %vm1213, %v1438, %v1375
  %v1455 = vsel %vm1213, %v1439, %v1377
  %v1456 = vsel %vm1213, %v1440, %v1379
  %v1457 = vsel %vm1213, %v1441, %v1381
  %v1458 = vsel %vm1213, %v1442, %v1383
  %v1459 = vsel %vm1213, %v1443, %v1385
  %v1460 = vsel %vm1213, %v1444, %v1387
  %v1461 = vsel %vm1213, %v1445, %v1389
  %v1462 = vsel %vm1213, %v1446, %v1391
  %v1463 = vsel %vm1213, %v1447, %v1393
  %v1464 = vsel %vm1213, %v1448, %v1395
  %v1465 = vsel %vm1213, %v1449, %v1397
  %v1466 = vsel %vm1213, %v1450, %v1399
  %v1467 = vsel %vm1213, %v1451, %v1401
  %v1468 = vsel %vm1213, %v1452, %v1403
  %v1469 = vsel %vm1213, %v1453, %v1405
  %v1470 = vld [vmem:[%s3] sm:$0xff]
  %v1471 = vld [vmem:[%s3 + $0x8] sm:$0xff]
  %v1472 = vld [vmem:[%s3 + $0x10] sm:$0xff]
  %v1473 = vld [vmem:[%s3 + $0x18] sm:$0xff]
  %v1474 = vld [vmem:[%s3 + $0x20] sm:$0xff]
  %v1475 = vld [vmem:[%s3 + $0x28] sm:$0xff]
  %v1476 = vld [vmem:[%s3 + $0x30] sm:$0xff]
  %v1477 = vld [vmem:[%s3 + $0x38] sm:$0xff]
  %v1478 = vld [vmem:[%s3 + $0x40] sm:$0xff]
  %v1479 = vld [vmem:[%s3 + $0x48] sm:$0xff]
  %v1480 = vld [vmem:[%s3 + $0x50] sm:$0xff]
  %v1481 = vld [vmem:[%s3 + $0x58] sm:$0xff]
  %v1482 = vld [vmem:[%s3 + $0x60] sm:$0xff]
  %v1483 = vld [vmem:[%s3 + $0x68] sm:$0xff]
  %v1484 = vld [vmem:[%s3 + $0x70] sm:$0xff]
  %v1485 = vld [vmem:[%s3 + $0x78] sm:$0xff]
  %v1486 = vld [vmem:[%s3 + $0x80] sm:$0xff]
  %v1487 = vld [vmem:[%s3 + $0x88] sm:$0xff]
  %v1488 = vld [vmem:[%s3 + $0x90] sm:$0xff]
  %v1489 = vld [vmem:[%s3 + $0x98] sm:$0xff]
  %v1490 = vld [vmem:[%s3 + $0xa0] sm:$0xff]
  %v1491 = vld [vmem:[%s3 + $0xa8] sm:$0xff]
  %v1492 = vld [vmem:[%s3 + $0xb0] sm:$0xff]
  %v1493 = vld [vmem:[%s3 + $0xb8] sm:$0xff]
  %v1494 = vld [vmem:[%s3 + $0xc0] sm:$0xff]
  %v1495 = vld [vmem:[%s3 + $0xc8] sm:$0xff]
  %v1496 = vld [vmem:[%s3 + $0xd0] sm:$0xff]
  %v1497 = vld [vmem:[%s3 + $0xd8] sm:$0xff]
  %v1498 = vld [vmem:[%s3 + $0xe0] sm:$0xff]
  %v1499 = vld [vmem:[%s3 + $0xe8] sm:$0xff]
  %v1500 = vld [vmem:[%s3 + $0xf0] sm:$0xff]
  %v1501 = vld [vmem:[%s3 + $0xf8] sm:$0xff]
  %v1502 = vld [vmem:[%s3 + $0x100] sm:$0xff]
  %v1503 = vld [vmem:[%s3 + $0x108] sm:$0xff]
  %v1504 = vld [vmem:[%s3 + $0x110] sm:$0xff]
  %v1505 = vld [vmem:[%s3 + $0x118] sm:$0xff]
  %v1506 = vld [vmem:[%s3 + $0x120] sm:$0xff]
  %v1507 = vld [vmem:[%s3 + $0x128] sm:$0xff]
  %v1508 = vld [vmem:[%s3 + $0x130] sm:$0xff]
  %v1509 = vld [vmem:[%s3 + $0x138] sm:$0xff]
  %v1510 = vsel %vm214, %v533, 0
  %v1512 = vsel %vm214, %v537, 0
  %1514 = vmatprep.subr.mxu0 0.0
  %1515 = vmatpush1.msra.mxu0 %v1490
  %1516 = vmatprep.subr.mxu0 0.0
  %1517 = vmatpush1.msra.mxu0 %v1491
  %1518 = vmatprep.subr.mxu0 0.0
  %1519 = vmatpush1.msra.mxu0 %v1492
  %1520 = vmatprep.subr.mxu0 0.0
  %1521 = vmatpush1.msra.mxu0 %v1493
  %1522 = vmatprep.subr.mxu0 0.0
  %1523 = vmatpush1.msra.mxu0 %v1494
  %1524 = vmatprep.subr.mxu0 0.0
  %1525 = vmatpush1.msra.mxu0 %v1495
  %1526 = vmatprep.subr.mxu0 0.0
  %1527 = vmatpush1.msra.mxu0 %v1496
  %1528 = vmatprep.subr.mxu0 0.0
  %1529 = vmatpush1.msra.mxu0 %v1497
  %1530 = vmatprep.subr.mxu0 0.0
  %1531 = vmatpush1.msra.mxu0 %v1498
  %1532 = vmatprep.subr.mxu0 0.0
  %1533 = vmatpush1.msra.mxu0 %v1499
  %1534 = vmatprep.subr.mxu0 0.0
  %1535 = vmatpush1.msra.mxu0 %v1500
  %1536 = vmatprep.subr.mxu0 0.0
  %1537 = vmatpush1.msra.mxu0 %v1501
  %1538 = vmatprep.subr.mxu0 0.0
  %1539 = vmatpush1.msra.mxu0 %v1502
  %1540 = vmatprep.subr.mxu0 0.0
  %1541 = vmatpush1.msra.mxu0 %v1503
  %1542 = vmatprep.subr.mxu0 0.0
  %1543 = vmatpush1.msra.mxu0 %v1504
  %1544 = vmatprep.subr.mxu0 0.0
  %1545 = vmatpush1.msra.mxu0 %v1505
  %1546 = vmatprep.subr.mxu0 0.0
  %1547 = vmatpush1.msra.mxu0 %v1506
  %1548 = vmatprep.subr.mxu0 0.0
  %1549 = vmatpush1.msra.mxu0 %v1507
  %1550 = vmatprep.subr.mxu0 0.0
  %1551 = vmatpush1.msra.mxu0 %v1508
  %1552 = vmatprep.subr.mxu0 0.0
  %1553 = vmatpush1.msra.mxu0 %v1509
  %1554 = vmatprep.subr.mxu0 0.0
  %1555 = vmatpush1.msra.mxu0 0.0
  %1556 = vmatprep.subr.mxu0 0.0
  %1557 = vmatpush1.msra.mxu0 0.0
  %1558 = vmatprep.subr.mxu0 0.0
  %1559 = vmatpush1.msra.mxu0 0.0
  %1560 = vmatprep.subr.mxu0 0.0
  %1561 = vmatpush1.msra.mxu0 0.0
  %1562 = vmatprep.subr.mxu0 0.0
  %1563 = vmatpush1.msra.mxu0 0.0
  %1564 = vmatprep.subr.mxu0 0.0
  %1565 = vmatpush1.msra.mxu0 0.0
  %1566 = vmatprep.subr.mxu0 0.0
  %1567 = vmatpush1.msra.mxu0 0.0
  %1568 = vmatprep.subr.mxu0 0.0
  %1569 = vmatpush1.msra.mxu0 0.0
  %1570 = vmatprep.subr.mxu0 0.0
  %1571 = vmatpush1.msra.mxu0 0.0
  %1572 = vmatprep.subr.mxu0 0.0
  %1573 = vmatpush1.msra.mxu0 0.0
  %1574 = vmatprep.subr.mxu0 0.0
  %1575 = vmatpush1.msra.mxu0 0.0
  %1576 = vmatprep.subr.mxu0 0.0
  %1577 = vmatpush1.msra.mxu0 0.0
  %1578 = vmatprep.mubr.f32.mxu0 %v1510
  %1579 = vmatmul.mubr.f32.gmra.mrb[0].mxu0 %v1454
  %v1580 = vpop.f32.mrb[0].mxu0
  %v1581 = vadd.f32 0.0, %v1580
  %v1582 = vpop.f32.mrb[0].mxu0
  %1583 = vmatprep.mubr.f32.mxu0 %v1510
  %1584 = vmatmul.mubr.f32.gmra.mrb[0].mxu0 %v1455
  %v1585 = vpop.f32.mrb[0].mxu0
  %v1586 = vadd.f32 0.0, %v1585
  %v1587 = vpop.f32.mrb[0].mxu0
  %1588 = vmatprep.mubr.f32.mxu0 %v1510
  %1589 = vmatmul.mubr.f32.gmra.mrb[0].mxu0 %v1456
  %v1590 = vpop.f32.mrb[0].mxu0
  %v1591 = vadd.f32 0.0, %v1590
  %v1592 = vpop.f32.mrb[0].mxu0
  %1593 = vmatprep.mubr.f32.mxu0 %v1510
  %1594 = vmatmul.mubr.f32.gmra.mrb[0].mxu0 %v1457
  %v1595 = vpop.f32.mrb[0].mxu0
  %v1596 = vadd.f32 0.0, %v1595
  %v1597 = vpop.f32.mrb[0].mxu0
  %1598 = vmatprep.mubr.f32.mxu0 %v1510
  %1599 = vmatmul.mubr.f32.gmra.mrb[0].mxu0 %v1458
  %v1600 = vpop.f32.mrb[0].mxu0
  %v1601 = vadd.f32 0.0, %v1600
  %v1602 = vpop.f32.mrb[0].mxu0
  %1603 = vmatprep.mubr.f32.mxu0 %v1510
  %1604 = vmatmul.mubr.f32.gmra.mrb[0].mxu0 %v1459
  %v1605 = vpop.f32.mrb[0].mxu0
  %v1606 = vadd.f32 0.0, %v1605
  %v1607 = vpop.f32.mrb[0].mxu0
  %1608 = vmatprep.mubr.f32.mxu0 %v1510
  %1609 = vmatmul.mubr.f32.gmra.mrb[0].mxu0 %v1460
  %v1610 = vpop.f32.mrb[0].mxu0
  %v1611 = vadd.f32 0.0, %v1610
  %v1612 = vpop.f32.mrb[0].mxu0
  %1613 = vmatprep.mubr.f32.mxu0 %v1510
  %1614 = vmatmul.mubr.f32.gmra.mrb[0].mxu0 %v1461
  %v1615 = vpop.f32.mrb[0].mxu0
  %v1616 = vadd.f32 0.0, %v1615
  %v1617 = vpop.f32.mrb[0].mxu0
  %1618 = vmatprep.mubr.f32.mxu0 %v1512
  %1619 = vmatmul.mubr.f32.gmra.mrb[0].mxu0 %v1462
  %v1620 = vpop.f32.mrb[0].mxu0
  %v1621 = vadd.f32 0.0, %v1620
  %v1622 = vpop.f32.mrb[0].mxu0
  %1623 = vmatprep.mubr.f32.mxu0 %v1512
  %1624 = vmatmul.mubr.f32.gmra.mrb[0].mxu0 %v1463
  %v1625 = vpop.f32.mrb[0].mxu0
  %v1626 = vadd.f32 0.0, %v1625
  %v1627 = vpop.f32.mrb[0].mxu0
  %1628 = vmatprep.mubr.f32.mxu0 %v1512
  %1629 = vmatmul.mubr.f32.gmra.mrb[0].mxu0 %v1464
  %v1630 = vpop.f32.mrb[0].mxu0
  %v1631 = vadd.f32 0.0, %v1630
  %v1632 = vpop.f32.mrb[0].mxu0
  %1633 = vmatprep.mubr.f32.mxu0 %v1512
  %1634 = vmatmul.mubr.f32.gmra.mrb[0].mxu0 %v1465
  %v1635 = vpop.f32.mrb[0].mxu0
  %v1636 = vadd.f32 0.0, %v1635
  %v1637 = vpop.f32.mrb[0].mxu0
  %1638 = vmatprep.mubr.f32.mxu0 %v1512
  %1639 = vmatmul.mubr.f32.gmra.mrb[0].mxu0 %v1466
  %v1640 = vpop.f32.mrb[0].mxu0
  %v1641 = vadd.f32 0.0, %v1640
  %v1642 = vpop.f32.mrb[0].mxu0
  %1643 = vmatprep.mubr.f32.mxu0 %v1512
  %1644 = vmatmul.mubr.f32.gmra.mrb[0].mxu0 %v1467
  %v1645 = vpop.f32.mrb[0].mxu0
  %v1646 = vadd.f32 0.0, %v1645
  %v1647 = vpop.f32.mrb[0].mxu0
  %1648 = vmatprep.mubr.f32.mxu0 %v1512
  %1649 = vmatmul.mubr.f32.gmra.mrb[0].mxu0 %v1468
  %v1650 = vpop.f32.mrb[0].mxu0
  %v1651 = vadd.f32 0.0, %v1650
  %v1652 = vpop.f32.mrb[0].mxu0
  %1653 = vmatprep.mubr.f32.mxu0 %v1512
  %1654 = vmatmul.mubr.f32.gmra.mrb[0].mxu0 %v1469
  %v1655 = vpop.f32.mrb[0].mxu0
  %v1656 = vadd.f32 0.0, %v1655
  %v1657 = vpop.f32.mrb[0].mxu0
  %1658 = vdwg.mxu0
  %v1660 = vsel %vm214, %v485, 0
  %v1663 = vsel %vm214, %v486, 0
  %v1666 = vsel %vm214, %v487, 0
  %v1669 = vsel %vm214, %v488, 0
  %v1672 = vsel %vm214, %v489, 0
  %v1675 = vsel %vm214, %v490, 0
  %v1678 = vsel %vm214, %v491, 0
  %v1681 = vsel %vm214, %v492, 0
  %v1684 = vsel %vm214, %v493, 0
  %v1687 = vsel %vm214, %v494, 0
  %v1690 = vsel %vm214, %v495, 0
  %v1693 = vsel %vm214, %v496, 0
  %v1696 = vsel %vm214, %v497, 0
  %v1699 = vsel %vm214, %v498, 0
  %v1702 = vsel %vm214, %v499, 0
  %v1705 = vsel %vm214, %v500, 0
  %1707 = vmatprep.subr.mxu0 0.0
  %1708 = vmatpush1.msra.mxu0 %v1470
  %1709 = vmatprep.subr.mxu0 0.0
  %1710 = vmatpush1.msra.mxu0 %v1471
  %1711 = vmatprep.subr.mxu0 0.0
  %1712 = vmatpush1.msra.mxu0 %v1472
  %1713 = vmatprep.subr.mxu0 0.0
  %1714 = vmatpush1.msra.mxu0 %v1473
  %1715 = vmatprep.subr.mxu0 0.0
  %1716 = vmatpush1.msra.mxu0 %v1474
  %1717 = vmatprep.subr.mxu0 0.0
  %1718 = vmatpush1.msra.mxu0 %v1475
  %1719 = vmatprep.subr.mxu0 0.0
  %1720 = vmatpush1.msra.mxu0 %v1476
  %1721 = vmatprep.subr.mxu0 0.0
  %1722 = vmatpush1.msra.mxu0 %v1477
  %1723 = vmatprep.subr.mxu0 0.0
  %1724 = vmatpush1.msra.mxu0 %v1478
  %1725 = vmatprep.subr.mxu0 0.0
  %1726 = vmatpush1.msra.mxu0 %v1479
  %1727 = vmatprep.subr.mxu0 0.0
  %1728 = vmatpush1.msra.mxu0 %v1480
  %1729 = vmatprep.subr.mxu0 0.0
  %1730 = vmatpush1.msra.mxu0 %v1481
  %1731 = vmatprep.subr.mxu0 0.0
  %1732 = vmatpush1.msra.mxu0 %v1482
  %1733 = vmatprep.subr.mxu0 0.0
  %1734 = vmatpush1.msra.mxu0 %v1483
  %1735 = vmatprep.subr.mxu0 0.0
  %1736 = vmatpush1.msra.mxu0 %v1484
  %1737 = vmatprep.subr.mxu0 0.0
  %1738 = vmatpush1.msra.mxu0 %v1485
  %1739 = vmatprep.subr.mxu0 0.0
  %1740 = vmatpush1.msra.mxu0 %v1486
  %1741 = vmatprep.subr.mxu0 0.0
  %1742 = vmatpush1.msra.mxu0 %v1487
  %1743 = vmatprep.subr.mxu0 0.0
  %1744 = vmatpush1.msra.mxu0 %v1488
  %1745 = vmatprep.subr.mxu0 0.0
  %1746 = vmatpush1.msra.mxu0 %v1489
  %1747 = vmatprep.subr.mxu0 0.0
  %1748 = vmatpush1.msra.mxu0 0.0
  %1749 = vmatprep.subr.mxu0 0.0
  %1750 = vmatpush1.msra.mxu0 0.0
  %1751 = vmatprep.subr.mxu0 0.0
  %1752 = vmatpush1.msra.mxu0 0.0
  %1753 = vmatprep.subr.mxu0 0.0
  %1754 = vmatpush1.msra.mxu0 0.0
  %1755 = vmatprep.subr.mxu0 0.0
  %1756 = vmatpush1.msra.mxu0 0.0
  %1757 = vmatprep.subr.mxu0 0.0
  %1758 = vmatpush1.msra.mxu0 0.0
  %1759 = vmatprep.subr.mxu0 0.0
  %1760 = vmatpush1.msra.mxu0 0.0
  %1761 = vmatprep.subr.mxu0 0.0
  %1762 = vmatpush1.msra.mxu0 0.0
  %1763 = vmatprep.subr.mxu0 0.0
  %1764 = vmatpush1.msra.mxu0 0.0
  %1765 = vmatprep.subr.mxu0 0.0
  %1766 = vmatpush1.msra.mxu0 0.0
  %1767 = vmatprep.subr.mxu0 0.0
  %1768 = vmatpush1.msra.mxu0 0.0
  %1769 = vmatprep.subr.mxu0 0.0
  %1770 = vmatpush1.msra.mxu0 0.0
  %1771 = vmatprep.mubr.f32.mxu0 %v1660
  %1772 = vmatmul.mubr.f32.gmra.mrb[0].mxu0 %v1214
  %v1773 = vpop.f32.mrb[0].mxu0
  %v1774 = vadd.f32 %v1581, %v1773
  %v1775 = vpop.f32.mrb[0].mxu0
  %1776 = vmatprep.mubr.f32.mxu0 %v1663
  %1777 = vmatmul.mubr.f32.gmra.mrb[0].mxu0 %v1215
  %v1778 = vpop.f32.mrb[0].mxu0
  %v1779 = vadd.f32 %v1586, %v1778
  %v1780 = vpop.f32.mrb[0].mxu0
  %1781 = vmatprep.mubr.f32.mxu0 %v1666
  %1782 = vmatmul.mubr.f32.gmra.mrb[0].mxu0 %v1216
  %v1783 = vpop.f32.mrb[0].mxu0
  %v1784 = vadd.f32 %v1591, %v1783
  %v1785 = vpop.f32.mrb[0].mxu0
  %1786 = vmatprep.mubr.f32.mxu0 %v1669
  %1787 = vmatmul.mubr.f32.gmra.mrb[0].mxu0 %v1217
  %v1788 = vpop.f32.mrb[0].mxu0
  %v1789 = vadd.f32 %v1596, %v1788
  %v1790 = vpop.f32.mrb[0].mxu0
  %1791 = vmatprep.mubr.f32.mxu0 %v1672
  %1792 = vmatmul.mubr.f32.gmra.mrb[0].mxu0 %v1218
  %v1793 = vpop.f32.mrb[0].mxu0
  %v1794 = vadd.f32 %v1601, %v1793
  %v1795 = vpop.f32.mrb[0].mxu0
  %1796 = vmatprep.mubr.f32.mxu0 %v1675
  %1797 = vmatmul.mubr.f32.gmra.mrb[0].mxu0 %v1219
  %v1798 = vpop.f32.mrb[0].mxu0
  %v1799 = vadd.f32 %v1606, %v1798
  %v1800 = vpop.f32.mrb[0].mxu0
  %1801 = vmatprep.mubr.f32.mxu0 %v1678
  %1802 = vmatmul.mubr.f32.gmra.mrb[0].mxu0 %v1220
  %v1803 = vpop.f32.mrb[0].mxu0
  %v1804 = vadd.f32 %v1611, %v1803
  %v1805 = vpop.f32.mrb[0].mxu0
  %1806 = vmatprep.mubr.f32.mxu0 %v1681
  %1807 = vmatmul.mubr.f32.gmra.mrb[0].mxu0 %v1221
  %v1808 = vpop.f32.mrb[0].mxu0
  %v1809 = vadd.f32 %v1616, %v1808
  %v1810 = vpop.f32.mrb[0].mxu0
  %1811 = vmatprep.mubr.f32.mxu0 %v1684
  %1812 = vmatmul.mubr.f32.gmra.mrb[0].mxu0 %v1222
  %v1813 = vpop.f32.mrb[0].mxu0
  %v1814 = vadd.f32 %v1621, %v1813
  %v1815 = vpop.f32.mrb[0].mxu0
  %1816 = vmatprep.mubr.f32.mxu0 %v1687
  %1817 = vmatmul.mubr.f32.gmra.mrb[0].mxu0 %v1223
  %v1818 = vpop.f32.mrb[0].mxu0
  %v1819 = vadd.f32 %v1626, %v1818
  %v1820 = vpop.f32.mrb[0].mxu0
  %1821 = vmatprep.mubr.f32.mxu0 %v1690
  %1822 = vmatmul.mubr.f32.gmra.mrb[0].mxu0 %v1224
  %v1823 = vpop.f32.mrb[0].mxu0
  %v1824 = vadd.f32 %v1631, %v1823
  %v1825 = vpop.f32.mrb[0].mxu0
  %1826 = vmatprep.mubr.f32.mxu0 %v1693
  %1827 = vmatmul.mubr.f32.gmra.mrb[0].mxu0 %v1225
  %v1828 = vpop.f32.mrb[0].mxu0
  %v1829 = vadd.f32 %v1636, %v1828
  %v1830 = vpop.f32.mrb[0].mxu0
  %1831 = vmatprep.mubr.f32.mxu0 %v1696
  %1832 = vmatmul.mubr.f32.gmra.mrb[0].mxu0 %v1226
  %v1833 = vpop.f32.mrb[0].mxu0
  %v1834 = vadd.f32 %v1641, %v1833
  %v1835 = vpop.f32.mrb[0].mxu0
  %1836 = vmatprep.mubr.f32.mxu0 %v1699
  %1837 = vmatmul.mubr.f32.gmra.mrb[0].mxu0 %v1227
  %v1838 = vpop.f32.mrb[0].mxu0
  %v1839 = vadd.f32 %v1646, %v1838
  %v1840 = vpop.f32.mrb[0].mxu0
  %1841 = vmatprep.mubr.f32.mxu0 %v1702
  %1842 = vmatmul.mubr.f32.gmra.mrb[0].mxu0 %v1228
  %v1843 = vpop.f32.mrb[0].mxu0
  %v1844 = vadd.f32 %v1651, %v1843
  %v1845 = vpop.f32.mrb[0].mxu0
  %1846 = vmatprep.mubr.f32.mxu0 %v1705
  %1847 = vmatmul.mubr.f32.gmra.mrb[0].mxu0 %v1229
  %v1848 = vpop.f32.mrb[0].mxu0
  %v1849 = vadd.f32 %v1656, %v1848
  %v1850 = vpop.f32.mrb[0].mxu0
  %1851 = vdwg.mxu0
  %v1852 = vlaneseq
  %v1853 = vshrl.u32 %v1852, 7
  %v1854 = vsub.s32 4, %v1853
  %v1855 = vrot.slane %v213, %v1854
  %v1856 = vadd.f32 %v1774, %v1855
  %v1857 = vadd.f32 %v1779, %v1855
  %v1858 = vadd.f32 %v1784, %v1855
  %v1859 = vadd.f32 %v1789, %v1855
  %v1860 = vadd.f32 %v1794, %v1855
  %v1861 = vadd.f32 %v1799, %v1855
  %v1862 = vadd.f32 %v1804, %v1855
  %v1863 = vadd.f32 %v1809, %v1855
  %v1864 = vadd.f32 %v1814, %v1855
  %v1865 = vadd.f32 %v1819, %v1855
  %v1866 = vadd.f32 %v1824, %v1855
  %v1867 = vadd.f32 %v1829, %v1855
  %v1868 = vadd.f32 %v1834, %v1855
  %v1869 = vadd.f32 %v1839, %v1855
  %v1870 = vadd.f32 %v1844, %v1855
  %v1871 = vadd.f32 %v1849, %v1855
  %v1872 = vsel %vm1196, %v1856, 0.0
  %v1873 = vsel %vm1196, %v1857, 0.0
  %v1874 = vadd.f32 %v1872, %v1873
  %v1875 = vsel %vm1196, %v1858, 0.0
  %v1876 = vadd.f32 %v1874, %v1875
  %v1877 = vsel %vm1196, %v1859, 0.0
  %v1878 = vadd.f32 %v1876, %v1877
  %v1879 = vsel %vm1196, %v1860, 0.0
  %v1880 = vadd.f32 %v1878, %v1879
  %v1881 = vsel %vm1196, %v1861, 0.0
  %v1882 = vadd.f32 %v1880, %v1881
  %v1883 = vsel %vm1196, %v1862, 0.0
  %v1884 = vadd.f32 %v1882, %v1883
  %v1885 = vsel %vm1196, %v1863, 0.0
  %v1886 = vadd.f32 %v1884, %v1885
  %v1887 = vrot.slane %v1886, 4
  %v1888 = vadd.f32 %v1886, %v1887
  %v1889 = vrot.slane %v1888, 2
  %v1890 = vadd.f32 %v1888, %v1889
  %v1891 = vrot.slane %v1890, 1
  %v1892 = vadd.f32 %v1890, %v1891
  %v1893 = vsel %vm1196, %v1864, 0.0
  %v1894 = vsel %vm1196, %v1865, 0.0
  %v1895 = vadd.f32 %v1893, %v1894
  %v1896 = vsel %vm1196, %v1866, 0.0
  %v1897 = vadd.f32 %v1895, %v1896
  %v1898 = vsel %vm1196, %v1867, 0.0
  %v1899 = vadd.f32 %v1897, %v1898
  %v1900 = vsel %vm1196, %v1868, 0.0
  %v1901 = vadd.f32 %v1899, %v1900
  %v1902 = vsel %vm1196, %v1869, 0.0
  %v1903 = vadd.f32 %v1901, %v1902
  %v1904 = vsel %vm1196, %v1870, 0.0
  %v1905 = vadd.f32 %v1903, %v1904
  %v1906 = vsel %vm1196, %v1871, 0.0
  %v1907 = vadd.f32 %v1905, %v1906
  %v1908 = vrot.slane %v1907, 4
  %v1909 = vadd.f32 %v1907, %v1908
  %v1910 = vrot.slane %v1909, 2
  %v1911 = vadd.f32 %v1909, %v1910
  %v1912 = vrot.slane %v1911, 1
  %v1913 = vadd.f32 %v1911, %v1912
  %v1914 = vmul.f32 %v1892, 0.015625
  %v1915 = vmul.f32 %v1913, 0.015625
  %v1916 = vmul.f32 %v1856, %v1856
  %v1917 = vmul.f32 %v1857, %v1857
  %v1918 = vmul.f32 %v1858, %v1858
  %v1919 = vmul.f32 %v1859, %v1859
  %v1920 = vmul.f32 %v1860, %v1860
  %v1921 = vmul.f32 %v1861, %v1861
  %v1922 = vmul.f32 %v1862, %v1862
  %v1923 = vmul.f32 %v1863, %v1863
  %v1924 = vmul.f32 %v1864, %v1864
  %v1925 = vmul.f32 %v1865, %v1865
  %v1926 = vmul.f32 %v1866, %v1866
  %v1927 = vmul.f32 %v1867, %v1867
  %v1928 = vmul.f32 %v1868, %v1868
  %v1929 = vmul.f32 %v1869, %v1869
  %v1930 = vmul.f32 %v1870, %v1870
  %v1931 = vmul.f32 %v1871, %v1871
  %v1932 = vsel %vm1196, %v1916, 0.0
  %v1933 = vsel %vm1196, %v1917, 0.0
  %v1934 = vadd.f32 %v1932, %v1933
  %v1935 = vsel %vm1196, %v1918, 0.0
  %v1936 = vadd.f32 %v1934, %v1935
  %v1937 = vsel %vm1196, %v1919, 0.0
  %v1938 = vadd.f32 %v1936, %v1937
  %v1939 = vsel %vm1196, %v1920, 0.0
  %v1940 = vadd.f32 %v1938, %v1939
  %v1941 = vsel %vm1196, %v1921, 0.0
  %v1942 = vadd.f32 %v1940, %v1941
  %v1943 = vsel %vm1196, %v1922, 0.0
  %v1944 = vadd.f32 %v1942, %v1943
  %v1945 = vsel %vm1196, %v1923, 0.0
  %v1946 = vadd.f32 %v1944, %v1945
  %v1947 = vrot.slane %v1946, 4
  %v1948 = vadd.f32 %v1946, %v1947
  %v1949 = vrot.slane %v1948, 2
  %v1950 = vadd.f32 %v1948, %v1949
  %v1951 = vrot.slane %v1950, 1
  %v1952 = vadd.f32 %v1950, %v1951
  %v1953 = vsel %vm1196, %v1924, 0.0
  %v1954 = vsel %vm1196, %v1925, 0.0
  %v1955 = vadd.f32 %v1953, %v1954
  %v1956 = vsel %vm1196, %v1926, 0.0
  %v1957 = vadd.f32 %v1955, %v1956
  %v1958 = vsel %vm1196, %v1927, 0.0
  %v1959 = vadd.f32 %v1957, %v1958
  %v1960 = vsel %vm1196, %v1928, 0.0
  %v1961 = vadd.f32 %v1959, %v1960
  %v1962 = vsel %vm1196, %v1929, 0.0
  %v1963 = vadd.f32 %v1961, %v1962
  %v1964 = vsel %vm1196, %v1930, 0.0
  %v1965 = vadd.f32 %v1963, %v1964
  %v1966 = vsel %vm1196, %v1931, 0.0
  %v1967 = vadd.f32 %v1965, %v1966
  %v1968 = vrot.slane %v1967, 4
  %v1969 = vadd.f32 %v1967, %v1968
  %v1970 = vrot.slane %v1969, 2
  %v1971 = vadd.f32 %v1969, %v1970
  %v1972 = vrot.slane %v1971, 1
  %v1973 = vadd.f32 %v1971, %v1972
  %v1974 = vmul.f32 %v1952, 0.015625
  %v1975 = vmul.f32 %v1973, 0.015625
  %v1978 = vsel %vm344, %v1915, %v1914
  %vm1982 = vcmask 1043459
  %v1983 = vsel %vm1982, %v1975, %v1974
  %vm1985 = vcmask 1041408
  %v1986 = vsel %vm1985, %v1978, %v1983
  %v1987 = vlaneseq
  %v1988 = vand.u32 %v1987, 127
  %v1989 = vand.u32 %v1988, 1
  %vm1990 = vcmp.eq.s32.totalorder %v1989, 0
  %vm1991 = vcmask 1048064
  %1992 = vrot.lane.b32.xlu0 %v1986, 64
  %v1993 = vpop.permute.xlu0 %1992
  %v1994 = vsel %vm1991, %v1993, %v1986
  %1995 = vrot.lane.b32.xlu0 %v1994, 64
  %v1996 = vpop.permute.xlu0 %1995
  %v1997 = vsel %vm1991, %v1996, %v1986
  %1999 = vrot.lane.b32.xlu0 %v1997, 127
  %v2000 = vpop.permute.xlu0 %1999
  %2002 = vrot.lane.b32.xlu0 %v1997, 65
  %v2003 = vpop.permute.xlu0 %2002
  %v2005 = vsel %vm1990, %v2000, %v2003
  %v2006 = vadd.f32 %v1986, %v2005
  %v2007 = vmul.f32 %v2006, 0.5
  %v2008 = vmul.f32 %v2007, %v2007
  %v2010 = vrot.slane %v2008, 6
  %v2012 = vsub.f32 %v2007, %v2010
  %v2013 = vmax.f32 %v2012, 0.0
  %v2014 = vadd.f32 %v2013, 1e-06
  %v2015 = vrsqrt.pop %v2014
  %v2016 = vlaneseq
  %v2017 = vshrl.u32 %v2016, 7
  %v2018 = vsub.s32 2, %v2017
  %v2019 = vrot.slane %v213, %v2018
  %v2020 = vmul.f32 %v2015, %v2019
  %v2022 = vrot.slane %v2020, 2
  %v2024 = vmul.f32 %v2007, %v2022
  %v2025 = vlaneseq
  %v2026 = vshrl.u32 %v2025, 7
  %v2027 = vsub.s32 3, %v2026
  %v2028 = vrot.slane %v213, %v2027
  %v2029 = vsub.f32 %v2028, %v2024
  %v2031 = vunpack.c.l.s4 1966171168
  %v2032 = vunpack.c.0.s8 %v2031
  %v2033 = vlaneseq
  %v2034 = vshrl.u32 %v2033, 7
  %v2035 = vsub.s32 %v2032, %v2034
  %v2036 = vrot.slane %v2020, %v2035
  %v2037 = vcombine.high %v2036, %v2036
  %v2039 = vunpack.c.l.s4 1966171168
  %v2040 = vunpack.c.0.s8 %v2039
  %v2041 = vlaneseq
  %v2042 = vshrl.u32 %v2041, 7
  %v2043 = vsub.s32 %v2040, %v2042
  %v2044 = vrot.slane %v2036, %v2043
  %v2046 = vunpack.c.l.s4 1966171168
  %v2047 = vunpack.c.0.s8 %v2046
  %v2048 = vlaneseq
  %v2049 = vshrl.u32 %v2048, 7
  %v2050 = vsub.s32 %v2047, %v2049
  %v2051 = vrot.slane %v2037, %v2050
  %v2052 = vcombine.high %v2044, %v2044
  %v2053 = vcombine.high %v2051, %v2051
  %v2054 = vlaneseq
  %v2055 = vshrl.u32 %v2054, 7
  %v2056 = vsub.s32 0, %v2055
  %v2057 = vrot.slane %v2052, %v2056
  %v2058 = vlaneseq
  %v2059 = vshrl.u32 %v2058, 7
  %v2060 = vsub.s32 0, %v2059
  %v2061 = vrot.slane %v2053, %v2060
  %v2064 = vmul.f32 %v1856, %v2057
  %v2065 = vmul.f32 %v1857, %v2057
  %v2066 = vmul.f32 %v1858, %v2057
  %v2067 = vmul.f32 %v1859, %v2057
  %v2068 = vmul.f32 %v1860, %v2057
  %v2069 = vmul.f32 %v1861, %v2057
  %v2070 = vmul.f32 %v1862, %v2057
  %v2071 = vmul.f32 %v1863, %v2057
  %v2072 = vmul.f32 %v1864, %v2061
  %v2073 = vmul.f32 %v1865, %v2061
  %v2074 = vmul.f32 %v1866, %v2061
  %v2075 = vmul.f32 %v1867, %v2061
  %v2076 = vmul.f32 %v1868, %v2061
  %v2077 = vmul.f32 %v1869, %v2061
  %v2078 = vmul.f32 %v1870, %v2061
  %v2079 = vmul.f32 %v1871, %v2061
  %v2082 = vunpack.c.l.s4 1966171168
  %v2083 = vunpack.c.0.s8 %v2082
  %v2084 = vlaneseq
  %v2085 = vshrl.u32 %v2084, 7
  %v2086 = vsub.s32 %v2083, %v2085
  %v2087 = vrot.slane %v2029, %v2086
  %v2088 = vcombine.high %v2087, %v2087
  %v2090 = vunpack.c.l.s4 1966171168
  %v2091 = vunpack.c.0.s8 %v2090
  %v2092 = vlaneseq
  %v2093 = vshrl.u32 %v2092, 7
  %v2094 = vsub.s32 %v2091, %v2093
  %v2095 = vrot.slane %v2087, %v2094
  %v2097 = vunpack.c.l.s4 1966171168
  %v2098 = vunpack.c.0.s8 %v2097
  %v2099 = vlaneseq
  %v2100 = vshrl.u32 %v2099, 7
  %v2101 = vsub.s32 %v2098, %v2100
  %v2102 = vrot.slane %v2088, %v2101
  %v2103 = vlaneseq
  %v2104 = vshrl.u32 %v2103, 7
  %v2105 = vsub.s32 0, %v2104
  %v2106 = vrot.slane %v2095, %v2105
  %v2107 = vlaneseq
  %v2108 = vshrl.u32 %v2107, 7
  %v2109 = vsub.s32 0, %v2108
  %v2110 = vrot.slane %v2102, %v2109
  %v2113 = vadd.f32 %v2064, %v2106
  %v2114 = vadd.f32 %v2065, %v2106
  %v2115 = vadd.f32 %v2066, %v2106
  %v2116 = vadd.f32 %v2067, %v2106
  %v2117 = vadd.f32 %v2068, %v2106
  %v2118 = vadd.f32 %v2069, %v2106
  %v2119 = vadd.f32 %v2070, %v2106
  %v2120 = vadd.f32 %v2071, %v2106
  %v2121 = vadd.f32 %v2072, %v2110
  %v2122 = vadd.f32 %v2073, %v2110
  %v2123 = vadd.f32 %v2074, %v2110
  %v2124 = vadd.f32 %v2075, %v2110
  %v2125 = vadd.f32 %v2076, %v2110
  %v2126 = vadd.f32 %v2077, %v2110
  %v2127 = vadd.f32 %v2078, %v2110
  %v2128 = vadd.f32 %v2079, %v2110
  %v2129 = vmul.f32 %v2113, 0.5
  %v2130 = vmul.f32 %v2114, 0.5
  %v2131 = vmul.f32 %v2115, 0.5
  %v2132 = vmul.f32 %v2116, 0.5
  %v2133 = vmul.f32 %v2117, 0.5
  %v2134 = vmul.f32 %v2118, 0.5
  %v2135 = vmul.f32 %v2119, 0.5
  %v2136 = vmul.f32 %v2120, 0.5
  %v2137 = vmul.f32 %v2121, 0.5
  %v2138 = vmul.f32 %v2122, 0.5
  %v2139 = vmul.f32 %v2123, 0.5
  %v2140 = vmul.f32 %v2124, 0.5
  %v2141 = vmul.f32 %v2125, 0.5
  %v2142 = vmul.f32 %v2126, 0.5
  %v2143 = vmul.f32 %v2127, 0.5
  %v2144 = vmul.f32 %v2128, 0.5
  %v2145 = vtanh.pop %v2129
  %v2146 = vtanh.pop %v2130
  %v2147 = vtanh.pop %v2131
  %v2148 = vtanh.pop %v2132
  %v2149 = vtanh.pop %v2133
  %v2150 = vtanh.pop %v2134
  %v2151 = vtanh.pop %v2135
  %v2152 = vtanh.pop %v2136
  %v2153 = vtanh.pop %v2137
  %v2154 = vtanh.pop %v2138
  %v2155 = vtanh.pop %v2139
  %v2156 = vtanh.pop %v2140
  %v2157 = vtanh.pop %v2141
  %v2158 = vtanh.pop %v2142
  %v2159 = vtanh.pop %v2143
  %v2160 = vtanh.pop %v2144
  %v2161 = vmul.f32 %v2145, 0.5
  %v2162 = vmul.f32 %v2146, 0.5
  %v2163 = vmul.f32 %v2147, 0.5
  %v2164 = vmul.f32 %v2148, 0.5
  %v2165 = vmul.f32 %v2149, 0.5
  %v2166 = vmul.f32 %v2150, 0.5
  %v2167 = vmul.f32 %v2151, 0.5
  %v2168 = vmul.f32 %v2152, 0.5
  %v2169 = vmul.f32 %v2153, 0.5
  %v2170 = vmul.f32 %v2154, 0.5
  %v2171 = vmul.f32 %v2155, 0.5
  %v2172 = vmul.f32 %v2156, 0.5
  %v2173 = vmul.f32 %v2157, 0.5
  %v2174 = vmul.f32 %v2158, 0.5
  %v2175 = vmul.f32 %v2159, 0.5
  %v2176 = vmul.f32 %v2160, 0.5
  %v2177 = vadd.f32 %v2161, 0.5
  %v2178 = vadd.f32 %v2162, 0.5
  %v2179 = vadd.f32 %v2163, 0.5
  %v2180 = vadd.f32 %v2164, 0.5
  %v2181 = vadd.f32 %v2165, 0.5
  %v2182 = vadd.f32 %v2166, 0.5
  %v2183 = vadd.f32 %v2167, 0.5
  %v2184 = vadd.f32 %v2168, 0.5
  %v2185 = vadd.f32 %v2169, 0.5
  %v2186 = vadd.f32 %v2170, 0.5
  %v2187 = vadd.f32 %v2171, 0.5
  %v2188 = vadd.f32 %v2172, 0.5
  %v2189 = vadd.f32 %v2173, 0.5
  %v2190 = vadd.f32 %v2174, 0.5
  %v2191 = vadd.f32 %v2175, 0.5
  %v2192 = vadd.f32 %v2176, 0.5
  %v2193 = vmul.f32 %v2113, %v2177
  %v2194 = vmul.f32 %v2114, %v2178
  %v2195 = vmul.f32 %v2115, %v2179
  %v2196 = vmul.f32 %v2116, %v2180
  %v2197 = vmul.f32 %v2117, %v2181
  %v2198 = vmul.f32 %v2118, %v2182
  %v2199 = vmul.f32 %v2119, %v2183
  %v2200 = vmul.f32 %v2120, %v2184
  %v2201 = vmul.f32 %v2121, %v2185
  %v2202 = vmul.f32 %v2122, %v2186
  %v2203 = vmul.f32 %v2123, %v2187
  %v2204 = vmul.f32 %v2124, %v2188
  %v2205 = vmul.f32 %v2125, %v2189
  %v2206 = vmul.f32 %v2126, %v2190
  %v2207 = vmul.f32 %v2127, %v2191
  %v2208 = vmul.f32 %v2128, %v2192
  %v2209 = vrot.slane %v2193, 7
  %v2210 = vrot.slane %v2194, 7
  %v2211 = vrot.slane %v2195, 7
  %v2212 = vrot.slane %v2196, 7
  %v2213 = vrot.slane %v2197, 7
  %v2214 = vrot.slane %v2198, 7
  %v2215 = vrot.slane %v2199, 7
  %v2216 = vrot.slane %v2200, 7
  %v2217 = vrot.slane %v2201, 7
  %v2218 = vrot.slane %v2202, 7
  %v2219 = vrot.slane %v2203, 7
  %v2220 = vrot.slane %v2204, 7
  %v2221 = vrot.slane %v2205, 7
  %v2222 = vrot.slane %v2206, 7
  %v2223 = vrot.slane %v2207, 7
  %v2224 = vrot.slane %v2208, 7
  %v2225 = vsel %vm554, %v2223, %v2224
  %v2226 = vsel %vm554, %v2222, %v2223
  %v2227 = vsel %vm554, %v2221, %v2222
  %v2228 = vsel %vm554, %v2220, %v2221
  %v2229 = vsel %vm554, %v2219, %v2220
  %v2230 = vsel %vm554, %v2218, %v2219
  %v2231 = vsel %vm554, %v2217, %v2218
  %v2232 = vsel %vm554, %v2216, %v2217
  %v2233 = vsel %vm554, %v2215, %v2216
  %v2234 = vsel %vm554, %v2214, %v2215
  %v2235 = vsel %vm554, %v2213, %v2214
  %v2236 = vsel %vm554, %v2212, %v2213
  %v2237 = vsel %vm554, %v2211, %v2212
  %v2238 = vsel %vm554, %v2210, %v2211
  %v2239 = vsel %vm554, %v2209, %v2210
  %v2240 = vsel %vm554, %v2224, %v2209
  %v2241 = vsel %vm587, %v2225, 0.0
  %v2242 = vsel %vm588, %v2240, 0.0
  %v2243 = vsel %vm589, %v2239, 0.0
  %v2244 = vsel %vm590, %v2238, 0.0
  %v2245 = vsel %vm591, %v2237, 0.0
  %v2246 = vsel %vm592, %v2236, 0.0
  %v2247 = vsel %vm593, %v2235, 0.0
  %v2248 = vsel %vm594, %v2234, 0.0
  %v2249 = vsel %vm595, %v2233, 0.0
  %v2250 = vsel %vm596, %v2232, 0.0
  %v2251 = vsel %vm597, %v2231, 0.0
  %v2252 = vsel %vm598, %v2230, 0.0
  %v2253 = vsel %vm599, %v2229, 0.0
  %v2254 = vsel %vm600, %v2228, 0.0
  %v2255 = vsel %vm601, %v2227, 0.0
  %v2256 = vsel %vm602, %v2226, 0.0
  %v2257 = vsel %vm635, %v2208, 0.0
  %v2258 = vsel %vm636, %v2193, 0.0
  %v2259 = vsel %vm637, %v2194, 0.0
  %v2260 = vsel %vm638, %v2195, 0.0
  %v2261 = vsel %vm639, %v2196, 0.0
  %v2262 = vsel %vm640, %v2197, 0.0
  %v2263 = vsel %vm641, %v2198, 0.0
  %v2264 = vsel %vm642, %v2199, 0.0
  %v2265 = vsel %vm643, %v2200, 0.0
  %v2266 = vsel %vm644, %v2201, 0.0
  %v2267 = vsel %vm645, %v2202, 0.0
  %v2268 = vsel %vm646, %v2203, 0.0
  %v2269 = vsel %vm647, %v2204, 0.0
  %v2270 = vsel %vm648, %v2205, 0.0
  %v2271 = vsel %vm649, %v2206, 0.0
  %v2272 = vsel %vm650, %v2207, 0.0
  %v2273 = vrot.slane %v2193, 1
  %v2274 = vrot.slane %v2194, 1
  %v2275 = vrot.slane %v2195, 1
  %v2276 = vrot.slane %v2196, 1
  %v2277 = vrot.slane %v2197, 1
  %v2278 = vrot.slane %v2198, 1
  %v2279 = vrot.slane %v2199, 1
  %v2280 = vrot.slane %v2200, 1
  %v2281 = vrot.slane %v2201, 1
  %v2282 = vrot.slane %v2202, 1
  %v2283 = vrot.slane %v2203, 1
  %v2284 = vrot.slane %v2204, 1
  %v2285 = vrot.slane %v2205, 1
  %v2286 = vrot.slane %v2206, 1
  %v2287 = vrot.slane %v2207, 1
  %v2288 = vrot.slane %v2208, 1
  %v2289 = vsel %vm683, %v2287, %v2288
  %v2290 = vsel %vm683, %v2286, %v2287
  %v2291 = vsel %vm683, %v2285, %v2286
  %v2292 = vsel %vm683, %v2284, %v2285
  %v2293 = vsel %vm683, %v2283, %v2284
  %v2294 = vsel %vm683, %v2282, %v2283
  %v2295 = vsel %vm683, %v2281, %v2282
  %v2296 = vsel %vm683, %v2280, %v2281
  %v2297 = vsel %vm683, %v2279, %v2280
  %v2298 = vsel %vm683, %v2278, %v2279
  %v2299 = vsel %vm683, %v2277, %v2278
  %v2300 = vsel %vm683, %v2276, %v2277
  %v2301 = vsel %vm683, %v2275, %v2276
  %v2302 = vsel %vm683, %v2274, %v2275
  %v2303 = vsel %vm683, %v2273, %v2274
  %v2304 = vsel %vm683, %v2288, %v2273
  %v2305 = vsel %vm716, %v2304, 0.0
  %v2306 = vsel %vm717, %v2303, 0.0
  %v2307 = vsel %vm718, %v2302, 0.0
  %v2308 = vsel %vm719, %v2301, 0.0
  %v2309 = vsel %vm720, %v2300, 0.0
  %v2310 = vsel %vm721, %v2299, 0.0
  %v2311 = vsel %vm722, %v2298, 0.0
  %v2312 = vsel %vm723, %v2297, 0.0
  %v2313 = vsel %vm724, %v2296, 0.0
  %v2314 = vsel %vm725, %v2295, 0.0
  %v2315 = vsel %vm726, %v2294, 0.0
  %v2316 = vsel %vm727, %v2293, 0.0
  %v2317 = vsel %vm728, %v2292, 0.0
  %v2318 = vsel %vm729, %v2291, 0.0
  %v2319 = vsel %vm730, %v2290, 0.0
  %v2320 = vsel %vm731, %v2289, 0.0
  %v2321 = vsel %vm764, %v2240, 0.0
  %v2322 = vsel %vm765, %v2239, 0.0
  %v2323 = vsel %vm766, %v2238, 0.0
  %v2324 = vsel %vm767, %v2237, 0.0
  %v2325 = vsel %vm768, %v2236, 0.0
  %v2326 = vsel %vm769, %v2235, 0.0
  %v2327 = vsel %vm770, %v2234, 0.0
  %v2328 = vsel %vm771, %v2233, 0.0
  %v2329 = vsel %vm772, %v2232, 0.0
  %v2330 = vsel %vm773, %v2231, 0.0
  %v2331 = vsel %vm774, %v2230, 0.0
  %v2332 = vsel %vm775, %v2229, 0.0
  %v2333 = vsel %vm776, %v2228, 0.0
  %v2334 = vsel %vm777, %v2227, 0.0
  %v2335 = vsel %vm778, %v2226, 0.0
  %v2336 = vsel %vm779, %v2225, 0.0
  %v2337 = vsel %vm812, %v2303, 0.0
  %v2338 = vsel %vm813, %v2302, 0.0
  %v2339 = vsel %vm814, %v2301, 0.0
  %v2340 = vsel %vm815, %v2300, 0.0
  %v2341 = vsel %vm816, %v2299, 0.0
  %v2342 = vsel %vm817, %v2298, 0.0
  %v2343 = vsel %vm818, %v2297, 0.0
  %v2344 = vsel %vm819, %v2296, 0.0
  %v2345 = vsel %vm820, %v2295, 0.0
  %v2346 = vsel %vm821, %v2294, 0.0
  %v2347 = vsel %vm822, %v2293, 0.0
  %v2348 = vsel %vm823, %v2292, 0.0
  %v2349 = vsel %vm824, %v2291, 0.0
  %v2350 = vsel %vm825, %v2290, 0.0
  %v2351 = vsel %vm826, %v2289, 0.0
  %v2352 = vsel %vm827, %v2304, 0.0
  %v2353 = vsel %vm860, %v2239, 0.0
  %v2354 = vsel %vm861, %v2238, 0.0
  %v2355 = vsel %vm862, %v2237, 0.0
  %v2356 = vsel %vm863, %v2236, 0.0
  %v2357 = vsel %vm864, %v2235, 0.0
  %v2358 = vsel %vm865, %v2234, 0.0
  %v2359 = vsel %vm866, %v2233, 0.0
  %v2360 = vsel %vm867, %v2232, 0.0
  %v2361 = vsel %vm868, %v2231, 0.0
  %v2362 = vsel %vm869, %v2230, 0.0
  %v2363 = vsel %vm870, %v2229, 0.0
  %v2364 = vsel %vm871, %v2228, 0.0
  %v2365 = vsel %vm872, %v2227, 0.0
  %v2366 = vsel %vm873, %v2226, 0.0
  %v2367 = vsel %vm874, %v2225, 0.0
  %v2368 = vsel %vm875, %v2240, 0.0
  %v2369 = vsel %vm908, %v2194, 0.0
  %v2370 = vsel %vm909, %v2195, 0.0
  %v2371 = vsel %vm910, %v2196, 0.0
  %v2372 = vsel %vm911, %v2197, 0.0
  %v2373 = vsel %vm912, %v2198, 0.0
  %v2374 = vsel %vm913, %v2199, 0.0
  %v2375 = vsel %vm914, %v2200, 0.0
  %v2376 = vsel %vm915, %v2201, 0.0
  %v2377 = vsel %vm916, %v2202, 0.0
  %v2378 = vsel %vm917, %v2203, 0.0
  %v2379 = vsel %vm918, %v2204, 0.0
  %v2380 = vsel %vm919, %v2205, 0.0
  %v2381 = vsel %vm920, %v2206, 0.0
  %v2382 = vsel %vm921, %v2207, 0.0
  %v2383 = vsel %vm922, %v2208, 0.0
  %v2384 = vsel %vm923, %v2193, 0.0
  %v2385 = vsel %vm956, %v2302, 0.0
  %v2386 = vsel %vm957, %v2301, 0.0
  %v2387 = vsel %vm958, %v2300, 0.0
  %v2388 = vsel %vm959, %v2299, 0.0
  %v2389 = vsel %vm960, %v2298, 0.0
  %v2390 = vsel %vm961, %v2297, 0.0
  %v2391 = vsel %vm962, %v2296, 0.0
  %v2392 = vsel %vm963, %v2295, 0.0
  %v2393 = vsel %vm964, %v2294, 0.0
  %v2394 = vsel %vm965, %v2293, 0.0
  %v2395 = vsel %vm966, %v2292, 0.0
  %v2396 = vsel %vm967, %v2291, 0.0
  %v2397 = vsel %vm968, %v2290, 0.0
  %v2398 = vsel %vm969, %v2289, 0.0
  %v2399 = vsel %vm970, %v2304, 0.0
  %v2400 = vsel %vm971, %v2303, 0.0
  %2417 = vrot.lane.b32.xlu0 %v2257, 64
  %v2418 = vpop.permute.xlu0 %2417
  %2419 = vrot.lane.b32.xlu0 %v2258, 64
  %v2420 = vpop.permute.xlu0 %2419
  %2421 = vrot.lane.b32.xlu0 %v2259, 64
  %v2422 = vpop.permute.xlu0 %2421
  %2423 = vrot.lane.b32.xlu0 %v2260, 64
  %v2424 = vpop.permute.xlu0 %2423
  %2425 = vrot.lane.b32.xlu0 %v2261, 64
  %v2426 = vpop.permute.xlu0 %2425
  %2427 = vrot.lane.b32.xlu0 %v2262, 64
  %v2428 = vpop.permute.xlu0 %2427
  %2429 = vrot.lane.b32.xlu0 %v2263, 64
  %v2430 = vpop.permute.xlu0 %2429
  %2431 = vrot.lane.b32.xlu0 %v2264, 64
  %v2432 = vpop.permute.xlu0 %2431
  %2433 = vrot.lane.b32.xlu0 %v2265, 64
  %v2434 = vpop.permute.xlu0 %2433
  %2435 = vrot.lane.b32.xlu0 %v2266, 64
  %v2436 = vpop.permute.xlu0 %2435
  %2437 = vrot.lane.b32.xlu0 %v2267, 64
  %v2438 = vpop.permute.xlu0 %2437
  %2439 = vrot.lane.b32.xlu0 %v2268, 64
  %v2440 = vpop.permute.xlu0 %2439
  %2441 = vrot.lane.b32.xlu0 %v2269, 64
  %v2442 = vpop.permute.xlu0 %2441
  %2443 = vrot.lane.b32.xlu0 %v2270, 64
  %v2444 = vpop.permute.xlu0 %2443
  %2445 = vrot.lane.b32.xlu0 %v2271, 64
  %v2446 = vpop.permute.xlu0 %2445
  %2447 = vrot.lane.b32.xlu0 %v2272, 64
  %v2448 = vpop.permute.xlu0 %2447
  %2481 = vrot.lane.b32.xlu0 %v2321, 64
  %v2482 = vpop.permute.xlu0 %2481
  %2483 = vrot.lane.b32.xlu0 %v2322, 64
  %v2484 = vpop.permute.xlu0 %2483
  %2485 = vrot.lane.b32.xlu0 %v2323, 64
  %v2486 = vpop.permute.xlu0 %2485
  %2487 = vrot.lane.b32.xlu0 %v2324, 64
  %v2488 = vpop.permute.xlu0 %2487
  %2489 = vrot.lane.b32.xlu0 %v2325, 64
  %v2490 = vpop.permute.xlu0 %2489
  %2491 = vrot.lane.b32.xlu0 %v2326, 64
  %v2492 = vpop.permute.xlu0 %2491
  %2493 = vrot.lane.b32.xlu0 %v2327, 64
  %v2494 = vpop.permute.xlu0 %2493
  %2495 = vrot.lane.b32.xlu0 %v2328, 64
  %v2496 = vpop.permute.xlu0 %2495
  %2497 = vrot.lane.b32.xlu0 %v2329, 64
  %v2498 = vpop.permute.xlu0 %2497
  %2499 = vrot.lane.b32.xlu0 %v2330, 64
  %v2500 = vpop.permute.xlu0 %2499
  %2501 = vrot.lane.b32.xlu0 %v2331, 64
  %v2502 = vpop.permute.xlu0 %2501
  %2503 = vrot.lane.b32.xlu0 %v2332, 64
  %v2504 = vpop.permute.xlu0 %2503
  %2505 = vrot.lane.b32.xlu0 %v2333, 64
  %v2506 = vpop.permute.xlu0 %2505
  %2507 = vrot.lane.b32.xlu0 %v2334, 64
  %v2508 = vpop.permute.xlu0 %2507
  %2509 = vrot.lane.b32.xlu0 %v2335, 64
  %v2510 = vpop.permute.xlu0 %2509
  %2511 = vrot.lane.b32.xlu0 %v2336, 64
  %v2512 = vpop.permute.xlu0 %2511
  %v2529 = vsel %vm1196, %v2241, %v2418
  %v2530 = vsel %vm1196, %v2242, %v2420
  %v2531 = vsel %vm1196, %v2243, %v2422
  %v2532 = vsel %vm1196, %v2244, %v2424
  %v2533 = vsel %vm1196, %v2245, %v2426
  %v2534 = vsel %vm1196, %v2246, %v2428
  %v2535 = vsel %vm1196, %v2247, %v2430
  %v2536 = vsel %vm1196, %v2248, %v2432
  %v2537 = vsel %vm1196, %v2249, %v2434
  %v2538 = vsel %vm1196, %v2250, %v2436
  %v2539 = vsel %vm1196, %v2251, %v2438
  %v2540 = vsel %vm1196, %v2252, %v2440
  %v2541 = vsel %vm1196, %v2253, %v2442
  %v2542 = vsel %vm1196, %v2254, %v2444
  %v2543 = vsel %vm1196, %v2255, %v2446
  %v2544 = vsel %vm1196, %v2256, %v2448
  %v2545 = vsel %vm1196, %v2305, %v2482
  %v2546 = vsel %vm1196, %v2306, %v2484
  %v2547 = vsel %vm1196, %v2307, %v2486
  %v2548 = vsel %vm1196, %v2308, %v2488
  %v2549 = vsel %vm1196, %v2309, %v2490
  %v2550 = vsel %vm1196, %v2310, %v2492
  %v2551 = vsel %vm1196, %v2311, %v2494
  %v2552 = vsel %vm1196, %v2312, %v2496
  %v2553 = vsel %vm1196, %v2313, %v2498
  %v2554 = vsel %vm1196, %v2314, %v2500
  %v2555 = vsel %vm1196, %v2315, %v2502
  %v2556 = vsel %vm1196, %v2316, %v2504
  %v2557 = vsel %vm1196, %v2317, %v2506
  %v2558 = vsel %vm1196, %v2318, %v2508
  %v2559 = vsel %vm1196, %v2319, %v2510
  %v2560 = vsel %vm1196, %v2320, %v2512
  %2577 = vrot.lane.b32.xlu0 %v2353, 64
  %v2578 = vpop.permute.xlu0 %2577
  %2579 = vrot.lane.b32.xlu0 %v2354, 64
  %v2580 = vpop.permute.xlu0 %2579
  %2581 = vrot.lane.b32.xlu0 %v2355, 64
  %v2582 = vpop.permute.xlu0 %2581
  %2583 = vrot.lane.b32.xlu0 %v2356, 64
  %v2584 = vpop.permute.xlu0 %2583
  %2585 = vrot.lane.b32.xlu0 %v2357, 64
  %v2586 = vpop.permute.xlu0 %2585
  %2587 = vrot.lane.b32.xlu0 %v2358, 64
  %v2588 = vpop.permute.xlu0 %2587
  %2589 = vrot.lane.b32.xlu0 %v2359, 64
  %v2590 = vpop.permute.xlu0 %2589
  %2591 = vrot.lane.b32.xlu0 %v2360, 64
  %v2592 = vpop.permute.xlu0 %2591
  %2593 = vrot.lane.b32.xlu0 %v2361, 64
  %v2594 = vpop.permute.xlu0 %2593
  %2595 = vrot.lane.b32.xlu0 %v2362, 64
  %v2596 = vpop.permute.xlu0 %2595
  %2597 = vrot.lane.b32.xlu0 %v2363, 64
  %v2598 = vpop.permute.xlu0 %2597
  %2599 = vrot.lane.b32.xlu0 %v2364, 64
  %v2600 = vpop.permute.xlu0 %2599
  %2601 = vrot.lane.b32.xlu0 %v2365, 64
  %v2602 = vpop.permute.xlu0 %2601
  %2603 = vrot.lane.b32.xlu0 %v2366, 64
  %v2604 = vpop.permute.xlu0 %2603
  %2605 = vrot.lane.b32.xlu0 %v2367, 64
  %v2606 = vpop.permute.xlu0 %2605
  %2607 = vrot.lane.b32.xlu0 %v2368, 64
  %v2608 = vpop.permute.xlu0 %2607
  %2641 = vrot.lane.b32.xlu0 %v2385, 64
  %v2642 = vpop.permute.xlu0 %2641
  %2643 = vrot.lane.b32.xlu0 %v2386, 64
  %v2644 = vpop.permute.xlu0 %2643
  %2645 = vrot.lane.b32.xlu0 %v2387, 64
  %v2646 = vpop.permute.xlu0 %2645
  %2647 = vrot.lane.b32.xlu0 %v2388, 64
  %v2648 = vpop.permute.xlu0 %2647
  %2649 = vrot.lane.b32.xlu0 %v2389, 64
  %v2650 = vpop.permute.xlu0 %2649
  %2651 = vrot.lane.b32.xlu0 %v2390, 64
  %v2652 = vpop.permute.xlu0 %2651
  %2653 = vrot.lane.b32.xlu0 %v2391, 64
  %v2654 = vpop.permute.xlu0 %2653
  %2655 = vrot.lane.b32.xlu0 %v2392, 64
  %v2656 = vpop.permute.xlu0 %2655
  %2657 = vrot.lane.b32.xlu0 %v2393, 64
  %v2658 = vpop.permute.xlu0 %2657
  %2659 = vrot.lane.b32.xlu0 %v2394, 64
  %v2660 = vpop.permute.xlu0 %2659
  %2661 = vrot.lane.b32.xlu0 %v2395, 64
  %v2662 = vpop.permute.xlu0 %2661
  %2663 = vrot.lane.b32.xlu0 %v2396, 64
  %v2664 = vpop.permute.xlu0 %2663
  %2665 = vrot.lane.b32.xlu0 %v2397, 64
  %v2666 = vpop.permute.xlu0 %2665
  %2667 = vrot.lane.b32.xlu0 %v2398, 64
  %v2668 = vpop.permute.xlu0 %2667
  %2669 = vrot.lane.b32.xlu0 %v2399, 64
  %v2670 = vpop.permute.xlu0 %2669
  %2671 = vrot.lane.b32.xlu0 %v2400, 64
  %v2672 = vpop.permute.xlu0 %2671
  %v2689 = vsel %vm1196, %v2337, %v2578
  %v2690 = vsel %vm1196, %v2338, %v2580
  %v2691 = vsel %vm1196, %v2339, %v2582
  %v2692 = vsel %vm1196, %v2340, %v2584
  %v2693 = vsel %vm1196, %v2341, %v2586
  %v2694 = vsel %vm1196, %v2342, %v2588
  %v2695 = vsel %vm1196, %v2343, %v2590
  %v2696 = vsel %vm1196, %v2344, %v2592
  %v2697 = vsel %vm1196, %v2345, %v2594
  %v2698 = vsel %vm1196, %v2346, %v2596
  %v2699 = vsel %vm1196, %v2347, %v2598
  %v2700 = vsel %vm1196, %v2348, %v2600
  %v2701 = vsel %vm1196, %v2349, %v2602
  %v2702 = vsel %vm1196, %v2350, %v2604
  %v2703 = vsel %vm1196, %v2351, %v2606
  %v2704 = vsel %vm1196, %v2352, %v2608
  %v2705 = vsel %vm1196, %v2369, %v2642
  %v2706 = vsel %vm1196, %v2370, %v2644
  %v2707 = vsel %vm1196, %v2371, %v2646
  %v2708 = vsel %vm1196, %v2372, %v2648
  %v2709 = vsel %vm1196, %v2373, %v2650
  %v2710 = vsel %vm1196, %v2374, %v2652
  %v2711 = vsel %vm1196, %v2375, %v2654
  %v2712 = vsel %vm1196, %v2376, %v2656
  %v2713 = vsel %vm1196, %v2377, %v2658
  %v2714 = vsel %vm1196, %v2378, %v2660
  %v2715 = vsel %vm1196, %v2379, %v2662
  %v2716 = vsel %vm1196, %v2380, %v2664
  %v2717 = vsel %vm1196, %v2381, %v2666
  %v2718 = vsel %vm1196, %v2382, %v2668
  %v2719 = vsel %vm1196, %v2383, %v2670
  %v2720 = vsel %vm1196, %v2384, %v2672
  %v2721 = vld [vmem:[%s4] sm:$0xff]
  %v2722 = vld [vmem:[%s4 + $0x8] sm:$0xff]
  %v2723 = vld [vmem:[%s4 + $0x10] sm:$0xff]
  %v2724 = vld [vmem:[%s4 + $0x18] sm:$0xff]
  %v2725 = vld [vmem:[%s4 + $0x20] sm:$0xff]
  %v2726 = vld [vmem:[%s4 + $0x28] sm:$0xff]
  %v2727 = vld [vmem:[%s4 + $0x30] sm:$0xff]
  %v2728 = vld [vmem:[%s4 + $0x38] sm:$0xff]
  %v2729 = vld [vmem:[%s4 + $0x40] sm:$0xff]
  %v2730 = vld [vmem:[%s4 + $0x48] sm:$0xff]
  %v2731 = vld [vmem:[%s4 + $0x50] sm:$0xff]
  %v2732 = vld [vmem:[%s4 + $0x58] sm:$0xff]
  %v2733 = vld [vmem:[%s4 + $0x60] sm:$0xff]
  %v2734 = vld [vmem:[%s4 + $0x68] sm:$0xff]
  %v2735 = vld [vmem:[%s4 + $0x70] sm:$0xff]
  %v2736 = vld [vmem:[%s4 + $0x78] sm:$0xff]
  %v2737 = vld [vmem:[%s4 + $0x80] sm:$0xff]
  %v2738 = vld [vmem:[%s4 + $0x88] sm:$0xff]
  %v2739 = vld [vmem:[%s4 + $0x90] sm:$0xff]
  %v2740 = vld [vmem:[%s4 + $0x98] sm:$0xff]
  %v2741 = vld [vmem:[%s4 + $0xa0] sm:$0xff]
  %v2742 = vld [vmem:[%s4 + $0xa8] sm:$0xff]
  %v2743 = vld [vmem:[%s4 + $0xb0] sm:$0xff]
  %v2744 = vld [vmem:[%s4 + $0xb8] sm:$0xff]
  %v2745 = vld [vmem:[%s4 + $0xc0] sm:$0xff]
  %v2746 = vld [vmem:[%s4 + $0xc8] sm:$0xff]
  %v2747 = vld [vmem:[%s4 + $0xd0] sm:$0xff]
  %v2748 = vld [vmem:[%s4 + $0xd8] sm:$0xff]
  %v2749 = vld [vmem:[%s4 + $0xe0] sm:$0xff]
  %v2750 = vld [vmem:[%s4 + $0xe8] sm:$0xff]
  %v2751 = vld [vmem:[%s4 + $0xf0] sm:$0xff]
  %v2752 = vld [vmem:[%s4 + $0xf8] sm:$0xff]
  %v2753 = vld [vmem:[%s4 + $0x100] sm:$0xff]
  %v2754 = vld [vmem:[%s4 + $0x108] sm:$0xff]
  %v2755 = vld [vmem:[%s4 + $0x110] sm:$0xff]
  %v2756 = vld [vmem:[%s4 + $0x118] sm:$0xff]
  %v2757 = vld [vmem:[%s4 + $0x120] sm:$0xff]
  %v2758 = vld [vmem:[%s4 + $0x128] sm:$0xff]
  %v2759 = vld [vmem:[%s4 + $0x130] sm:$0xff]
  %v2760 = vld [vmem:[%s4 + $0x138] sm:$0xff]
  %v2761 = vld [vmem:[%s4 + $0x140] sm:$0xff]
  %v2762 = vld [vmem:[%s4 + $0x148] sm:$0xff]
  %v2763 = vld [vmem:[%s4 + $0x150] sm:$0xff]
  %v2764 = vld [vmem:[%s4 + $0x158] sm:$0xff]
  %v2765 = vld [vmem:[%s4 + $0x160] sm:$0xff]
  %v2766 = vld [vmem:[%s4 + $0x168] sm:$0xff]
  %v2767 = vld [vmem:[%s4 + $0x170] sm:$0xff]
  %v2768 = vld [vmem:[%s4 + $0x178] sm:$0xff]
  %v2769 = vld [vmem:[%s4 + $0x180] sm:$0xff]
  %v2770 = vld [vmem:[%s4 + $0x188] sm:$0xff]
  %v2771 = vld [vmem:[%s4 + $0x190] sm:$0xff]
  %v2772 = vld [vmem:[%s4 + $0x198] sm:$0xff]
  %v2773 = vld [vmem:[%s4 + $0x1a0] sm:$0xff]
  %v2774 = vld [vmem:[%s4 + $0x1a8] sm:$0xff]
  %v2775 = vld [vmem:[%s4 + $0x1b0] sm:$0xff]
  %v2776 = vld [vmem:[%s4 + $0x1b8] sm:$0xff]
  %v2777 = vld [vmem:[%s4 + $0x1c0] sm:$0xff]
  %v2778 = vld [vmem:[%s4 + $0x1c8] sm:$0xff]
  %v2779 = vld [vmem:[%s4 + $0x1d0] sm:$0xff]
  %v2780 = vld [vmem:[%s4 + $0x1d8] sm:$0xff]
  %v2781 = vld [vmem:[%s4 + $0x1e0] sm:$0xff]
  %v2782 = vld [vmem:[%s4 + $0x1e8] sm:$0xff]
  %v2783 = vld [vmem:[%s4 + $0x1f0] sm:$0xff]
  %v2784 = vld [vmem:[%s4 + $0x1f8] sm:$0xff]
  %v2785 = vld [vmem:[%s4 + $0x200] sm:$0xff]
  %v2786 = vld [vmem:[%s4 + $0x208] sm:$0xff]
  %v2787 = vld [vmem:[%s4 + $0x210] sm:$0xff]
  %v2788 = vld [vmem:[%s4 + $0x218] sm:$0xff]
  %v2789 = vld [vmem:[%s4 + $0x220] sm:$0xff]
  %v2790 = vld [vmem:[%s4 + $0x228] sm:$0xff]
  %v2791 = vld [vmem:[%s4 + $0x230] sm:$0xff]
  %v2792 = vld [vmem:[%s4 + $0x238] sm:$0xff]
  %v2793 = vld [vmem:[%s4 + $0x240] sm:$0xff]
  %v2794 = vld [vmem:[%s4 + $0x248] sm:$0xff]
  %v2795 = vld [vmem:[%s4 + $0x250] sm:$0xff]
  %v2796 = vld [vmem:[%s4 + $0x258] sm:$0xff]
  %v2798 = vsel %vm214, %v20, 0
  %v2801 = vsel %vm214, %v21, 0
  %v2804 = vsel %vm214, %v22, 0
  %v2807 = vsel %vm214, %v23, 0
  %v2810 = vsel %vm214, %v24, 0
  %v2813 = vsel %vm214, %v25, 0
  %v2816 = vsel %vm214, %v26, 0
  %v2819 = vsel %vm214, %v27, 0
  %v2822 = vsel %vm214, %v28, 0
  %v2825 = vsel %vm214, %v29, 0
  %v2828 = vsel %vm214, %v30, 0
  %v2831 = vsel %vm214, %v31, 0
  %v2834 = vsel %vm214, %v32, 0
  %v2837 = vsel %vm214, %v33, 0
  %v2840 = vsel %vm214, %v34, 0
  %v2843 = vsel %vm214, %v35, 0
  %2845 = vmatprep.subr.mxu0 0.0
  %2846 = vmatpush1.msra.mxu0 %v2761
  %2847 = vmatprep.subr.mxu0 0.0
  %2848 = vmatpush1.msra.mxu0 %v2762
  %2849 = vmatprep.subr.mxu0 0.0
  %2850 = vmatpush1.msra.mxu0 %v2763
  %2851 = vmatprep.subr.mxu0 0.0
  %2852 = vmatpush1.msra.mxu0 %v2764
  %2853 = vmatprep.subr.mxu0 0.0
  %2854 = vmatpush1.msra.mxu0 %v2765
  %2855 = vmatprep.subr.mxu0 0.0
  %2856 = vmatpush1.msra.mxu0 %v2766
  %2857 = vmatprep.subr.mxu0 0.0
  %2858 = vmatpush1.msra.mxu0 %v2767
  %2859 = vmatprep.subr.mxu0 0.0
  %2860 = vmatpush1.msra.mxu0 %v2768
  %2861 = vmatprep.subr.mxu0 0.0
  %2862 = vmatpush1.msra.mxu0 %v2769
  %2863 = vmatprep.subr.mxu0 0.0
  %2864 = vmatpush1.msra.mxu0 %v2770
  %2865 = vmatprep.subr.mxu0 0.0
  %2866 = vmatpush1.msra.mxu0 %v2771
  %2867 = vmatprep.subr.mxu0 0.0
  %2868 = vmatpush1.msra.mxu0 %v2772
  %2869 = vmatprep.subr.mxu0 0.0
  %2870 = vmatpush1.msra.mxu0 %v2773
  %2871 = vmatprep.subr.mxu0 0.0
  %2872 = vmatpush1.msra.mxu0 %v2774
  %2873 = vmatprep.subr.mxu0 0.0
  %2874 = vmatpush1.msra.mxu0 %v2775
  %2875 = vmatprep.subr.mxu0 0.0
  %2876 = vmatpush1.msra.mxu0 %v2776
  %2877 = vmatprep.subr.mxu0 0.0
  %2878 = vmatpush1.msra.mxu0 %v2777
  %2879 = vmatprep.subr.mxu0 0.0
  %2880 = vmatpush1.msra.mxu0 %v2778
  %2881 = vmatprep.subr.mxu0 0.0
  %2882 = vmatpush1.msra.mxu0 %v2779
  %2883 = vmatprep.subr.mxu0 0.0
  %2884 = vmatpush1.msra.mxu0 %v2780
  %2885 = vmatprep.subr.mxu0 0.0
  %2886 = vmatpush1.msra.mxu0 %v2781
  %2887 = vmatprep.subr.mxu0 0.0
  %2888 = vmatpush1.msra.mxu0 %v2782
  %2889 = vmatprep.subr.mxu0 0.0
  %2890 = vmatpush1.msra.mxu0 %v2783
  %2891 = vmatprep.subr.mxu0 0.0
  %2892 = vmatpush1.msra.mxu0 %v2784
  %2893 = vmatprep.subr.mxu0 0.0
  %2894 = vmatpush1.msra.mxu0 %v2785
  %2895 = vmatprep.subr.mxu0 0.0
  %2896 = vmatpush1.msra.mxu0 %v2786
  %2897 = vmatprep.subr.mxu0 0.0
  %2898 = vmatpush1.msra.mxu0 %v2787
  %2899 = vmatprep.subr.mxu0 0.0
  %2900 = vmatpush1.msra.mxu0 %v2788
  %2901 = vmatprep.subr.mxu0 0.0
  %2902 = vmatpush1.msra.mxu0 %v2789
  %2903 = vmatprep.subr.mxu0 0.0
  %2904 = vmatpush1.msra.mxu0 %v2790
  %2905 = vmatprep.subr.mxu0 0.0
  %2906 = vmatpush1.msra.mxu0 %v2791
  %2907 = vmatprep.subr.mxu0 0.0
  %2908 = vmatpush1.msra.mxu0 %v2792
  %2909 = vmatprep.mubr.f32.mxu0 %v2705
  %2910 = vmatmul.mubr.f32.gmra.mrb[0].mxu0 %v2689
  %v2911 = vpop.f32.mrb[0].mxu0
  %v2912 = vadd.f32 0.0, %v2911
  %v2913 = vpop.f32.mrb[0].mxu0
  %2914 = vmatprep.mubr.f32.mxu0 %v2706
  %2915 = vmatmul.mubr.f32.gmra.mrb[0].mxu0 %v2690
  %v2916 = vpop.f32.mrb[0].mxu0
  %v2917 = vadd.f32 0.0, %v2916
  %v2918 = vpop.f32.mrb[0].mxu0
  %2919 = vmatprep.mubr.f32.mxu0 %v2707
  %2920 = vmatmul.mubr.f32.gmra.mrb[0].mxu0 %v2691
  %v2921 = vpop.f32.mrb[0].mxu0
  %v2922 = vadd.f32 0.0, %v2921
  %v2923 = vpop.f32.mrb[0].mxu0
  %2924 = vmatprep.mubr.f32.mxu0 %v2708
  %2925 = vmatmul.mubr.f32.gmra.mrb[0].mxu0 %v2692
  %v2926 = vpop.f32.mrb[0].mxu0
  %v2927 = vadd.f32 0.0, %v2926
  %v2928 = vpop.f32.mrb[0].mxu0
  %2929 = vmatprep.mubr.f32.mxu0 %v2709
  %2930 = vmatmul.mubr.f32.gmra.mrb[0].mxu0 %v2693
  %v2931 = vpop.f32.mrb[0].mxu0
  %v2932 = vadd.f32 0.0, %v2931
  %v2933 = vpop.f32.mrb[0].mxu0
  %2934 = vmatprep.mubr.f32.mxu0 %v2710
  %2935 = vmatmul.mubr.f32.gmra.mrb[0].mxu0 %v2694
  %v2936 = vpop.f32.mrb[0].mxu0
  %v2937 = vadd.f32 0.0, %v2936
  %v2938 = vpop.f32.mrb[0].mxu0
  %2939 = vmatprep.mubr.f32.mxu0 %v2711
  %2940 = vmatmul.mubr.f32.gmra.mrb[0].mxu0 %v2695
  %v2941 = vpop.f32.mrb[0].mxu0
  %v2942 = vadd.f32 0.0, %v2941
  %v2943 = vpop.f32.mrb[0].mxu0
  %2944 = vmatprep.mubr.f32.mxu0 %v2712
  %2945 = vmatmul.mubr.f32.gmra.mrb[0].mxu0 %v2696
  %v2946 = vpop.f32.mrb[0].mxu0
  %v2947 = vadd.f32 0.0, %v2946
  %v2948 = vpop.f32.mrb[0].mxu0
  %2949 = vmatprep.mubr.f32.mxu0 %v2713
  %2950 = vmatmul.mubr.f32.gmra.mrb[0].mxu0 %v2697
  %v2951 = vpop.f32.mrb[0].mxu0
  %v2952 = vadd.f32 0.0, %v2951
  %v2953 = vpop.f32.mrb[0].mxu0
  %2954 = vmatprep.mubr.f32.mxu0 %v2714
  %2955 = vmatmul.mubr.f32.gmra.mrb[0].mxu0 %v2698
  %v2956 = vpop.f32.mrb[0].mxu0
  %v2957 = vadd.f32 0.0, %v2956
  %v2958 = vpop.f32.mrb[0].mxu0
  %2959 = vmatprep.mubr.f32.mxu0 %v2715
  %2960 = vmatmul.mubr.f32.gmra.mrb[0].mxu0 %v2699
  %v2961 = vpop.f32.mrb[0].mxu0
  %v2962 = vadd.f32 0.0, %v2961
  %v2963 = vpop.f32.mrb[0].mxu0
  %2964 = vmatprep.mubr.f32.mxu0 %v2716
  %2965 = vmatmul.mubr.f32.gmra.mrb[0].mxu0 %v2700
  %v2966 = vpop.f32.mrb[0].mxu0
  %v2967 = vadd.f32 0.0, %v2966
  %v2968 = vpop.f32.mrb[0].mxu0
  %2969 = vmatprep.mubr.f32.mxu0 %v2717
  %2970 = vmatmul.mubr.f32.gmra.mrb[0].mxu0 %v2701
  %v2971 = vpop.f32.mrb[0].mxu0
  %v2972 = vadd.f32 0.0, %v2971
  %v2973 = vpop.f32.mrb[0].mxu0
  %2974 = vmatprep.mubr.f32.mxu0 %v2718
  %2975 = vmatmul.mubr.f32.gmra.mrb[0].mxu0 %v2702
  %v2976 = vpop.f32.mrb[0].mxu0
  %v2977 = vadd.f32 0.0, %v2976
  %v2978 = vpop.f32.mrb[0].mxu0
  %2979 = vmatprep.mubr.f32.mxu0 %v2719
  %2980 = vmatmul.mubr.f32.gmra.mrb[0].mxu0 %v2703
  %v2981 = vpop.f32.mrb[0].mxu0
  %v2982 = vadd.f32 0.0, %v2981
  %v2983 = vpop.f32.mrb[0].mxu0
  %2984 = vmatprep.mubr.f32.mxu0 %v2720
  %2985 = vmatmul.mubr.f32.gmra.mrb[0].mxu0 %v2704
  %v2986 = vpop.f32.mrb[0].mxu0
  %v2987 = vadd.f32 0.0, %v2986
  %v2988 = vpop.f32.mrb[0].mxu0
  %2989 = vdwg.mxu0
  %2990 = vmatprep.subr.mxu0 0.0
  %2991 = vmatpush1.msra.mxu0 %v2793
  %2992 = vmatprep.subr.mxu0 0.0
  %2993 = vmatpush1.msra.mxu0 %v2794
  %2994 = vmatprep.subr.mxu0 0.0
  %2995 = vmatpush1.msra.mxu0 %v2795
  %2996 = vmatprep.subr.mxu0 0.0
  %2997 = vmatpush1.msra.mxu0 %v2796
  %2998 = vmatprep.subr.mxu0 0.0
  %2999 = vmatpush1.msra.mxu0 0.0
  %3000 = vmatprep.subr.mxu0 0.0
  %3001 = vmatpush1.msra.mxu0 0.0
  %3002 = vmatprep.subr.mxu0 0.0
  %3003 = vmatpush1.msra.mxu0 0.0
  %3004 = vmatprep.subr.mxu0 0.0
  %3005 = vmatpush1.msra.mxu0 0.0
  %3006 = vmatprep.subr.mxu0 0.0
  %3007 = vmatpush1.msra.mxu0 0.0
  %3008 = vmatprep.subr.mxu0 0.0
  %3009 = vmatpush1.msra.mxu0 0.0
  %3010 = vmatprep.subr.mxu0 0.0
  %3011 = vmatpush1.msra.mxu0 0.0
  %3012 = vmatprep.subr.mxu0 0.0
  %3013 = vmatpush1.msra.mxu0 0.0
  %3014 = vmatprep.subr.mxu0 0.0
  %3015 = vmatpush1.msra.mxu0 0.0
  %3016 = vmatprep.subr.mxu0 0.0
  %3017 = vmatpush1.msra.mxu0 0.0
  %3018 = vmatprep.subr.mxu0 0.0
  %3019 = vmatpush1.msra.mxu0 0.0
  %3020 = vmatprep.subr.mxu0 0.0
  %3021 = vmatpush1.msra.mxu0 0.0
  %3022 = vmatprep.subr.mxu0 0.0
  %3023 = vmatpush1.msra.mxu0 0.0
  %3024 = vmatprep.subr.mxu0 0.0
  %3025 = vmatpush1.msra.mxu0 0.0
  %3026 = vmatprep.subr.mxu0 0.0
  %3027 = vmatpush1.msra.mxu0 0.0
  %3028 = vmatprep.subr.mxu0 0.0
  %3029 = vmatpush1.msra.mxu0 0.0
  %3030 = vmatprep.subr.mxu0 0.0
  %3031 = vmatpush1.msra.mxu0 0.0
  %3032 = vmatprep.subr.mxu0 0.0
  %3033 = vmatpush1.msra.mxu0 0.0
  %3034 = vmatprep.subr.mxu0 0.0
  %3035 = vmatpush1.msra.mxu0 0.0
  %3036 = vmatprep.subr.mxu0 0.0
  %3037 = vmatpush1.msra.mxu0 0.0
  %3038 = vmatprep.subr.mxu0 0.0
  %3039 = vmatpush1.msra.mxu0 0.0
  %3040 = vmatprep.subr.mxu0 0.0
  %3041 = vmatpush1.msra.mxu0 0.0
  %3042 = vmatprep.subr.mxu0 0.0
  %3043 = vmatpush1.msra.mxu0 0.0
  %3044 = vmatprep.subr.mxu0 0.0
  %3045 = vmatpush1.msra.mxu0 0.0
  %3046 = vmatprep.subr.mxu0 0.0
  %3047 = vmatpush1.msra.mxu0 0.0
  %3048 = vmatprep.subr.mxu0 0.0
  %3049 = vmatpush1.msra.mxu0 0.0
  %3050 = vmatprep.subr.mxu0 0.0
  %3051 = vmatpush1.msra.mxu0 0.0
  %3052 = vmatprep.subr.mxu0 0.0
  %3053 = vmatpush1.msra.mxu0 0.0
  %3054 = vmatprep.mubr.f32.mxu0 0.0
  %3055 = vmatmul.mubr.f32.gmra.mrb[0].mxu0 %v2798
  %v3056 = vpop.f32.mrb[0].mxu0
  %v3057 = vadd.f32 %v2912, %v3056
  %v3058 = vpop.f32.mrb[0].mxu0
  %3059 = vmatprep.mubr.f32.mxu0 0.0
  %3060 = vmatmul.mubr.f32.gmra.mrb[0].mxu0 %v2801
  %v3061 = vpop.f32.mrb[0].mxu0
  %v3062 = vadd.f32 %v2917, %v3061
  %v3063 = vpop.f32.mrb[0].mxu0
  %3064 = vmatprep.mubr.f32.mxu0 0.0
  %3065 = vmatmul.mubr.f32.gmra.mrb[0].mxu0 %v2804
  %v3066 = vpop.f32.mrb[0].mxu0
  %v3067 = vadd.f32 %v2922, %v3066
  %v3068 = vpop.f32.mrb[0].mxu0
  %3069 = vmatprep.mubr.f32.mxu0 0.0
  %3070 = vmatmul.mubr.f32.gmra.mrb[0].mxu0 %v2807
  %v3071 = vpop.f32.mrb[0].mxu0
  %v3072 = vadd.f32 %v2927, %v3071
  %v3073 = vpop.f32.mrb[0].mxu0
  %3074 = vmatprep.mubr.f32.mxu0 0.0
  %3075 = vmatmul.mubr.f32.gmra.mrb[0].mxu0 %v2810
  %v3076 = vpop.f32.mrb[0].mxu0
  %v3077 = vadd.f32 %v2932, %v3076
  %v3078 = vpop.f32.mrb[0].mxu0
  %3079 = vmatprep.mubr.f32.mxu0 0.0
  %3080 = vmatmul.mubr.f32.gmra.mrb[0].mxu0 %v2813
  %v3081 = vpop.f32.mrb[0].mxu0
  %v3082 = vadd.f32 %v2937, %v3081
  %v3083 = vpop.f32.mrb[0].mxu0
  %3084 = vmatprep.mubr.f32.mxu0 0.0
  %3085 = vmatmul.mubr.f32.gmra.mrb[0].mxu0 %v2816
  %v3086 = vpop.f32.mrb[0].mxu0
  %v3087 = vadd.f32 %v2942, %v3086
  %v3088 = vpop.f32.mrb[0].mxu0
  %3089 = vmatprep.mubr.f32.mxu0 0.0
  %3090 = vmatmul.mubr.f32.gmra.mrb[0].mxu0 %v2819
  %v3091 = vpop.f32.mrb[0].mxu0
  %v3092 = vadd.f32 %v2947, %v3091
  %v3093 = vpop.f32.mrb[0].mxu0
  %3094 = vmatprep.mubr.f32.mxu0 0.0
  %3095 = vmatmul.mubr.f32.gmra.mrb[0].mxu0 %v2822
  %v3096 = vpop.f32.mrb[0].mxu0
  %v3097 = vadd.f32 %v2952, %v3096
  %v3098 = vpop.f32.mrb[0].mxu0
  %3099 = vmatprep.mubr.f32.mxu0 0.0
  %3100 = vmatmul.mubr.f32.gmra.mrb[0].mxu0 %v2825
  %v3101 = vpop.f32.mrb[0].mxu0
  %v3102 = vadd.f32 %v2957, %v3101
  %v3103 = vpop.f32.mrb[0].mxu0
  %3104 = vmatprep.mubr.f32.mxu0 0.0
  %3105 = vmatmul.mubr.f32.gmra.mrb[0].mxu0 %v2828
  %v3106 = vpop.f32.mrb[0].mxu0
  %v3107 = vadd.f32 %v2962, %v3106
  %v3108 = vpop.f32.mrb[0].mxu0
  %3109 = vmatprep.mubr.f32.mxu0 0.0
  %3110 = vmatmul.mubr.f32.gmra.mrb[0].mxu0 %v2831
  %v3111 = vpop.f32.mrb[0].mxu0
  %v3112 = vadd.f32 %v2967, %v3111
  %v3113 = vpop.f32.mrb[0].mxu0
  %3114 = vmatprep.mubr.f32.mxu0 0.0
  %3115 = vmatmul.mubr.f32.gmra.mrb[0].mxu0 %v2834
  %v3116 = vpop.f32.mrb[0].mxu0
  %v3117 = vadd.f32 %v2972, %v3116
  %v3118 = vpop.f32.mrb[0].mxu0
  %3119 = vmatprep.mubr.f32.mxu0 0.0
  %3120 = vmatmul.mubr.f32.gmra.mrb[0].mxu0 %v2837
  %v3121 = vpop.f32.mrb[0].mxu0
  %v3122 = vadd.f32 %v2977, %v3121
  %v3123 = vpop.f32.mrb[0].mxu0
  %3124 = vmatprep.mubr.f32.mxu0 0.0
  %3125 = vmatmul.mubr.f32.gmra.mrb[0].mxu0 %v2840
  %v3126 = vpop.f32.mrb[0].mxu0
  %v3127 = vadd.f32 %v2982, %v3126
  %v3128 = vpop.f32.mrb[0].mxu0
  %3129 = vmatprep.mubr.f32.mxu0 0.0
  %3130 = vmatmul.mubr.f32.gmra.mrb[0].mxu0 %v2843
  %v3131 = vpop.f32.mrb[0].mxu0
  %v3132 = vadd.f32 %v2987, %v3131
  %v3133 = vpop.f32.mrb[0].mxu0
  %3134 = vdwg.mxu0
  %v3136 = vsel %vm1196, %v2193, 0
  %v3139 = vsel %vm1196, %v2194, 0
  %v3142 = vsel %vm1196, %v2195, 0
  %v3145 = vsel %vm1196, %v2196, 0
  %v3148 = vsel %vm1196, %v2197, 0
  %v3151 = vsel %vm1196, %v2198, 0
  %v3154 = vsel %vm1196, %v2199, 0
  %v3157 = vsel %vm1196, %v2200, 0
  %v3160 = vsel %vm1196, %v2201, 0
  %v3163 = vsel %vm1196, %v2202, 0
  %v3166 = vsel %vm1196, %v2203, 0
  %v3169 = vsel %vm1196, %v2204, 0
  %v3172 = vsel %vm1196, %v2205, 0
  %v3175 = vsel %vm1196, %v2206, 0
  %v3178 = vsel %vm1196, %v2207, 0
  %v3181 = vsel %vm1196, %v2208, 0
  %3183 = vmatprep.subr.mxu0 0.0
  %3184 = vmatpush1.msra.mxu0 %v2721
  %3185 = vmatprep.subr.mxu0 0.0
  %3186 = vmatpush1.msra.mxu0 %v2722
  %3187 = vmatprep.subr.mxu0 0.0
  %3188 = vmatpush1.msra.mxu0 %v2723
  %3189 = vmatprep.subr.mxu0 0.0
  %3190 = vmatpush1.msra.mxu0 %v2724
  %3191 = vmatprep.subr.mxu0 0.0
  %3192 = vmatpush1.msra.mxu0 %v2725
  %3193 = vmatprep.subr.mxu0 0.0
  %3194 = vmatpush1.msra.mxu0 %v2726
  %3195 = vmatprep.subr.mxu0 0.0
  %3196 = vmatpush1.msra.mxu0 %v2727
  %3197 = vmatprep.subr.mxu0 0.0
  %3198 = vmatpush1.msra.mxu0 %v2728
  %3199 = vmatprep.subr.mxu0 0.0
  %3200 = vmatpush1.msra.mxu0 %v2729
  %3201 = vmatprep.subr.mxu0 0.0
  %3202 = vmatpush1.msra.mxu0 %v2730
  %3203 = vmatprep.subr.mxu0 0.0
  %3204 = vmatpush1.msra.mxu0 %v2731
  %3205 = vmatprep.subr.mxu0 0.0
  %3206 = vmatpush1.msra.mxu0 %v2732
  %3207 = vmatprep.subr.mxu0 0.0
  %3208 = vmatpush1.msra.mxu0 %v2733
  %3209 = vmatprep.subr.mxu0 0.0
  %3210 = vmatpush1.msra.mxu0 %v2734
  %3211 = vmatprep.subr.mxu0 0.0
  %3212 = vmatpush1.msra.mxu0 %v2735
  %3213 = vmatprep.subr.mxu0 0.0
  %3214 = vmatpush1.msra.mxu0 %v2736
  %3215 = vmatprep.subr.mxu0 0.0
  %3216 = vmatpush1.msra.mxu0 %v2737
  %3217 = vmatprep.subr.mxu0 0.0
  %3218 = vmatpush1.msra.mxu0 %v2738
  %3219 = vmatprep.subr.mxu0 0.0
  %3220 = vmatpush1.msra.mxu0 %v2739
  %3221 = vmatprep.subr.mxu0 0.0
  %3222 = vmatpush1.msra.mxu0 %v2740
  %3223 = vmatprep.subr.mxu0 0.0
  %3224 = vmatpush1.msra.mxu0 %v2741
  %3225 = vmatprep.subr.mxu0 0.0
  %3226 = vmatpush1.msra.mxu0 %v2742
  %3227 = vmatprep.subr.mxu0 0.0
  %3228 = vmatpush1.msra.mxu0 %v2743
  %3229 = vmatprep.subr.mxu0 0.0
  %3230 = vmatpush1.msra.mxu0 %v2744
  %3231 = vmatprep.subr.mxu0 0.0
  %3232 = vmatpush1.msra.mxu0 %v2745
  %3233 = vmatprep.subr.mxu0 0.0
  %3234 = vmatpush1.msra.mxu0 %v2746
  %3235 = vmatprep.subr.mxu0 0.0
  %3236 = vmatpush1.msra.mxu0 %v2747
  %3237 = vmatprep.subr.mxu0 0.0
  %3238 = vmatpush1.msra.mxu0 %v2748
  %3239 = vmatprep.subr.mxu0 0.0
  %3240 = vmatpush1.msra.mxu0 %v2749
  %3241 = vmatprep.subr.mxu0 0.0
  %3242 = vmatpush1.msra.mxu0 %v2750
  %3243 = vmatprep.subr.mxu0 0.0
  %3244 = vmatpush1.msra.mxu0 %v2751
  %3245 = vmatprep.subr.mxu0 0.0
  %3246 = vmatpush1.msra.mxu0 %v2752
  %3247 = vmatprep.mubr.f32.mxu0 %v2545
  %3248 = vmatmul.mubr.f32.gmra.mrb[0].mxu0 %v2529
  %v3249 = vpop.f32.mrb[0].mxu0
  %v3250 = vadd.f32 %v3057, %v3249
  %v3251 = vpop.f32.mrb[0].mxu0
  %3252 = vmatprep.mubr.f32.mxu0 %v2546
  %3253 = vmatmul.mubr.f32.gmra.mrb[0].mxu0 %v2530
  %v3254 = vpop.f32.mrb[0].mxu0
  %v3255 = vadd.f32 %v3062, %v3254
  %v3256 = vpop.f32.mrb[0].mxu0
  %3257 = vmatprep.mubr.f32.mxu0 %v2547
  %3258 = vmatmul.mubr.f32.gmra.mrb[0].mxu0 %v2531
  %v3259 = vpop.f32.mrb[0].mxu0
  %v3260 = vadd.f32 %v3067, %v3259
  %v3261 = vpop.f32.mrb[0].mxu0
  %3262 = vmatprep.mubr.f32.mxu0 %v2548
  %3263 = vmatmul.mubr.f32.gmra.mrb[0].mxu0 %v2532
  %v3264 = vpop.f32.mrb[0].mxu0
  %v3265 = vadd.f32 %v3072, %v3264
  %v3266 = vpop.f32.mrb[0].mxu0
  %3267 = vmatprep.mubr.f32.mxu0 %v2549
  %3268 = vmatmul.mubr.f32.gmra.mrb[0].mxu0 %v2533
  %v3269 = vpop.f32.mrb[0].mxu0
  %v3270 = vadd.f32 %v3077, %v3269
  %v3271 = vpop.f32.mrb[0].mxu0
  %3272 = vmatprep.mubr.f32.mxu0 %v2550
  %3273 = vmatmul.mubr.f32.gmra.mrb[0].mxu0 %v2534
  %v3274 = vpop.f32.mrb[0].mxu0
  %v3275 = vadd.f32 %v3082, %v3274
  %v3276 = vpop.f32.mrb[0].mxu0
  %3277 = vmatprep.mubr.f32.mxu0 %v2551
  %3278 = vmatmul.mubr.f32.gmra.mrb[0].mxu0 %v2535
  %v3279 = vpop.f32.mrb[0].mxu0
  %v3280 = vadd.f32 %v3087, %v3279
  %v3281 = vpop.f32.mrb[0].mxu0
  %3282 = vmatprep.mubr.f32.mxu0 %v2552
  %3283 = vmatmul.mubr.f32.gmra.mrb[0].mxu0 %v2536
  %v3284 = vpop.f32.mrb[0].mxu0
  %v3285 = vadd.f32 %v3092, %v3284
  %v3286 = vpop.f32.mrb[0].mxu0
  %3287 = vmatprep.mubr.f32.mxu0 %v2553
  %3288 = vmatmul.mubr.f32.gmra.mrb[0].mxu0 %v2537
  %v3289 = vpop.f32.mrb[0].mxu0
  %v3290 = vadd.f32 %v3097, %v3289
  %v3291 = vpop.f32.mrb[0].mxu0
  %3292 = vmatprep.mubr.f32.mxu0 %v2554
  %3293 = vmatmul.mubr.f32.gmra.mrb[0].mxu0 %v2538
  %v3294 = vpop.f32.mrb[0].mxu0
  %v3295 = vadd.f32 %v3102, %v3294
  %v3296 = vpop.f32.mrb[0].mxu0
  %3297 = vmatprep.mubr.f32.mxu0 %v2555
  %3298 = vmatmul.mubr.f32.gmra.mrb[0].mxu0 %v2539
  %v3299 = vpop.f32.mrb[0].mxu0
  %v3300 = vadd.f32 %v3107, %v3299
  %v3301 = vpop.f32.mrb[0].mxu0
  %3302 = vmatprep.mubr.f32.mxu0 %v2556
  %3303 = vmatmul.mubr.f32.gmra.mrb[0].mxu0 %v2540
  %v3304 = vpop.f32.mrb[0].mxu0
  %v3305 = vadd.f32 %v3112, %v3304
  %v3306 = vpop.f32.mrb[0].mxu0
  %3307 = vmatprep.mubr.f32.mxu0 %v2557
  %3308 = vmatmul.mubr.f32.gmra.mrb[0].mxu0 %v2541
  %v3309 = vpop.f32.mrb[0].mxu0
  %v3310 = vadd.f32 %v3117, %v3309
  %v3311 = vpop.f32.mrb[0].mxu0
  %3312 = vmatprep.mubr.f32.mxu0 %v2558
  %3313 = vmatmul.mubr.f32.gmra.mrb[0].mxu0 %v2542
  %v3314 = vpop.f32.mrb[0].mxu0
  %v3315 = vadd.f32 %v3122, %v3314
  %v3316 = vpop.f32.mrb[0].mxu0
  %3317 = vmatprep.mubr.f32.mxu0 %v2559
  %3318 = vmatmul.mubr.f32.gmra.mrb[0].mxu0 %v2543
  %v3319 = vpop.f32.mrb[0].mxu0
  %v3320 = vadd.f32 %v3127, %v3319
  %v3321 = vpop.f32.mrb[0].mxu0
  %3322 = vmatprep.mubr.f32.mxu0 %v2560
  %3323 = vmatmul.mubr.f32.gmra.mrb[0].mxu0 %v2544
  %v3324 = vpop.f32.mrb[0].mxu0
  %v3325 = vadd.f32 %v3132, %v3324
  %v3326 = vpop.f32.mrb[0].mxu0
  %3327 = vdwg.mxu0
  %3328 = vmatprep.subr.mxu0 0.0
  %3329 = vmatpush1.msra.mxu0 %v2753
  %3330 = vmatprep.subr.mxu0 0.0
  %3331 = vmatpush1.msra.mxu0 %v2754
  %3332 = vmatprep.subr.mxu0 0.0
  %3333 = vmatpush1.msra.mxu0 %v2755
  %3334 = vmatprep.subr.mxu0 0.0
  %3335 = vmatpush1.msra.mxu0 %v2756
  %3336 = vmatprep.subr.mxu0 0.0
  %3337 = vmatpush1.msra.mxu0 %v2757
  %3338 = vmatprep.subr.mxu0 0.0
  %3339 = vmatpush1.msra.mxu0 %v2758
  %3340 = vmatprep.subr.mxu0 0.0
  %3341 = vmatpush1.msra.mxu0 %v2759
  %3342 = vmatprep.subr.mxu0 0.0
  %3343 = vmatpush1.msra.mxu0 %v2760
  %3344 = vmatprep.subr.mxu0 0.0
  %3345 = vmatpush1.msra.mxu0 0.0
  %3346 = vmatprep.subr.mxu0 0.0
  %3347 = vmatpush1.msra.mxu0 0.0
  %3348 = vmatprep.subr.mxu0 0.0
  %3349 = vmatpush1.msra.mxu0 0.0
  %3350 = vmatprep.subr.mxu0 0.0
  %3351 = vmatpush1.msra.mxu0 0.0
  %3352 = vmatprep.subr.mxu0 0.0
  %3353 = vmatpush1.msra.mxu0 0.0
  %3354 = vmatprep.subr.mxu0 0.0
  %3355 = vmatpush1.msra.mxu0 0.0
  %3356 = vmatprep.subr.mxu0 0.0
  %3357 = vmatpush1.msra.mxu0 0.0
  %3358 = vmatprep.subr.mxu0 0.0
  %3359 = vmatpush1.msra.mxu0 0.0
  %3360 = vmatprep.subr.mxu0 0.0
  %3361 = vmatpush1.msra.mxu0 0.0
  %3362 = vmatprep.subr.mxu0 0.0
  %3363 = vmatpush1.msra.mxu0 0.0
  %3364 = vmatprep.subr.mxu0 0.0
  %3365 = vmatpush1.msra.mxu0 0.0
  %3366 = vmatprep.subr.mxu0 0.0
  %3367 = vmatpush1.msra.mxu0 0.0
  %3368 = vmatprep.subr.mxu0 0.0
  %3369 = vmatpush1.msra.mxu0 0.0
  %3370 = vmatprep.subr.mxu0 0.0
  %3371 = vmatpush1.msra.mxu0 0.0
  %3372 = vmatprep.subr.mxu0 0.0
  %3373 = vmatpush1.msra.mxu0 0.0
  %3374 = vmatprep.subr.mxu0 0.0
  %3375 = vmatpush1.msra.mxu0 0.0
  %3376 = vmatprep.subr.mxu0 0.0
  %3377 = vmatpush1.msra.mxu0 0.0
  %3378 = vmatprep.subr.mxu0 0.0
  %3379 = vmatpush1.msra.mxu0 0.0
  %3380 = vmatprep.subr.mxu0 0.0
  %3381 = vmatpush1.msra.mxu0 0.0
  %3382 = vmatprep.subr.mxu0 0.0
  %3383 = vmatpush1.msra.mxu0 0.0
  %3384 = vmatprep.subr.mxu0 0.0
  %3385 = vmatpush1.msra.mxu0 0.0
  %3386 = vmatprep.subr.mxu0 0.0
  %3387 = vmatpush1.msra.mxu0 0.0
  %3388 = vmatprep.subr.mxu0 0.0
  %3389 = vmatpush1.msra.mxu0 0.0
  %3390 = vmatprep.subr.mxu0 0.0
  %3391 = vmatpush1.msra.mxu0 0.0
  %3392 = vmatprep.mubr.f32.mxu0 0.0
  %3393 = vmatmul.mubr.f32.gmra.mrb[0].mxu0 %v3136
  %v3394 = vpop.f32.mrb[0].mxu0
  %v3395 = vadd.f32 %v3250, %v3394
  %v3396 = vpop.f32.mrb[0].mxu0
  %3397 = vmatprep.mubr.f32.mxu0 0.0
  %3398 = vmatmul.mubr.f32.gmra.mrb[0].mxu0 %v3139
  %v3399 = vpop.f32.mrb[0].mxu0
  %v3400 = vadd.f32 %v3255, %v3399
  %v3401 = vpop.f32.mrb[0].mxu0
  %3402 = vmatprep.mubr.f32.mxu0 0.0
  %3403 = vmatmul.mubr.f32.gmra.mrb[0].mxu0 %v3142
  %v3404 = vpop.f32.mrb[0].mxu0
  %v3405 = vadd.f32 %v3260, %v3404
  %v3406 = vpop.f32.mrb[0].mxu0
  %3407 = vmatprep.mubr.f32.mxu0 0.0
  %3408 = vmatmul.mubr.f32.gmra.mrb[0].mxu0 %v3145
  %v3409 = vpop.f32.mrb[0].mxu0
  %v3410 = vadd.f32 %v3265, %v3409
  %v3411 = vpop.f32.mrb[0].mxu0
  %3412 = vmatprep.mubr.f32.mxu0 0.0
  %3413 = vmatmul.mubr.f32.gmra.mrb[0].mxu0 %v3148
  %v3414 = vpop.f32.mrb[0].mxu0
  %v3415 = vadd.f32 %v3270, %v3414
  %v3416 = vpop.f32.mrb[0].mxu0
  %3417 = vmatprep.mubr.f32.mxu0 0.0
  %3418 = vmatmul.mubr.f32.gmra.mrb[0].mxu0 %v3151
  %v3419 = vpop.f32.mrb[0].mxu0
  %v3420 = vadd.f32 %v3275, %v3419
  %v3421 = vpop.f32.mrb[0].mxu0
  %3422 = vmatprep.mubr.f32.mxu0 0.0
  %3423 = vmatmul.mubr.f32.gmra.mrb[0].mxu0 %v3154
  %v3424 = vpop.f32.mrb[0].mxu0
  %v3425 = vadd.f32 %v3280, %v3424
  %v3426 = vpop.f32.mrb[0].mxu0
  %3427 = vmatprep.mubr.f32.mxu0 0.0
  %3428 = vmatmul.mubr.f32.gmra.mrb[0].mxu0 %v3157
  %v3429 = vpop.f32.mrb[0].mxu0
  %v3430 = vadd.f32 %v3285, %v3429
  %v3431 = vpop.f32.mrb[0].mxu0
  %3432 = vmatprep.mubr.f32.mxu0 0.0
  %3433 = vmatmul.mubr.f32.gmra.mrb[0].mxu0 %v3160
  %v3434 = vpop.f32.mrb[0].mxu0
  %v3435 = vadd.f32 %v3290, %v3434
  %v3436 = vpop.f32.mrb[0].mxu0
  %3437 = vmatprep.mubr.f32.mxu0 0.0
  %3438 = vmatmul.mubr.f32.gmra.mrb[0].mxu0 %v3163
  %v3439 = vpop.f32.mrb[0].mxu0
  %v3440 = vadd.f32 %v3295, %v3439
  %v3441 = vpop.f32.mrb[0].mxu0
  %3442 = vmatprep.mubr.f32.mxu0 0.0
  %3443 = vmatmul.mubr.f32.gmra.mrb[0].mxu0 %v3166
  %v3444 = vpop.f32.mrb[0].mxu0
  %v3445 = vadd.f32 %v3300, %v3444
  %v3446 = vpop.f32.mrb[0].mxu0
  %3447 = vmatprep.mubr.f32.mxu0 0.0
  %3448 = vmatmul.mubr.f32.gmra.mrb[0].mxu0 %v3169
  %v3449 = vpop.f32.mrb[0].mxu0
  %v3450 = vadd.f32 %v3305, %v3449
  %v3451 = vpop.f32.mrb[0].mxu0
  %3452 = vmatprep.mubr.f32.mxu0 0.0
  %3453 = vmatmul.mubr.f32.gmra.mrb[0].mxu0 %v3172
  %v3454 = vpop.f32.mrb[0].mxu0
  %v3455 = vadd.f32 %v3310, %v3454
  %v3456 = vpop.f32.mrb[0].mxu0
  %3457 = vmatprep.mubr.f32.mxu0 0.0
  %3458 = vmatmul.mubr.f32.gmra.mrb[0].mxu0 %v3175
  %v3459 = vpop.f32.mrb[0].mxu0
  %v3460 = vadd.f32 %v3315, %v3459
  %v3461 = vpop.f32.mrb[0].mxu0
  %3462 = vmatprep.mubr.f32.mxu0 0.0
  %3463 = vmatmul.mubr.f32.gmra.mrb[0].mxu0 %v3178
  %v3464 = vpop.f32.mrb[0].mxu0
  %v3465 = vadd.f32 %v3320, %v3464
  %v3466 = vpop.f32.mrb[0].mxu0
  %3467 = vmatprep.mubr.f32.mxu0 0.0
  %3468 = vmatmul.mubr.f32.gmra.mrb[0].mxu0 %v3181
  %v3469 = vpop.f32.mrb[0].mxu0
  %v3470 = vadd.f32 %v3325, %v3469
  %v3471 = vpop.f32.mrb[0].mxu0
  %3472 = vdwg.mxu0
  %v3473 = vlaneseq
  %v3474 = vshrl.u32 %v3473, 7
  %v3475 = vsub.s32 5, %v3474
  %v3476 = vrot.slane %v213, %v3475
  %v3477 = vadd.f32 %v3395, %v3476
  %v3478 = vadd.f32 %v3400, %v3476
  %v3479 = vadd.f32 %v3405, %v3476
  %v3480 = vadd.f32 %v3410, %v3476
  %v3481 = vadd.f32 %v3415, %v3476
  %v3482 = vadd.f32 %v3420, %v3476
  %v3483 = vadd.f32 %v3425, %v3476
  %v3484 = vadd.f32 %v3430, %v3476
  %v3485 = vadd.f32 %v3435, %v3476
  %v3486 = vadd.f32 %v3440, %v3476
  %v3487 = vadd.f32 %v3445, %v3476
  %v3488 = vadd.f32 %v3450, %v3476
  %v3489 = vadd.f32 %v3455, %v3476
  %v3490 = vadd.f32 %v3460, %v3476
  %v3491 = vadd.f32 %v3465, %v3476
  %v3492 = vadd.f32 %v3470, %v3476
  %3493 = vst.msk [vmem:[%s5] sm:$0xff] %vm1196, %v3477
  %3494 = vst.msk [vmem:[%s5 + $0x8] sm:$0xff] %vm1196, %v3478
  %3495 = vst.msk [vmem:[%s5 + $0x10] sm:$0xff] %vm1196, %v3479
  %3496 = vst.msk [vmem:[%s5 + $0x18] sm:$0xff] %vm1196, %v3480
  %3497 = vst.msk [vmem:[%s5 + $0x20] sm:$0xff] %vm1196, %v3481
  %3498 = vst.msk [vmem:[%s5 + $0x28] sm:$0xff] %vm1196, %v3482
  %3499 = vst.msk [vmem:[%s5 + $0x30] sm:$0xff] %vm1196, %v3483
  %3500 = vst.msk [vmem:[%s5 + $0x38] sm:$0xff] %vm1196, %v3484
  %3501 = vst.msk [vmem:[%s5 + $0x40] sm:$0xff] %vm1196, %v3485
  %3502 = vst.msk [vmem:[%s5 + $0x48] sm:$0xff] %vm1196, %v3486
  %3503 = vst.msk [vmem:[%s5 + $0x50] sm:$0xff] %vm1196, %v3487
  %3504 = vst.msk [vmem:[%s5 + $0x58] sm:$0xff] %vm1196, %v3488
  %3505 = vst.msk [vmem:[%s5 + $0x60] sm:$0xff] %vm1196, %v3489
  %3506 = vst.msk [vmem:[%s5 + $0x68] sm:$0xff] %vm1196, %v3490
  %3507 = vst.msk [vmem:[%s5 + $0x70] sm:$0xff] %vm1196, %v3491
  %3508 = vst.msk [vmem:[%s5 + $0x78] sm:$0xff] %vm1196, %v3492
  // Predicated region
  $region22: #{tpu_custom_call.1} parent=0 // pred_check
    _
  $region23: #{tpu_custom_call.1} parent=0 // pred_check_branch
    %3510 = sbr.rel (0) target = $region25
  $region24: #{tpu_custom_call.1} parent=0 // pred_region
    _
  $region25: #{tpu_custom_call.1} parent=0 // pred_fallthru
    _
  // Predicated region
  $region26: #{tpu_custom_call.1} parent=0 // pred_check
    _
  $region27: #{tpu_custom_call.1} parent=0 // pred_check_branch
    %3512 = sbr.rel (0) target = $region29
  $region28: #{tpu_custom_call.1} parent=0 // pred_region
    _
  $region29: #{tpu_custom_call.1} parent=0 // pred_fallthru
    _

</llo_original>
